<compile_context>
chip_gen: v7x
topology: tpu7x:2x2x1
jax: 0.10.0
libtpu: 0.0.40
codegen_flags: <defaults>
</compile_context>

<pallas_src>
import functools

import jax
import jax.numpy as jnp
import numpy as np
from jax import lax
from jax.experimental import pallas as pl
from jax.experimental.pallas import tpu as pltpu


def _round_up(x, m):
    return (x + m - 1) // m * m


# ----------------------------------------------------------------------------
# Fused kernel.  grid = (COUT_blocks ["parallel"], N ["arbitrary"]).
# Per step: pad + strided im2col + one bf16 MXU dot for batch element n, stored
# lane-dense into the resident output block; per-channel sum/sumsq accumulated.
# At the last batch step: finalize BN stats, apply BN + PReLU in one pass.
# ----------------------------------------------------------------------------
def _make_fused_kernel(N, H, W, CIN, CIN_P, K, S, P, HO, WO, linear, eps):
    L = HO * WO
    inv_cnt = 1.0 / float(N * HO * WO)

    def kernel(x_ref, w_ref, p_ref, o_ref, xpad_ref, col_ref, ssum_ref, ssq_ref):
        # x_ref   : (1, CIN, H, W)        current batch element (NCHW, f32)
        # w_ref   : (TCO, K*K*CIN_P)      bf16 weights, cols ordered (kh, kw, cin_p)
        # p_ref   : (TCO, 3)              [gamma, beta, alpha] per channel
        # o_ref   : (N, TCO, HO*WO)       resident output block (NCHW-flat, f32)
        # xpad_ref: (CIN_P, H+2P, W+2P)   padded image scratch (channel-first, f32)
        # col_ref : (K*K*CIN_P, HO*WO)    im2col scratch (bf16)
        # ssum/ssq: (TCO, 1)              per-channel batch statistics (f32)
        n = pl.program_id(1)

        # Re-init per-channel-block state at the start of every batch sweep
        # (correct under megacore: each core's sweep starts at n == 0).
        @pl.when(n == 0)
        def _():
            xpad_ref[...] = jnp.zeros_like(xpad_ref)   # halo + padded chans stay 0
            ssum_ref[...] = jnp.zeros_like(ssum_ref)
            ssq_ref[...] = jnp.zeros_like(ssq_ref)

        # Interior of the halo <- this batch element (only the real CIN channels;
        # padded channel slabs remain zero).
        xpad_ref[pl.ds(0, CIN), pl.ds(P, H), pl.ds(P, W)] = x_ref[0]

        # Strided, transpose-free im2col: rows ordered (kh, kw, cin_p).  Each tap
        # write is CIN_P (multiple of 16) rows -> full packed-sublane bf16 tiles,
        # lane-dense over L.
        for kh in range(K):
            for kw in range(K):
                t = kh * K + kw
                if S == 1:
                    patch = xpad_ref[:, pl.ds(kh, HO), pl.ds(kw, WO)]
                else:
                    patch = xpad_ref[:, pl.ds(kh, HO, stride=S),
                                     pl.ds(kw, WO, stride=S)]
                col_ref[pl.ds(t * CIN_P, CIN_P), :] = (
                    patch.reshape(CIN_P, L).astype(jnp.bfloat16))

        # One bf16 MXU matmul, f32 accumulation, result lane-dense (TCO, HO*WO).
        y = jnp.dot(w_ref[...], col_ref[...], preferred_element_type=jnp.float32)
        o_ref[n] = y

        # Incremental BN statistics (hidden under the pipeline, no 3-pass tail).
        ssum_ref[...] += jnp.sum(y, axis=1, keepdims=True)
        ssq_ref[...] += jnp.sum(y * y, axis=1, keepdims=True)

        # Final batch step: finalize stats, apply BN + PReLU in one pass.
        @pl.when(n == pl.num_programs(1) - 1)
        def _():
            mean = ssum_ref[...] * inv_cnt                       # (TCO, 1)
            var = ssq_ref[...] * inv_cnt - mean * mean           # biased variance
            gamma = p_ref[:, 0:1]
            beta = p_ref[:, 1:2]
            scale = gamma * lax.rsqrt(var + eps)
            shift = beta - mean * scale
            z = o_ref[...] * scale + shift                       # (N, TCO, L)
            if not linear:
                alpha = p_ref[:, 2:3]
                z = jnp.where(z >= 0.0, z, alpha * z)
            o_ref[...] = z

    return kernel


# ----------------------------------------------------------------------------
# ConvBlock forward (PyTorch module in training mode: BN uses batch statistics
# with biased variance; PReLU has a per-channel slope).
# ----------------------------------------------------------------------------
@functools.partial(jax.jit, static_argnames=("k", "s", "p", "linear", "eps"))
def conv_block_forward(x_nchw, w_oihw, gamma, beta, alpha, *, k, s, p,
                       linear=False, eps=1e-5):
    # TODO(synk): depthwise (dw=True, groups=inp) variant not implemented;
    # this covers the standard-conv path of the module.
    N, CIN, H, W = x_nchw.shape
    COUT = w_oihw.shape[0]
    HO = (H + 2 * p - k) // s + 1
    WO = (W + 2 * p - k) // s + 1
    L = HO * WO

    # Pad channels to a full bf16 packed-sublane tile so im2col stores are
    # unmasked full-tile stores (free when CIN is already a multiple of 16).
    CIN_P = _round_up(CIN, 16)
    KKCP = k * k * CIN_P

    # COUT blocking for the leading "parallel" grid axis (v7x dual-TC).  Blocks
    # must be sublane multiples; small COUT -> a single block.
    if COUT % 16 == 0:
        TCO = COUT // 2
    else:
        TCO = COUT
    G_CO = COUT // TCO

    x = x_nchw.astype(jnp.float32)                       # NCHW, no transpose pass
    # (COUT, CIN, K, K) -> (COUT, K, K, CIN_P) -> (COUT, K*K*CIN_P), bf16.
    w_khwc = jnp.transpose(w_oihw, (0, 2, 3, 1)).astype(jnp.float32)
    w_khwc = jnp.pad(w_khwc, ((0, 0), (0, 0), (0, 0), (0, CIN_P - CIN)))
    w2 = w_khwc.reshape(COUT, KKCP).astype(jnp.bfloat16)
    # Per-channel BN/PReLU parameters packed as (COUT, 3): [gamma, beta, alpha].
    params = jnp.stack([gamma, beta, alpha], axis=1).astype(jnp.float32)

    kernel = _make_fused_kernel(N, H, W, CIN, CIN_P, k, s, p, HO, WO, linear, eps)

    # Explicit VMEM budget: resident output + col + padded image + double-buffered
    # input + resident weights/params, with 2x slack; clamped to [32 MiB, 64 MiB]
    # so it is valid on v5e/v6e (128 MiB physical) and v7x (64 MiB physical).
    est = (2 * N * TCO * L * 4 + KKCP * L * 2
           + CIN_P * (H + 2 * p) * (W + 2 * p) * 4
           + 2 * CIN * H * W * 4 + 2 * TCO * KKCP * 2 + (1 << 20))
    vmem_limit = int(min(64 << 20, max(32 << 20, 2 * est)))

    out_flat = pl.pallas_call(
        kernel,
        out_shape=jax.ShapeDtypeStruct((N, COUT, L), jnp.float32),
        grid=(G_CO, N),
        in_specs=[
            pl.BlockSpec((1, CIN, H, W), lambda co, n: (n, 0, 0, 0)),
            pl.BlockSpec((TCO, KKCP), lambda co, n: (co, 0)),   # VMEM-resident
            pl.BlockSpec((TCO, 3), lambda co, n: (co, 0)),      # VMEM-resident
        ],
        # Output block constant over n -> resident in VMEM across the batch sweep,
        # one HBM writeback per COUT block.
        out_specs=pl.BlockSpec((N, TCO, L), lambda co, n: (0, co, 0)),
        scratch_shapes=[
            pltpu.VMEM((CIN_P, H + 2 * p, W + 2 * p), jnp.float32),  # padded image
            pltpu.VMEM((KKCP, L), jnp.bfloat16),                     # im2col
            pltpu.VMEM((TCO, 1), jnp.float32),                       # sum(y)
            pltpu.VMEM((TCO, 1), jnp.float32),                       # sum(y^2)
        ],
        compiler_params=pltpu.CompilerParams(
            dimension_semantics=("parallel", "arbitrary"),
            vmem_limit_bytes=vmem_limit),
    )(x, w2, params)

    return out_flat.reshape(N, COUT, HO, WO)   # already NCHW order (cheap)


# ----------------------------------------------------------------------------
# Pure-JAX reference for verification.
# ----------------------------------------------------------------------------
def conv_block_reference(x_nchw, w_oihw, gamma, beta, alpha, *, k, s, p,
                         linear=False, eps=1e-5):
    y = lax.conv_general_dilated(
        x_nchw, w_oihw, window_strides=(s, s), padding=[(p, p), (p, p)],
        dimension_numbers=("NCHW", "OIHW", "NCHW"))
    mean = jnp.mean(y, axis=(0, 2, 3), keepdims=True)
    var = jnp.mean(jnp.square(y - mean), axis=(0, 2, 3), keepdims=True)
    z = (y - mean) * lax.rsqrt(var + eps)
    z = z * gamma.reshape(1, -1, 1, 1) + beta.reshape(1, -1, 1, 1)
    if linear:
        return z
    a = alpha.reshape(1, -1, 1, 1)
    return jnp.where(z >= 0.0, z, a * z)


if __name__ == "__main__":
    # ConvBlock(inp=4, oup=8, k=3, s=1, p=1, dw=False, linear=False)
    N, CIN, H, W = 2, 4, 16, 16
    COUT, K, S, P = 8, 3, 1, 1
    LINEAR = False

    key = jax.random.PRNGKey(0)
    kx, kw = jax.random.split(key)
    x = jax.random.normal(kx, (N, CIN, H, W), dtype=jnp.float32)
    w = 0.1 * jax.random.normal(kw, (COUT, CIN, K, K), dtype=jnp.float32)
    # Pre-quantize conv operands to bf16-representable values (exactly what the
    # kernel's bf16 MXU path consumes) so the f32 reference sees identical inputs.
    x = x.astype(jnp.bfloat16).astype(jnp.float32)
    w = w.astype(jnp.bfloat16).astype(jnp.float32)
    gamma = jnp.ones((COUT,), jnp.float32)        # bn.weight
    beta = jnp.zeros((COUT,), jnp.float32)        # bn.bias
    alpha = jnp.full((COUT,), 0.25, jnp.float32)  # prelu per-channel slope

    out = conv_block_forward(x, w, gamma, beta, alpha,
                             k=K, s=S, p=P, linear=LINEAR)
    out = jax.block_until_ready(out)

    ref = conv_block_reference(x, w, gamma, beta, alpha,
                               k=K, s=S, p=P, linear=LINEAR)
    np.testing.assert_allclose(np.asarray(out), np.asarray(ref),
                               rtol=1e-3, atol=1e-3)
    print("KERNEL_OK")
</pallas_src>

<mosaic_0001>
module attributes {stable_mosaic.version = 11 : i64} {
  func.func @kernel(%arg0: i32, %arg1: i32, %arg2: memref<1x4x16x16xf32, #tpu.memory_space<vmem>>, %arg3: memref<8x144xbf16, #tpu.memory_space<vmem>>, %arg4: memref<8x3xf32, #tpu.memory_space<vmem>>, %arg5: memref<2x8x256xf32, #tpu.memory_space<vmem>>, %arg6: memref<16x18x18xf32, #tpu.memory_space<vmem>>, %arg7: memref<144x256xbf16, #tpu.memory_space<vmem>>, %arg8: memref<8x1xf32, #tpu.memory_space<vmem>>, %arg9: memref<8x1xf32, #tpu.memory_space<vmem>>) attributes {dimension_semantics = [#tpu.dimension_semantics<parallel>, #tpu.dimension_semantics<arbitrary>], iteration_bounds = array<i64: 1, 2>, scalar_prefetch = 0 : i64, scratch_operands = 4 : i64, tpu.core_type = #tpu.core_type<tc>, window_params = [{transform_indices = @transform_0, window_bounds = array<i64: 1, 4, 16, 16>}, {transform_indices = @transform_1, window_bounds = array<i64: 8, 144>}, {transform_indices = @transform_2, window_bounds = array<i64: 8, 3>}, {transform_indices = @transform_3, window_bounds = array<i64: 2, 8, 256>}]} {
    %c0_i32 = arith.constant 0 : i32
    %0 = arith.cmpi eq, %arg1, %c0_i32 : i32
    %1 = arith.extui %0 : i1 to i32
    %c0_i32_0 = arith.constant 0 : i32
    %2 = arith.cmpi ne, %1, %c0_i32_0 : i32
    scf.if %2 {
      %cst_59 = arith.constant 0.000000e+00 : f32
      %63 = vector.broadcast %cst_59 : f32 to vector<16x18x18xf32>
      %c0_60 = arith.constant 0 : index
      %c0_61 = arith.constant 0 : index
      %c0_62 = arith.constant 0 : index
      %64 = vector.load %arg6[%c0_60, %c0_61, %c0_62] : memref<16x18x18xf32, #tpu.memory_space<vmem>>, vector<16x18x18xf32>
      tpu.vector_store %arg6[%c0_60, %c0_61, %c0_62], %63 {strides = array<i32>} : memref<16x18x18xf32, #tpu.memory_space<vmem>>, vector<16x18x18xf32>,
      %cst_63 = arith.constant 0.000000e+00 : f32
      %65 = vector.broadcast %cst_63 : f32 to vector<8x1xf32>
      %c0_64 = arith.constant 0 : index
      %c0_65 = arith.constant 0 : index
      %66 = vector.load %arg8[%c0_64, %c0_65] : memref<8x1xf32, #tpu.memory_space<vmem>>, vector<8x1xf32>
      tpu.vector_store %arg8[%c0_64, %c0_65], %65 {strides = array<i32>} : memref<8x1xf32, #tpu.memory_space<vmem>>, vector<8x1xf32>,
      %cst_66 = arith.constant 0.000000e+00 : f32
      %67 = vector.broadcast %cst_66 : f32 to vector<8x1xf32>
      %c0_67 = arith.constant 0 : index
      %c0_68 = arith.constant 0 : index
      %68 = vector.load %arg9[%c0_67, %c0_68] : memref<8x1xf32, #tpu.memory_space<vmem>>, vector<8x1xf32>
      tpu.vector_store %arg9[%c0_67, %c0_68], %67 {strides = array<i32>} : memref<8x1xf32, #tpu.memory_space<vmem>>, vector<8x1xf32>,
    } else {
    }
    %c0 = arith.constant 0 : index
    %c0_1 = arith.constant 0 : index
    %c0_2 = arith.constant 0 : index
    %c0_3 = arith.constant 0 : index
    %3 = vector.load %arg2[%c0, %c0_1, %c0_2, %c0_3] : memref<1x4x16x16xf32, #tpu.memory_space<vmem>>, vector<1x4x16x16xf32>
    %4 = vector.shape_cast %3 : vector<1x4x16x16xf32> to vector<4x16x16xf32>
    %c0_4 = arith.constant 0 : index
    %c1 = arith.constant 1 : index
    %c1_5 = arith.constant 1 : index
    %5 = vector.load %arg6[%c0_4, %c1, %c1_5] : memref<16x18x18xf32, #tpu.memory_space<vmem>>, vector<4x16x16xf32>
    tpu.vector_store %arg6[%c0_4, %c1, %c1_5], %4 {strides = array<i32>} : memref<16x18x18xf32, #tpu.memory_space<vmem>>, vector<4x16x16xf32>,
    %c0_6 = arith.constant 0 : index
    %c0_7 = arith.constant 0 : index
    %c0_8 = arith.constant 0 : index
    %6 = vector.load %arg6[%c0_6, %c0_7, %c0_8] : memref<16x18x18xf32, #tpu.memory_space<vmem>>, vector<16x16x16xf32>
    %7 = vector.shape_cast %6 : vector<16x16x16xf32> to vector<16x256xf32>
    %8 = arith.truncf %7 : vector<16x256xf32> to vector<16x256xbf16>
    %c0_9 = arith.constant 0 : index
    %c0_10 = arith.constant 0 : index
    %9 = vector.load %arg7[%c0_9, %c0_10] : memref<144x256xbf16, #tpu.memory_space<vmem>>, vector<16x256xbf16>
    tpu.vector_store %arg7[%c0_9, %c0_10], %8 {strides = array<i32>} : memref<144x256xbf16, #tpu.memory_space<vmem>>, vector<16x256xbf16>,
    %c0_11 = arith.constant 0 : index
    %c0_12 = arith.constant 0 : index
    %c1_13 = arith.constant 1 : index
    %10 = vector.load %arg6[%c0_11, %c0_12, %c1_13] : memref<16x18x18xf32, #tpu.memory_space<vmem>>, vector<16x16x16xf32>
    %11 = vector.shape_cast %10 : vector<16x16x16xf32> to vector<16x256xf32>
    %12 = arith.truncf %11 : vector<16x256xf32> to vector<16x256xbf16>
    %c16 = arith.constant 16 : index
    %c0_14 = arith.constant 0 : index
    %13 = vector.load %arg7[%c16, %c0_14] : memref<144x256xbf16, #tpu.memory_space<vmem>>, vector<16x256xbf16>
    tpu.vector_store %arg7[%c16, %c0_14], %12 {strides = array<i32>} : memref<144x256xbf16, #tpu.memory_space<vmem>>, vector<16x256xbf16>,
    %c0_15 = arith.constant 0 : index
    %c0_16 = arith.constant 0 : index
    %c2 = arith.constant 2 : index
    %14 = vector.load %arg6[%c0_15, %c0_16, %c2] : memref<16x18x18xf32, #tpu.memory_space<vmem>>, vector<16x16x16xf32>
    %15 = vector.shape_cast %14 : vector<16x16x16xf32> to vector<16x256xf32>
    %16 = arith.truncf %15 : vector<16x256xf32> to vector<16x256xbf16>
    %c32 = arith.constant 32 : index
    %c0_17 = arith.constant 0 : index
    %17 = vector.load %arg7[%c32, %c0_17] : memref<144x256xbf16, #tpu.memory_space<vmem>>, vector<16x256xbf16>
    tpu.vector_store %arg7[%c32, %c0_17], %16 {strides = array<i32>} : memref<144x256xbf16, #tpu.memory_space<vmem>>, vector<16x256xbf16>,
    %c0_18 = arith.constant 0 : index
    %c1_19 = arith.constant 1 : index
    %c0_20 = arith.constant 0 : index
    %18 = vector.load %arg6[%c0_18, %c1_19, %c0_20] : memref<16x18x18xf32, #tpu.memory_space<vmem>>, vector<16x16x16xf32>
    %19 = vector.shape_cast %18 : vector<16x16x16xf32> to vector<16x256xf32>
    %20 = arith.truncf %19 : vector<16x256xf32> to vector<16x256xbf16>
    %c48 = arith.constant 48 : index
    %c0_21 = arith.constant 0 : index
    %21 = vector.load %arg7[%c48, %c0_21] : memref<144x256xbf16, #tpu.memory_space<vmem>>, vector<16x256xbf16>
    tpu.vector_store %arg7[%c48, %c0_21], %20 {strides = array<i32>} : memref<144x256xbf16, #tpu.memory_space<vmem>>, vector<16x256xbf16>,
    %c0_22 = arith.constant 0 : index
    %c1_23 = arith.constant 1 : index
    %c1_24 = arith.constant 1 : index
    %22 = vector.load %arg6[%c0_22, %c1_23, %c1_24] : memref<16x18x18xf32, #tpu.memory_space<vmem>>, vector<16x16x16xf32>
    %23 = vector.shape_cast %22 : vector<16x16x16xf32> to vector<16x256xf32>
    %24 = arith.truncf %23 : vector<16x256xf32> to vector<16x256xbf16>
    %c64 = arith.constant 64 : index
    %c0_25 = arith.constant 0 : index
    %25 = vector.load %arg7[%c64, %c0_25] : memref<144x256xbf16, #tpu.memory_space<vmem>>, vector<16x256xbf16>
    tpu.vector_store %arg7[%c64, %c0_25], %24 {strides = array<i32>} : memref<144x256xbf16, #tpu.memory_space<vmem>>, vector<16x256xbf16>,
    %c0_26 = arith.constant 0 : index
    %c1_27 = arith.constant 1 : index
    %c2_28 = arith.constant 2 : index
    %26 = vector.load %arg6[%c0_26, %c1_27, %c2_28] : memref<16x18x18xf32, #tpu.memory_space<vmem>>, vector<16x16x16xf32>
    %27 = vector.shape_cast %26 : vector<16x16x16xf32> to vector<16x256xf32>
    %28 = arith.truncf %27 : vector<16x256xf32> to vector<16x256xbf16>
    %c80 = arith.constant 80 : index
    %c0_29 = arith.constant 0 : index
    %29 = vector.load %arg7[%c80, %c0_29] : memref<144x256xbf16, #tpu.memory_space<vmem>>, vector<16x256xbf16>
    tpu.vector_store %arg7[%c80, %c0_29], %28 {strides = array<i32>} : memref<144x256xbf16, #tpu.memory_space<vmem>>, vector<16x256xbf16>,
    %c0_30 = arith.constant 0 : index
    %c2_31 = arith.constant 2 : index
    %c0_32 = arith.constant 0 : index
    %30 = vector.load %arg6[%c0_30, %c2_31, %c0_32] : memref<16x18x18xf32, #tpu.memory_space<vmem>>, vector<16x16x16xf32>
    %31 = vector.shape_cast %30 : vector<16x16x16xf32> to vector<16x256xf32>
    %32 = arith.truncf %31 : vector<16x256xf32> to vector<16x256xbf16>
    %c96 = arith.constant 96 : index
    %c0_33 = arith.constant 0 : index
    %33 = vector.load %arg7[%c96, %c0_33] : memref<144x256xbf16, #tpu.memory_space<vmem>>, vector<16x256xbf16>
    tpu.vector_store %arg7[%c96, %c0_33], %32 {strides = array<i32>} : memref<144x256xbf16, #tpu.memory_space<vmem>>, vector<16x256xbf16>,
    %c0_34 = arith.constant 0 : index
    %c2_35 = arith.constant 2 : index
    %c1_36 = arith.constant 1 : index
    %34 = vector.load %arg6[%c0_34, %c2_35, %c1_36] : memref<16x18x18xf32, #tpu.memory_space<vmem>>, vector<16x16x16xf32>
    %35 = vector.shape_cast %34 : vector<16x16x16xf32> to vector<16x256xf32>
    %36 = arith.truncf %35 : vector<16x256xf32> to vector<16x256xbf16>
    %c112 = arith.constant 112 : index
    %c0_37 = arith.constant 0 : index
    %37 = vector.load %arg7[%c112, %c0_37] : memref<144x256xbf16, #tpu.memory_space<vmem>>, vector<16x256xbf16>
    tpu.vector_store %arg7[%c112, %c0_37], %36 {strides = array<i32>} : memref<144x256xbf16, #tpu.memory_space<vmem>>, vector<16x256xbf16>,
    %c0_38 = arith.constant 0 : index
    %c2_39 = arith.constant 2 : index
    %c2_40 = arith.constant 2 : index
    %38 = vector.load %arg6[%c0_38, %c2_39, %c2_40] : memref<16x18x18xf32, #tpu.memory_space<vmem>>, vector<16x16x16xf32>
    %39 = vector.shape_cast %38 : vector<16x16x16xf32> to vector<16x256xf32>
    %40 = arith.truncf %39 : vector<16x256xf32> to vector<16x256xbf16>
    %c128 = arith.constant 128 : index
    %c0_41 = arith.constant 0 : index
    %41 = vector.load %arg7[%c128, %c0_41] : memref<144x256xbf16, #tpu.memory_space<vmem>>, vector<16x256xbf16>
    tpu.vector_store %arg7[%c128, %c0_41], %40 {strides = array<i32>} : memref<144x256xbf16, #tpu.memory_space<vmem>>, vector<16x256xbf16>,
    %c0_42 = arith.constant 0 : index
    %c0_43 = arith.constant 0 : index
    %42 = vector.load %arg3[%c0_42, %c0_43] : memref<8x144xbf16, #tpu.memory_space<vmem>>, vector<8x144xbf16>
    %c0_44 = arith.constant 0 : index
    %c0_45 = arith.constant 0 : index
    %43 = vector.load %arg7[%c0_44, %c0_45] : memref<144x256xbf16, #tpu.memory_space<vmem>>, vector<144x256xbf16>
    %cst = arith.constant dense<0.000000e+00> : vector<8x256xf32>
    %44 = tpu.matmul %42, %43, %cst {dimension_numbers = #tpu.dot_dimension_numbers<[1], [0], [0], [1], [0, 0, 1, 1], [], []>} : vector<8x144xbf16>, vector<144x256xbf16>, vector<8x256xf32> -> vector<8x256xf32>
    %45 = arith.index_cast %arg1 : i32 to index
    %c0_46 = arith.constant 0 : index
    %c0_47 = arith.constant 0 : index
    %46 = vector.load %arg5[%45, %c0_46, %c0_47] : memref<2x8x256xf32, #tpu.memory_space<vmem>>, vector<1x8x256xf32>
    %47 = vector.shape_cast %46 : vector<1x8x256xf32> to vector<8x256xf32>
    %48 = vector.shape_cast %44 : vector<8x256xf32> to vector<1x8x256xf32>
    tpu.vector_store %arg5[%45, %c0_46, %c0_47], %48 {strides = array<i32>} : memref<2x8x256xf32, #tpu.memory_space<vmem>>, vector<1x8x256xf32>,
    %c0_48 = arith.constant 0 : index
    %c0_49 = arith.constant 0 : index
    %49 = vector.load %arg8[%c0_48, %c0_49] : memref<8x1xf32, #tpu.memory_space<vmem>>, vector<8x1xf32>
    %cst_50 = arith.constant dense<0.000000e+00> : vector<8xf32>
    %50 = vector.multi_reduction <add>, %44, %cst_50 [1] : vector<8x256xf32> to vector<8xf32>
    %51 = vector.shape_cast %50 : vector<8xf32> to vector<8x1xf32>
    %52 = arith.addf %49, %51 : vector<8x1xf32>
    %c0_51 = arith.constant 0 : index
    %c0_52 = arith.constant 0 : index
    %53 = vector.load %arg8[%c0_51, %c0_52] : memref<8x1xf32, #tpu.memory_space<vmem>>, vector<8x1xf32>
    tpu.vector_store %arg8[%c0_51, %c0_52], %52 {strides = array<i32>} : memref<8x1xf32, #tpu.memory_space<vmem>>, vector<8x1xf32>,
    %c0_53 = arith.constant 0 : index
    %c0_54 = arith.constant 0 : index
    %54 = vector.load %arg9[%c0_53, %c0_54] : memref<8x1xf32, #tpu.memory_space<vmem>>, vector<8x1xf32>
    %55 = arith.mulf %44, %44 : vector<8x256xf32>
    %cst_55 = arith.constant dense<0.000000e+00> : vector<8xf32>
    %56 = vector.multi_reduction <add>, %55, %cst_55 [1] : vector<8x256xf32> to vector<8xf32>
    %57 = vector.shape_cast %56 : vector<8xf32> to vector<8x1xf32>
    %58 = arith.addf %54, %57 : vector<8x1xf32>
    %c0_56 = arith.constant 0 : index
    %c0_57 = arith.constant 0 : index
    %59 = vector.load %arg9[%c0_56, %c0_57] : memref<8x1xf32, #tpu.memory_space<vmem>>, vector<8x1xf32>
    tpu.vector_store %arg9[%c0_56, %c0_57], %58 {strides = array<i32>} : memref<8x1xf32, #tpu.memory_space<vmem>>, vector<8x1xf32>,
    %c1_i32 = arith.constant 1 : i32
    %60 = arith.cmpi eq, %arg1, %c1_i32 : i32
    %61 = arith.extui %60 : i1 to i32
    %c0_i32_58 = arith.constant 0 : i32
    %62 = arith.cmpi ne, %61, %c0_i32_58 : i32
    scf.if %62 {
      %c0_59 = arith.constant 0 : index
      %c0_60 = arith.constant 0 : index
      %63 = vector.load %arg8[%c0_59, %c0_60] : memref<8x1xf32, #tpu.memory_space<vmem>>, vector<8x1xf32>
      %cst_61 = arith.constant 0.001953125 : f32
      %64 = vector.broadcast %cst_61 : f32 to vector<8x1xf32>
      %65 = arith.mulf %63, %64 : vector<8x1xf32>
      %c0_62 = arith.constant 0 : index
      %c0_63 = arith.constant 0 : index
      %66 = vector.load %arg9[%c0_62, %c0_63] : memref<8x1xf32, #tpu.memory_space<vmem>>, vector<8x1xf32>
      %cst_64 = arith.constant 0.001953125 : f32
      %67 = vector.broadcast %cst_64 : f32 to vector<8x1xf32>
      %68 = arith.mulf %66, %67 : vector<8x1xf32>
      %69 = arith.mulf %65, %65 : vector<8x1xf32>
      %70 = arith.subf %68, %69 : vector<8x1xf32>
      %c0_65 = arith.constant 0 : index
      %c0_66 = arith.constant 0 : index
      %71 = vector.load %arg4[%c0_65, %c0_66] : memref<8x3xf32, #tpu.memory_space<vmem>>, vector<8x1xf32>
      %c0_67 = arith.constant 0 : index
      %c1_68 = arith.constant 1 : index
      %72 = vector.load %arg4[%c0_67, %c1_68] : memref<8x3xf32, #tpu.memory_space<vmem>>, vector<8x1xf32>
      %cst_69 = arith.constant 9.99999974E-6 : f32
      %73 = vector.broadcast %cst_69 : f32 to vector<8x1xf32>
      %74 = arith.addf %70, %73 : vector<8x1xf32>
      %75 = math.rsqrt %74 : vector<8x1xf32>
      %76 = arith.mulf %71, %75 : vector<8x1xf32>
      %77 = arith.mulf %65, %76 : vector<8x1xf32>
      %78 = arith.subf %72, %77 : vector<8x1xf32>
      %c0_70 = arith.constant 0 : index
      %c0_71 = arith.constant 0 : index
      %c0_72 = arith.constant 0 : index
      %79 = vector.load %arg5[%c0_70, %c0_71, %c0_72] : memref<2x8x256xf32, #tpu.memory_space<vmem>>, vector<2x8x256xf32>
      %80 = vector.shape_cast %76 : vector<8x1xf32> to vector<1x8x1xf32>
      %81 = vector.broadcast %80 : vector<1x8x1xf32> to vector<2x8x256xf32>
      %82 = arith.mulf %79, %81 : vector<2x8x256xf32>
      %83 = vector.shape_cast %78 : vector<8x1xf32> to vector<1x8x1xf32>
      %84 = vector.broadcast %83 : vector<1x8x1xf32> to vector<2x8x256xf32>
      %85 = arith.addf %82, %84 : vector<2x8x256xf32>
      %c0_73 = arith.constant 0 : index
      %c2_74 = arith.constant 2 : index
      %86 = vector.load %arg4[%c0_73, %c2_74] : memref<8x3xf32, #tpu.memory_space<vmem>>, vector<8x1xf32>
      %cst_75 = arith.constant 0.000000e+00 : f32
      %87 = vector.broadcast %cst_75 : f32 to vector<2x8x256xf32>
      %88 = arith.cmpf oge, %85, %87 : vector<2x8x256xf32>
      %89 = vector.shape_cast %86 : vector<8x1xf32> to vector<1x8x1xf32>
      %90 = vector.broadcast %89 : vector<1x8x1xf32> to vector<2x8x256xf32>
      %91 = arith.mulf %90, %85 : vector<2x8x256xf32>
      %92 = arith.select %88, %85, %91 : vector<2x8x256xi1>, vector<2x8x256xf32>
      %c0_76 = arith.constant 0 : index
      %c0_77 = arith.constant 0 : index
      %c0_78 = arith.constant 0 : index
      %93 = vector.load %arg5[%c0_76, %c0_77, %c0_78] : memref<2x8x256xf32, #tpu.memory_space<vmem>>, vector<2x8x256xf32>
      tpu.vector_store %arg5[%c0_76, %c0_77, %c0_78], %92 {strides = array<i32>} : memref<2x8x256xf32, #tpu.memory_space<vmem>>, vector<2x8x256xf32>,
    } else {
    }
    return
  }
  func.func @transform_0(%arg0: i32, %arg1: i32) -> (i32, i32, i32, i32) {
    %c0_i32 = arith.constant 0 : i32
    %c0_i32_0 = arith.constant 0 : i32
    %c0_i32_1 = arith.constant 0 : i32
    %c0_i32_2 = arith.constant 0 : i32
    return %arg1, %c0_i32, %c0_i32_0, %c0_i32_1 : i32, i32, i32, i32
  }
  func.func @transform_1(%arg0: i32, %arg1: i32) -> (i32, i32) {
    %c0_i32 = arith.constant 0 : i32
    %c0_i32_0 = arith.constant 0 : i32
    return %arg0, %c0_i32 : i32, i32
  }
  func.func @transform_2(%arg0: i32, %arg1: i32) -> (i32, i32) {
    %c0_i32 = arith.constant 0 : i32
    %c0_i32_0 = arith.constant 0 : i32
    return %arg0, %c0_i32 : i32, i32
  }
  func.func @transform_3(%arg0: i32, %arg1: i32) -> (i32, i32, i32) {
    %c0_i32 = arith.constant 0 : i32
    %c0_i32_0 = arith.constant 0 : i32
    %c0_i32_1 = arith.constant 0 : i32
    return %c0_i32, %arg0, %c0_i32_0 : i32, i32, i32
  }
}

</mosaic_0001>

<llo_original>
// kernel: conv_block_forward.1
$region0: #{conv_block_forward.1}
  #allocation0 [shape = 'u32[]', space=smem, size = 0x4, offset = 0x4, fixed_abs, tag = 'smem constant byte address 0x4 - core index']
  #allocation1 [shape = 'u32[144,128]{1,0:T(1,128)}', space=vmem, size = 0x12000, scoped, tag = 'internal scratch']
  #allocation2 [shape = 'f32[16,18,18]{2,1,0:T(8,128)}', space=vmem, size = 0x30000, scoped, tag = 'scratch operand']
  #allocation3 [shape = 'bf16[144,256]{1,0:T(16,128)(2,1)}', space=vmem, size = 0x12000, scoped, tag = 'scratch operand']
  #allocation4 [shape = 'f32[8,1]{1,0:T(8,128)}', space=vmem, size = 0x1000, scoped, tag = 'scratch operand']
  #allocation5 [shape = 'f32[8,1]{1,0:T(8,128)}', space=vmem, size = 0x1000, scoped, tag = 'scratch operand']
  %s0 = inlined_call_operand.vmem [shape: f32[2,4,16,16], index: 0, kind: input, shape index: {}]
  %s1 = inlined_call_operand.vmem [shape: bf16[8,144], index: 1, kind: input, shape index: {}]
  %s2 = inlined_call_operand.vmem [shape: f32[8,3], index: 2, kind: input, shape index: {}]
  %s3 = inlined_call_operand.vmem [shape: f32[2,8,256], index: 3, kind: output, shape index: {}]
  %s4 = sld [smem:[#allocation0]]
  $region53: #{conv_block_forward.1} parent=0
    _
  %s6 = ssub.s32 1, %s4
  %s7 = scalar_select 0, %s6, %s4
  loop: start=0, step=1, limit=4
  $region2: #{conv_block_forward.1} parent=0 // loop_pre_header
    _
  $region3: #{conv_block_forward.1} parent=0 // loop_header
    %s9 = sphi 0, %s13
    %p10 = scmp.ge.s32.totalorder %s9, 4
    %s16 = sphi 0, %s28
    %s17 = sphi 0, %s24
    %s18 = sphi 0, %s16
    %s19 = sphi 0, %s17
    %s20 = sphi 0, %s18
    %s21 = sphi 0, %s19
    %s31 = sphi 0, %s33
    %s34 = sphi 0, %s31
    %s35 = sphi 0, %s34
    %s51 = sphi 0, %s35
    %s57 = sphi 0, %s59
    %s60 = sphi 0, %s57
    %s61 = sphi 0, %s60
    %s77 = sphi 0, %s61
    %s83 = sphi 0, %s85
    %s86 = sphi 0, %s83
    %s87 = sphi 0, %s86
    %s103 = sphi 0, %s87
    %s109 = sphi 0, %s111
    %s112 = sphi 0, %s109
    %s113 = sphi 0, %s112
    %s129 = sphi 0, %s113
  $region4: #{conv_block_forward.1} parent=0 // loop_header_branch
    %12 = sbr.rel (%p10) target = $region8
  $region5: #{conv_block_forward.1} parent=0 // loop_body
    %s14 = ssub.s32 %s9, 1
    %s15 = ssub.s32 %s9, 2
    %s22 = sadd.s32 1, %s17
    %p23 = scmp.ge.s32.totalorder %s22, 2
    %s24 = scalar_select %p23, 0, %s22
    %s25 = sadd.s32 1, %s16
    %s26 = scalar_select %p23, %s25, %s16
    %p27 = scmp.ge.s32.totalorder %s26, 1
    %s28 = scalar_select %p27, 0, %s26
    %s29 = ssub.s32 %s17, %s24
    %p30 = scmp.eq.s32.totalorder %s29, 0
    %s32 = sadd.s32 %s31, 1
    %s33 = scalar_select %p30, %s31, %s32
    %p36 = pneg %p30
    %p37 = scmp.eq.s32.totalorder %s9, 1
    %p38 = por %p36, %p37
    %p39 = scmp.ne.s32.totalorder %s31, %s34
    %p40 = scmp.eq.s32.totalorder %s9, 0
    %p41 = por %p39, %p40
    %p42 = scmp.ne.s32.totalorder %s31, %s34
    %p43 = scmp.eq.s32.totalorder %s14, 1
    %p44 = por %p42, %p43
    %p45 = scmp.ne.s32.totalorder %s34, %s35
    %p46 = scmp.eq.s32.totalorder %s14, 0
    %p47 = por %p45, %p46
    %p48 = scmp.ne.s32.totalorder %s34, %s35
    %p49 = scmp.eq.s32.totalorder %s15, 1
    %p50 = por %p48, %p49
    %p52 = scmp.ne.s32.totalorder %s35, %s51
    %p53 = scmp.eq.s32.totalorder %s15, 0
    %p54 = por %p52, %p53
    %s55 = ssub.s32 %s16, %s28
    %p56 = scmp.eq.s32.totalorder %s55, 0
    %s58 = sadd.s32 %s57, 1
    %s59 = scalar_select %p56, %s57, %s58
    %p62 = pneg %p56
    %p63 = scmp.eq.s32.totalorder %s9, 1
    %p64 = por %p62, %p63
    %p65 = scmp.ne.s32.totalorder %s57, %s60
    %p66 = scmp.eq.s32.totalorder %s9, 0
    %p67 = por %p65, %p66
    %p68 = scmp.ne.s32.totalorder %s57, %s60
    %p69 = scmp.eq.s32.totalorder %s14, 1
    %p70 = por %p68, %p69
    %p71 = scmp.ne.s32.totalorder %s60, %s61
    %p72 = scmp.eq.s32.totalorder %s14, 0
    %p73 = por %p71, %p72
    %p74 = scmp.ne.s32.totalorder %s60, %s61
    %p75 = scmp.eq.s32.totalorder %s15, 1
    %p76 = por %p74, %p75
    %p78 = scmp.ne.s32.totalorder %s61, %s77
    %p79 = scmp.eq.s32.totalorder %s15, 0
    %p80 = por %p78, %p79
    %s81 = ssub.s32 %s16, %s28
    %p82 = scmp.eq.s32.totalorder %s81, 0
    %s84 = sadd.s32 %s83, 1
    %s85 = scalar_select %p82, %s83, %s84
    %p88 = pneg %p82
    %p89 = scmp.eq.s32.totalorder %s9, 1
    %p90 = por %p88, %p89
    %p91 = scmp.ne.s32.totalorder %s83, %s86
    %p92 = scmp.eq.s32.totalorder %s9, 0
    %p93 = por %p91, %p92
    %p94 = scmp.ne.s32.totalorder %s83, %s86
    %p95 = scmp.eq.s32.totalorder %s14, 1
    %p96 = por %p94, %p95
    %p97 = scmp.ne.s32.totalorder %s86, %s87
    %p98 = scmp.eq.s32.totalorder %s14, 0
    %p99 = por %p97, %p98
    %p100 = scmp.ne.s32.totalorder %s86, %s87
    %p101 = scmp.eq.s32.totalorder %s15, 1
    %p102 = por %p100, %p101
    %p104 = scmp.ne.s32.totalorder %s87, %s103
    %p105 = scmp.eq.s32.totalorder %s15, 0
    %p106 = por %p104, %p105
    %s107 = ssub.s32 %s16, %s28
    %p108 = scmp.eq.s32.totalorder %s107, 0
    %s110 = sadd.s32 %s109, 1
    %s111 = scalar_select %p108, %s109, %s110
    %p114 = pneg %p108
    %p115 = scmp.eq.s32.totalorder %s9, 1
    %p116 = por %p114, %p115
    %p117 = scmp.ne.s32.totalorder %s109, %s112
    %p118 = scmp.eq.s32.totalorder %s9, 0
    %p119 = por %p117, %p118
    %p120 = scmp.ne.s32.totalorder %s109, %s112
    %p121 = scmp.eq.s32.totalorder %s14, 1
    %p122 = por %p120, %p121
    %p123 = scmp.ne.s32.totalorder %s112, %s113
    %p124 = scmp.eq.s32.totalorder %s14, 0
    %p125 = por %p123, %p124
    %p126 = scmp.ne.s32.totalorder %s112, %s113
    %p127 = scmp.eq.s32.totalorder %s15, 1
    %p128 = por %p126, %p127
    %p130 = scmp.ne.s32.totalorder %s113, %s129
    %p131 = scmp.eq.s32.totalorder %s15, 0
    %p132 = por %p130, %p131
    %p133 = scmp.le.s32.totalorder 1, %s9
    %p134 = scmp.lt.s32.totalorder %s9, 3
    %p135 = pnand %p133, %p134
    %p136 = pneg %p135
    // Predicated region
    $region9: #{conv_block_forward.1} parent=5 // pred_check
      _
    $region10: #{conv_block_forward.1} parent=5 // pred_check_branch
      %138 = sbr.rel (%p135) target = $region12
    $region11: #{conv_block_forward.1} parent=5 // pred_region
      %s139 = ssub.s32 %s9, 1
      // Predicated region
      $region13: #{conv_block_forward.1} parent=11 // pred_check
        %p140 = pneg %p73
      $region14: #{conv_block_forward.1} parent=11 // pred_check_branch
        %142 = sbr.rel (%p140) target = $region16
      $region15: #{conv_block_forward.1} parent=11 // pred_region
        %p143 = scmp.lt.s32.totalorder %s18, 0
        %s144 = scalar_select %p143, %s18, 0
        %s145 = smul.addr %s144, 2
        %s146 = smul.addr %s145, 4
        %s147 = scalar_lea.vmem %s1, %s146
      $region16: #{conv_block_forward.1} parent=11 // pred_fallthru
        _
      // Predicated region
      $region17: #{conv_block_forward.1} parent=11 // pred_check
        %p148 = pneg %p99
      $region18: #{conv_block_forward.1} parent=11 // pred_check_branch
        %150 = sbr.rel (%p148) target = $region20
      $region19: #{conv_block_forward.1} parent=11 // pred_region
        %p151 = scmp.lt.s32.totalorder %s18, 0
        %s152 = scalar_select %p151, %s18, 0
        %s153 = smul.addr %s152, 8
        %s154 = scalar_lea.vmem %s2, %s153
      $region20: #{conv_block_forward.1} parent=11 // pred_fallthru
        _
    $region12: #{conv_block_forward.1} parent=5 // pred_fallthru
      _
    %p155 = scmp.lt.s32.totalorder %s9, 2
    // Predicated region
    $region21: #{conv_block_forward.1} parent=5 // pred_check
      %p156 = pneg %p155
    $region22: #{conv_block_forward.1} parent=5 // pred_check_branch
      %158 = sbr.rel (%p156) target = $region24
    $region23: #{conv_block_forward.1} parent=5 // pred_region
      // Predicated region
      $region25: #{conv_block_forward.1} parent=23 // pred_check
        %p159 = pneg %p41
      $region26: #{conv_block_forward.1} parent=23 // pred_check_branch
        %161 = sbr.rel (%p159) target = $region28
      $region27: #{conv_block_forward.1} parent=23 // pred_region
        %p162 = scmp.lt.s32.totalorder %s17, 1
        %s163 = scalar_select %p162, %s17, 1
        %s164 = smul.addr %s163, 8
        %s165 = smul.addr %s164, 8
        %s166 = scalar_lea.vmem %s0, %s165
      $region28: #{conv_block_forward.1} parent=23 // pred_fallthru
        _
    $region24: #{conv_block_forward.1} parent=5 // pred_fallthru
      _
    %p167 = scmp.le.s32.totalorder 1, %s9
    %p168 = scmp.lt.s32.totalorder %s9, 3
    %p169 = pnand %p167, %p168
    %p170 = pneg %p169
    // Predicated region
    $region29: #{conv_block_forward.1} parent=5 // pred_check
      _
    $region30: #{conv_block_forward.1} parent=5 // pred_check_branch
      %172 = sbr.rel (%p169) target = $region32
    $region31: #{conv_block_forward.1} parent=5 // pred_region
      %s173 = ssub.s32 %s9, 1
      %p174 = scmp.lt.s32.totalorder %s19, 1
      %s175 = scalar_select %p174, %s19, 1
      %s176 = smul.addr %s175, 8
      %s177 = smul.addr %s176, 8
      %s178 = scalar_lea.vmem %s0, %s177
      %p179 = pneg %p47
      %p180 = pneg %p44
      %p181 = scmp.lt.s32.totalorder %s18, 0
      %s182 = scalar_select %p181, %s18, 0
      %s183 = smul.addr %s182, 2
      %s184 = smul.addr %s183, 4
      %s185 = scalar_lea.vmem %s1, %s184
      %p186 = pneg %p73
      %p187 = pneg %p70
      %p188 = scmp.lt.s32.totalorder %s18, 0
      %s189 = scalar_select %p188, %s18, 0
      %s190 = smul.addr %s189, 8
      %s191 = scalar_lea.vmem %s2, %s190
      %p192 = pneg %p99
      %p193 = pneg %p96
      %p194 = pneg %p125
      %p195 = pneg %p122
      %p196 = scmp.lt.s32.totalorder %s18, 0
      %s197 = scalar_select %p196, %s18, 0
      %s198 = smul.addr %s197, 2
      %s199 = smul.addr %s198, 8
      %s200 = scalar_lea.vmem %s3, %s199
      %p201 = scmp.lt.s32.totalorder %s19, 1
      %s202 = scalar_select %p201, %s19, 1
      %s203 = smul.addr %s202, 8
      %s204 = smul.addr %s203, 8
      %s205 = scalar_lea.vmem %s0, %s204
      %p206 = scmp.lt.s32.totalorder %s18, 0
      %s207 = scalar_select %p206, %s18, 0
      %s208 = smul.addr %s207, 2
      %s209 = smul.addr %s208, 4
      %s210 = scalar_lea.vmem %s1, %s209
      %p211 = scmp.lt.s32.totalorder %s18, 0
      %s212 = scalar_select %p211, %s18, 0
      %s213 = smul.addr %s212, 8
      %s214 = scalar_lea.vmem %s2, %s213
      %p215 = scmp.lt.s32.totalorder %s18, 0
      %s216 = scalar_select %p215, %s18, 0
      %s217 = smul.addr %s216, 2
      %s218 = smul.addr %s217, 8
      %s219 = scalar_lea.vmem %s3, %s218
      %p221 = scmp.eq.s32.totalorder %s19, 0
      // Predicated region
      $region33: #{conv_block_forward.1} parent=31 // pred_check
        %p222 = pneg %p221
      $region34: #{conv_block_forward.1} parent=31 // pred_check_branch
        %224 = sbr.rel (%p222) target = $region36
      $region35: #{conv_block_forward.1} parent=31 // pred_region
        %vm225 = vcmask 146432
        %226 = vst.msk [vmem:[#allocation2] sm:$0xff] %vm225, 0.0
        %227 = vst.msk [vmem:[#allocation2 + $0x8] sm:$0xff] %vm225, 0.0
        %vm228 = vcmask 140288
        %229 = vst.msk [vmem:[#allocation2 + $0x10] sm:$0x3] %vm228, 0.0
        %230 = vst.msk [vmem:[#allocation2 + $0x18] sm:$0xff] %vm225, 0.0
        %231 = vst.msk [vmem:[#allocation2 + $0x20] sm:$0xff] %vm225, 0.0
        %232 = vst.msk [vmem:[#allocation2 + $0x28] sm:$0x3] %vm228, 0.0
        %233 = vst.msk [vmem:[#allocation2 + $0x30] sm:$0xff] %vm225, 0.0
        %234 = vst.msk [vmem:[#allocation2 + $0x38] sm:$0xff] %vm225, 0.0
        %235 = vst.msk [vmem:[#allocation2 + $0x40] sm:$0x3] %vm228, 0.0
        %236 = vst.msk [vmem:[#allocation2 + $0x48] sm:$0xff] %vm225, 0.0
        %237 = vst.msk [vmem:[#allocation2 + $0x50] sm:$0xff] %vm225, 0.0
        %238 = vst.msk [vmem:[#allocation2 + $0x58] sm:$0x3] %vm228, 0.0
        %239 = vst.msk [vmem:[#allocation2 + $0x60] sm:$0xff] %vm225, 0.0
        %240 = vst.msk [vmem:[#allocation2 + $0x68] sm:$0xff] %vm225, 0.0
        %241 = vst.msk [vmem:[#allocation2 + $0x70] sm:$0x3] %vm228, 0.0
        %242 = vst.msk [vmem:[#allocation2 + $0x78] sm:$0xff] %vm225, 0.0
        %243 = vst.msk [vmem:[#allocation2 + $0x80] sm:$0xff] %vm225, 0.0
        %244 = vst.msk [vmem:[#allocation2 + $0x88] sm:$0x3] %vm228, 0.0
        %245 = vst.msk [vmem:[#allocation2 + $0x90] sm:$0xff] %vm225, 0.0
        %246 = vst.msk [vmem:[#allocation2 + $0x98] sm:$0xff] %vm225, 0.0
        %247 = vst.msk [vmem:[#allocation2 + $0xa0] sm:$0x3] %vm228, 0.0
        %248 = vst.msk [vmem:[#allocation2 + $0xa8] sm:$0xff] %vm225, 0.0
        %249 = vst.msk [vmem:[#allocation2 + $0xb0] sm:$0xff] %vm225, 0.0
        %250 = vst.msk [vmem:[#allocation2 + $0xb8] sm:$0x3] %vm228, 0.0
        %251 = vst.msk [vmem:[#allocation2 + $0xc0] sm:$0xff] %vm225, 0.0
        %252 = vst.msk [vmem:[#allocation2 + $0xc8] sm:$0xff] %vm225, 0.0
        %253 = vst.msk [vmem:[#allocation2 + $0xd0] sm:$0x3] %vm228, 0.0
        %254 = vst.msk [vmem:[#allocation2 + $0xd8] sm:$0xff] %vm225, 0.0
        %255 = vst.msk [vmem:[#allocation2 + $0xe0] sm:$0xff] %vm225, 0.0
        %256 = vst.msk [vmem:[#allocation2 + $0xe8] sm:$0x3] %vm228, 0.0
        %257 = vst.msk [vmem:[#allocation2 + $0xf0] sm:$0xff] %vm225, 0.0
        %258 = vst.msk [vmem:[#allocation2 + $0xf8] sm:$0xff] %vm225, 0.0
        %259 = vst.msk [vmem:[#allocation2 + $0x100] sm:$0x3] %vm228, 0.0
        %260 = vst.msk [vmem:[#allocation2 + $0x108] sm:$0xff] %vm225, 0.0
        %261 = vst.msk [vmem:[#allocation2 + $0x110] sm:$0xff] %vm225, 0.0
        %262 = vst.msk [vmem:[#allocation2 + $0x118] sm:$0x3] %vm228, 0.0
        %263 = vst.msk [vmem:[#allocation2 + $0x120] sm:$0xff] %vm225, 0.0
        %264 = vst.msk [vmem:[#allocation2 + $0x128] sm:$0xff] %vm225, 0.0
        %265 = vst.msk [vmem:[#allocation2 + $0x130] sm:$0x3] %vm228, 0.0
        %266 = vst.msk [vmem:[#allocation2 + $0x138] sm:$0xff] %vm225, 0.0
        %267 = vst.msk [vmem:[#allocation2 + $0x140] sm:$0xff] %vm225, 0.0
        %268 = vst.msk [vmem:[#allocation2 + $0x148] sm:$0x3] %vm228, 0.0
        %269 = vst.msk [vmem:[#allocation2 + $0x150] sm:$0xff] %vm225, 0.0
        %270 = vst.msk [vmem:[#allocation2 + $0x158] sm:$0xff] %vm225, 0.0
        %271 = vst.msk [vmem:[#allocation2 + $0x160] sm:$0x3] %vm228, 0.0
        %272 = vst.msk [vmem:[#allocation2 + $0x168] sm:$0xff] %vm225, 0.0
        %273 = vst.msk [vmem:[#allocation2 + $0x170] sm:$0xff] %vm225, 0.0
        %274 = vst.msk [vmem:[#allocation2 + $0x178] sm:$0x3] %vm228, 0.0
        %vm275 = vcmask 7168
        %276 = vst.msk [vmem:[#allocation4] sm:$0xff] %vm275, 0.0
        %277 = vst.msk [vmem:[#allocation5] sm:$0xff] %vm275, 0.0
      $region36: #{conv_block_forward.1} parent=31 // pred_fallthru
        _
      %v278 = vld [vmem:[%s205] sm:$0xff]
      %v279 = vld [vmem:[%s205 + $0x8] sm:$0xff]
      %v280 = vld [vmem:[%s205 + $0x10] sm:$0xff]
      %v281 = vld [vmem:[%s205 + $0x18] sm:$0xff]
      %v282 = vld [vmem:[%s205 + $0x20] sm:$0xff]
      %v283 = vld [vmem:[%s205 + $0x28] sm:$0xff]
      %v284 = vld [vmem:[%s205 + $0x30] sm:$0xff]
      %v285 = vld [vmem:[%s205 + $0x38] sm:$0xff]
      %294 = vrot.lane.b32.xlu0 %v278, 1
      %v295 = vpop.permute.xlu0 %294
      %296 = vrot.lane.b32.xlu0 %v279, 1
      %v297 = vpop.permute.xlu0 %296
      %298 = vrot.lane.b32.xlu0 %v280, 1
      %v299 = vpop.permute.xlu0 %298
      %300 = vrot.lane.b32.xlu0 %v281, 1
      %v301 = vpop.permute.xlu0 %300
      %302 = vrot.lane.b32.xlu0 %v282, 1
      %v303 = vpop.permute.xlu0 %302
      %304 = vrot.lane.b32.xlu0 %v283, 1
      %v305 = vpop.permute.xlu0 %304
      %306 = vrot.lane.b32.xlu0 %v284, 1
      %v307 = vpop.permute.xlu0 %306
      %308 = vrot.lane.b32.xlu0 %v285, 1
      %v309 = vpop.permute.xlu0 %308
      %vm318 = vcmask 138248
      %319 = vst.msk [vmem:[#allocation2 + $0x1] sm:$0xff] %vm318, %v295
      %320 = vst.msk [vmem:[#allocation2 + $0x9] sm:$0xff] %vm318, %v297
      %321 = vst.msk [vmem:[#allocation2 + $0x19] sm:$0xff] %vm318, %v299
      %322 = vst.msk [vmem:[#allocation2 + $0x21] sm:$0xff] %vm318, %v301
      %323 = vst.msk [vmem:[#allocation2 + $0x31] sm:$0xff] %vm318, %v303
      %324 = vst.msk [vmem:[#allocation2 + $0x39] sm:$0xff] %vm318, %v305
      %325 = vst.msk [vmem:[#allocation2 + $0x49] sm:$0xff] %vm318, %v307
      %326 = vst.msk [vmem:[#allocation2 + $0x51] sm:$0xff] %vm318, %v309
      %v327 = vld [vmem:[#allocation2] sm:$0xff]
      %v328 = vld [vmem:[#allocation2 + $0x8] sm:$0xff]
      %v329 = vld [vmem:[#allocation2 + $0x18] sm:$0xff]
      %v330 = vld [vmem:[#allocation2 + $0x20] sm:$0xff]
      %v331 = vld [vmem:[#allocation2 + $0x30] sm:$0xff]
      %v332 = vld [vmem:[#allocation2 + $0x38] sm:$0xff]
      %v333 = vld [vmem:[#allocation2 + $0x48] sm:$0xff]
      %v334 = vld [vmem:[#allocation2 + $0x50] sm:$0xff]
      %v335 = vld [vmem:[#allocation2 + $0x60] sm:$0xff]
      %v336 = vld [vmem:[#allocation2 + $0x68] sm:$0xff]
      %v337 = vld [vmem:[#allocation2 + $0x78] sm:$0xff]
      %v338 = vld [vmem:[#allocation2 + $0x80] sm:$0xff]
      %v339 = vld [vmem:[#allocation2 + $0x90] sm:$0xff]
      %v340 = vld [vmem:[#allocation2 + $0x98] sm:$0xff]
      %v341 = vld [vmem:[#allocation2 + $0xa8] sm:$0xff]
      %v342 = vld [vmem:[#allocation2 + $0xb0] sm:$0xff]
      %v343 = vld [vmem:[#allocation2 + $0xc0] sm:$0xff]
      %v344 = vld [vmem:[#allocation2 + $0xc8] sm:$0xff]
      %v345 = vld [vmem:[#allocation2 + $0xd8] sm:$0xff]
      %v346 = vld [vmem:[#allocation2 + $0xe0] sm:$0xff]
      %v347 = vld [vmem:[#allocation2 + $0xf0] sm:$0xff]
      %v348 = vld [vmem:[#allocation2 + $0xf8] sm:$0xff]
      %v349 = vld [vmem:[#allocation2 + $0x108] sm:$0xff]
      %v350 = vld [vmem:[#allocation2 + $0x110] sm:$0xff]
      %v351 = vld [vmem:[#allocation2 + $0x120] sm:$0xff]
      %v352 = vld [vmem:[#allocation2 + $0x128] sm:$0xff]
      %v353 = vld [vmem:[#allocation2 + $0x138] sm:$0xff]
      %v354 = vld [vmem:[#allocation2 + $0x140] sm:$0xff]
      %v355 = vld [vmem:[#allocation2 + $0x150] sm:$0xff]
      %v356 = vld [vmem:[#allocation2 + $0x158] sm:$0xff]
      %v357 = vld [vmem:[#allocation2 + $0x168] sm:$0xff]
      %v358 = vld [vmem:[#allocation2 + $0x170] sm:$0xff]
      %v359 = vcombine.low %v327, %v331
      %v360 = vcombine.high %v327, %v331
      %v362 = vunpack.c.l.s4 1983009808
      %v363 = vunpack.c.0.s8 %v362
      %v364 = vlaneseq
      %v365 = vshrl.u32 %v364, 7
      %v366 = vsub.s32 %v363, %v365
      %v367 = vrot.slane %v359, %v366
      %v369 = vunpack.c.l.s4 1983009808
      %v370 = vunpack.c.0.s8 %v369
      %v371 = vlaneseq
      %v372 = vshrl.u32 %v371, 7
      %v373 = vsub.s32 %v370, %v372
      %v374 = vrot.slane %v360, %v373
      %v375 = vcombine.low %v329, %v333
      %v376 = vcombine.high %v329, %v333
      %v378 = vunpack.c.l.s4 1983009808
      %v379 = vunpack.c.0.s8 %v378
      %v380 = vlaneseq
      %v381 = vshrl.u32 %v380, 7
      %v382 = vsub.s32 %v379, %v381
      %v383 = vrot.slane %v375, %v382
      %v385 = vunpack.c.l.s4 1983009808
      %v386 = vunpack.c.0.s8 %v385
      %v387 = vlaneseq
      %v388 = vshrl.u32 %v387, 7
      %v389 = vsub.s32 %v386, %v388
      %v390 = vrot.slane %v376, %v389
      %v391 = vcombine.low %v335, %v339
      %v392 = vcombine.high %v335, %v339
      %v394 = vunpack.c.l.s4 1983009808
      %v395 = vunpack.c.0.s8 %v394
      %v396 = vlaneseq
      %v397 = vshrl.u32 %v396, 7
      %v398 = vsub.s32 %v395, %v397
      %v399 = vrot.slane %v391, %v398
      %v401 = vunpack.c.l.s4 1983009808
      %v402 = vunpack.c.0.s8 %v401
      %v403 = vlaneseq
      %v404 = vshrl.u32 %v403, 7
      %v405 = vsub.s32 %v402, %v404
      %v406 = vrot.slane %v392, %v405
      %v407 = vcombine.low %v337, %v341
      %v408 = vcombine.high %v337, %v341
      %v410 = vunpack.c.l.s4 1983009808
      %v411 = vunpack.c.0.s8 %v410
      %v412 = vlaneseq
      %v413 = vshrl.u32 %v412, 7
      %v414 = vsub.s32 %v411, %v413
      %v415 = vrot.slane %v407, %v414
      %v417 = vunpack.c.l.s4 1983009808
      %v418 = vunpack.c.0.s8 %v417
      %v419 = vlaneseq
      %v420 = vshrl.u32 %v419, 7
      %v421 = vsub.s32 %v418, %v420
      %v422 = vrot.slane %v408, %v421
      %v423 = vcombine.low %v367, %v383
      %v424 = vcombine.high %v367, %v383
      %v426 = vunpack.c.l.s4 1934713408
      %v427 = vunpack.c.0.s8 %v426
      %v428 = vlaneseq
      %v429 = vshrl.u32 %v428, 7
      %v430 = vsub.s32 %v427, %v429
      %v431 = vrot.slane %v423, %v430
      %v433 = vunpack.c.l.s4 1934713408
      %v434 = vunpack.c.0.s8 %v433
      %v435 = vlaneseq
      %v436 = vshrl.u32 %v435, 7
      %v437 = vsub.s32 %v434, %v436
      %v438 = vrot.slane %v424, %v437
      %v439 = vcombine.low %v374, %v390
      %v440 = vcombine.high %v374, %v390
      %v442 = vunpack.c.l.s4 1934713408
      %v443 = vunpack.c.0.s8 %v442
      %v444 = vlaneseq
      %v445 = vshrl.u32 %v444, 7
      %v446 = vsub.s32 %v443, %v445
      %v447 = vrot.slane %v439, %v446
      %v449 = vunpack.c.l.s4 1934713408
      %v450 = vunpack.c.0.s8 %v449
      %v451 = vlaneseq
      %v452 = vshrl.u32 %v451, 7
      %v453 = vsub.s32 %v450, %v452
      %v454 = vrot.slane %v440, %v453
      %v455 = vcombine.low %v399, %v415
      %v456 = vcombine.high %v399, %v415
      %v458 = vunpack.c.l.s4 1934713408
      %v459 = vunpack.c.0.s8 %v458
      %v460 = vlaneseq
      %v461 = vshrl.u32 %v460, 7
      %v462 = vsub.s32 %v459, %v461
      %v463 = vrot.slane %v455, %v462
      %v465 = vunpack.c.l.s4 1934713408
      %v466 = vunpack.c.0.s8 %v465
      %v467 = vlaneseq
      %v468 = vshrl.u32 %v467, 7
      %v469 = vsub.s32 %v466, %v468
      %v470 = vrot.slane %v456, %v469
      %v471 = vcombine.low %v406, %v422
      %v472 = vcombine.high %v406, %v422
      %v474 = vunpack.c.l.s4 1934713408
      %v475 = vunpack.c.0.s8 %v474
      %v476 = vlaneseq
      %v477 = vshrl.u32 %v476, 7
      %v478 = vsub.s32 %v475, %v477
      %v479 = vrot.slane %v471, %v478
      %v481 = vunpack.c.l.s4 1934713408
      %v482 = vunpack.c.0.s8 %v481
      %v483 = vlaneseq
      %v484 = vshrl.u32 %v483, 7
      %v485 = vsub.s32 %v482, %v484
      %v486 = vrot.slane %v472, %v485
      %v487 = vcombine.low %v431, %v463
      %v488 = vcombine.high %v431, %v463
      %v489 = vcombine.low %v438, %v470
      %v490 = vcombine.high %v438, %v470
      %v491 = vcombine.low %v447, %v479
      %v492 = vcombine.high %v447, %v479
      %v493 = vcombine.low %v454, %v486
      %v494 = vcombine.high %v454, %v486
      %v495 = vcombine.low %v343, %v347
      %v496 = vcombine.high %v343, %v347
      %v498 = vunpack.c.l.s4 1983009808
      %v499 = vunpack.c.0.s8 %v498
      %v500 = vlaneseq
      %v501 = vshrl.u32 %v500, 7
      %v502 = vsub.s32 %v499, %v501
      %v503 = vrot.slane %v495, %v502
      %v505 = vunpack.c.l.s4 1983009808
      %v506 = vunpack.c.0.s8 %v505
      %v507 = vlaneseq
      %v508 = vshrl.u32 %v507, 7
      %v509 = vsub.s32 %v506, %v508
      %v510 = vrot.slane %v496, %v509
      %v511 = vcombine.low %v345, %v349
      %v512 = vcombine.high %v345, %v349
      %v514 = vunpack.c.l.s4 1983009808
      %v515 = vunpack.c.0.s8 %v514
      %v516 = vlaneseq
      %v517 = vshrl.u32 %v516, 7
      %v518 = vsub.s32 %v515, %v517
      %v519 = vrot.slane %v511, %v518
      %v521 = vunpack.c.l.s4 1983009808
      %v522 = vunpack.c.0.s8 %v521
      %v523 = vlaneseq
      %v524 = vshrl.u32 %v523, 7
      %v525 = vsub.s32 %v522, %v524
      %v526 = vrot.slane %v512, %v525
      %v527 = vcombine.low %v351, %v355
      %v528 = vcombine.high %v351, %v355
      %v530 = vunpack.c.l.s4 1983009808
      %v531 = vunpack.c.0.s8 %v530
      %v532 = vlaneseq
      %v533 = vshrl.u32 %v532, 7
      %v534 = vsub.s32 %v531, %v533
      %v535 = vrot.slane %v527, %v534
      %v537 = vunpack.c.l.s4 1983009808
      %v538 = vunpack.c.0.s8 %v537
      %v539 = vlaneseq
      %v540 = vshrl.u32 %v539, 7
      %v541 = vsub.s32 %v538, %v540
      %v542 = vrot.slane %v528, %v541
      %v543 = vcombine.low %v353, %v357
      %v544 = vcombine.high %v353, %v357
      %v546 = vunpack.c.l.s4 1983009808
      %v547 = vunpack.c.0.s8 %v546
      %v548 = vlaneseq
      %v549 = vshrl.u32 %v548, 7
      %v550 = vsub.s32 %v547, %v549
      %v551 = vrot.slane %v543, %v550
      %v553 = vunpack.c.l.s4 1983009808
      %v554 = vunpack.c.0.s8 %v553
      %v555 = vlaneseq
      %v556 = vshrl.u32 %v555, 7
      %v557 = vsub.s32 %v554, %v556
      %v558 = vrot.slane %v544, %v557
      %v559 = vcombine.low %v503, %v519
      %v560 = vcombine.high %v503, %v519
      %v562 = vunpack.c.l.s4 1934713408
      %v563 = vunpack.c.0.s8 %v562
      %v564 = vlaneseq
      %v565 = vshrl.u32 %v564, 7
      %v566 = vsub.s32 %v563, %v565
      %v567 = vrot.slane %v559, %v566
      %v569 = vunpack.c.l.s4 1934713408
      %v570 = vunpack.c.0.s8 %v569
      %v571 = vlaneseq
      %v572 = vshrl.u32 %v571, 7
      %v573 = vsub.s32 %v570, %v572
      %v574 = vrot.slane %v560, %v573
      %v575 = vcombine.low %v510, %v526
      %v576 = vcombine.high %v510, %v526
      %v578 = vunpack.c.l.s4 1934713408
      %v579 = vunpack.c.0.s8 %v578
      %v580 = vlaneseq
      %v581 = vshrl.u32 %v580, 7
      %v582 = vsub.s32 %v579, %v581
      %v583 = vrot.slane %v575, %v582
      %v585 = vunpack.c.l.s4 1934713408
      %v586 = vunpack.c.0.s8 %v585
      %v587 = vlaneseq
      %v588 = vshrl.u32 %v587, 7
      %v589 = vsub.s32 %v586, %v588
      %v590 = vrot.slane %v576, %v589
      %v591 = vcombine.low %v535, %v551
      %v592 = vcombine.high %v535, %v551
      %v594 = vunpack.c.l.s4 1934713408
      %v595 = vunpack.c.0.s8 %v594
      %v596 = vlaneseq
      %v597 = vshrl.u32 %v596, 7
      %v598 = vsub.s32 %v595, %v597
      %v599 = vrot.slane %v591, %v598
      %v601 = vunpack.c.l.s4 1934713408
      %v602 = vunpack.c.0.s8 %v601
      %v603 = vlaneseq
      %v604 = vshrl.u32 %v603, 7
      %v605 = vsub.s32 %v602, %v604
      %v606 = vrot.slane %v592, %v605
      %v607 = vcombine.low %v542, %v558
      %v608 = vcombine.high %v542, %v558
      %v610 = vunpack.c.l.s4 1934713408
      %v611 = vunpack.c.0.s8 %v610
      %v612 = vlaneseq
      %v613 = vshrl.u32 %v612, 7
      %v614 = vsub.s32 %v611, %v613
      %v615 = vrot.slane %v607, %v614
      %v617 = vunpack.c.l.s4 1934713408
      %v618 = vunpack.c.0.s8 %v617
      %v619 = vlaneseq
      %v620 = vshrl.u32 %v619, 7
      %v621 = vsub.s32 %v618, %v620
      %v622 = vrot.slane %v608, %v621
      %v623 = vcombine.low %v567, %v599
      %v624 = vcombine.high %v567, %v599
      %v625 = vcombine.low %v574, %v606
      %v626 = vcombine.high %v574, %v606
      %v627 = vcombine.low %v583, %v615
      %v628 = vcombine.high %v583, %v615
      %v629 = vcombine.low %v590, %v622
      %v630 = vcombine.high %v590, %v622
      %v631 = vcombine.low %v328, %v332
      %v632 = vcombine.high %v328, %v332
      %v634 = vunpack.c.l.s4 1983009808
      %v635 = vunpack.c.0.s8 %v634
      %v636 = vlaneseq
      %v637 = vshrl.u32 %v636, 7
      %v638 = vsub.s32 %v635, %v637
      %v639 = vrot.slane %v631, %v638
      %v641 = vunpack.c.l.s4 1983009808
      %v642 = vunpack.c.0.s8 %v641
      %v643 = vlaneseq
      %v644 = vshrl.u32 %v643, 7
      %v645 = vsub.s32 %v642, %v644
      %v646 = vrot.slane %v632, %v645
      %v647 = vcombine.low %v330, %v334
      %v648 = vcombine.high %v330, %v334
      %v650 = vunpack.c.l.s4 1983009808
      %v651 = vunpack.c.0.s8 %v650
      %v652 = vlaneseq
      %v653 = vshrl.u32 %v652, 7
      %v654 = vsub.s32 %v651, %v653
      %v655 = vrot.slane %v647, %v654
      %v657 = vunpack.c.l.s4 1983009808
      %v658 = vunpack.c.0.s8 %v657
      %v659 = vlaneseq
      %v660 = vshrl.u32 %v659, 7
      %v661 = vsub.s32 %v658, %v660
      %v662 = vrot.slane %v648, %v661
      %v663 = vcombine.low %v336, %v340
      %v664 = vcombine.high %v336, %v340
      %v666 = vunpack.c.l.s4 1983009808
      %v667 = vunpack.c.0.s8 %v666
      %v668 = vlaneseq
      %v669 = vshrl.u32 %v668, 7
      %v670 = vsub.s32 %v667, %v669
      %v671 = vrot.slane %v663, %v670
      %v673 = vunpack.c.l.s4 1983009808
      %v674 = vunpack.c.0.s8 %v673
      %v675 = vlaneseq
      %v676 = vshrl.u32 %v675, 7
      %v677 = vsub.s32 %v674, %v676
      %v678 = vrot.slane %v664, %v677
      %v679 = vcombine.low %v338, %v342
      %v680 = vcombine.high %v338, %v342
      %v682 = vunpack.c.l.s4 1983009808
      %v683 = vunpack.c.0.s8 %v682
      %v684 = vlaneseq
      %v685 = vshrl.u32 %v684, 7
      %v686 = vsub.s32 %v683, %v685
      %v687 = vrot.slane %v679, %v686
      %v689 = vunpack.c.l.s4 1983009808
      %v690 = vunpack.c.0.s8 %v689
      %v691 = vlaneseq
      %v692 = vshrl.u32 %v691, 7
      %v693 = vsub.s32 %v690, %v692
      %v694 = vrot.slane %v680, %v693
      %v695 = vcombine.low %v639, %v655
      %v696 = vcombine.high %v639, %v655
      %v698 = vunpack.c.l.s4 1934713408
      %v699 = vunpack.c.0.s8 %v698
      %v700 = vlaneseq
      %v701 = vshrl.u32 %v700, 7
      %v702 = vsub.s32 %v699, %v701
      %v703 = vrot.slane %v695, %v702
      %v705 = vunpack.c.l.s4 1934713408
      %v706 = vunpack.c.0.s8 %v705
      %v707 = vlaneseq
      %v708 = vshrl.u32 %v707, 7
      %v709 = vsub.s32 %v706, %v708
      %v710 = vrot.slane %v696, %v709
      %v711 = vcombine.low %v646, %v662
      %v712 = vcombine.high %v646, %v662
      %v714 = vunpack.c.l.s4 1934713408
      %v715 = vunpack.c.0.s8 %v714
      %v716 = vlaneseq
      %v717 = vshrl.u32 %v716, 7
      %v718 = vsub.s32 %v715, %v717
      %v719 = vrot.slane %v711, %v718
      %v721 = vunpack.c.l.s4 1934713408
      %v722 = vunpack.c.0.s8 %v721
      %v723 = vlaneseq
      %v724 = vshrl.u32 %v723, 7
      %v725 = vsub.s32 %v722, %v724
      %v726 = vrot.slane %v712, %v725
      %v727 = vcombine.low %v671, %v687
      %v728 = vcombine.high %v671, %v687
      %v730 = vunpack.c.l.s4 1934713408
      %v731 = vunpack.c.0.s8 %v730
      %v732 = vlaneseq
      %v733 = vshrl.u32 %v732, 7
      %v734 = vsub.s32 %v731, %v733
      %v735 = vrot.slane %v727, %v734
      %v737 = vunpack.c.l.s4 1934713408
      %v738 = vunpack.c.0.s8 %v737
      %v739 = vlaneseq
      %v740 = vshrl.u32 %v739, 7
      %v741 = vsub.s32 %v738, %v740
      %v742 = vrot.slane %v728, %v741
      %v743 = vcombine.low %v678, %v694
      %v744 = vcombine.high %v678, %v694
      %v746 = vunpack.c.l.s4 1934713408
      %v747 = vunpack.c.0.s8 %v746
      %v748 = vlaneseq
      %v749 = vshrl.u32 %v748, 7
      %v750 = vsub.s32 %v747, %v749
      %v751 = vrot.slane %v743, %v750
      %v753 = vunpack.c.l.s4 1934713408
      %v754 = vunpack.c.0.s8 %v753
      %v755 = vlaneseq
      %v756 = vshrl.u32 %v755, 7
      %v757 = vsub.s32 %v754, %v756
      %v758 = vrot.slane %v744, %v757
      %v759 = vcombine.low %v703, %v735
      %v760 = vcombine.high %v703, %v735
      %v761 = vcombine.low %v710, %v742
      %v762 = vcombine.high %v710, %v742
      %v763 = vcombine.low %v719, %v751
      %v764 = vcombine.high %v719, %v751
      %v765 = vcombine.low %v726, %v758
      %v766 = vcombine.high %v726, %v758
      %v767 = vcombine.low %v344, %v348
      %v768 = vcombine.high %v344, %v348
      %v770 = vunpack.c.l.s4 1983009808
      %v771 = vunpack.c.0.s8 %v770
      %v772 = vlaneseq
      %v773 = vshrl.u32 %v772, 7
      %v774 = vsub.s32 %v771, %v773
      %v775 = vrot.slane %v767, %v774
      %v777 = vunpack.c.l.s4 1983009808
      %v778 = vunpack.c.0.s8 %v777
      %v779 = vlaneseq
      %v780 = vshrl.u32 %v779, 7
      %v781 = vsub.s32 %v778, %v780
      %v782 = vrot.slane %v768, %v781
      %v783 = vcombine.low %v346, %v350
      %v784 = vcombine.high %v346, %v350
      %v786 = vunpack.c.l.s4 1983009808
      %v787 = vunpack.c.0.s8 %v786
      %v788 = vlaneseq
      %v789 = vshrl.u32 %v788, 7
      %v790 = vsub.s32 %v787, %v789
      %v791 = vrot.slane %v783, %v790
      %v793 = vunpack.c.l.s4 1983009808
      %v794 = vunpack.c.0.s8 %v793
      %v795 = vlaneseq
      %v796 = vshrl.u32 %v795, 7
      %v797 = vsub.s32 %v794, %v796
      %v798 = vrot.slane %v784, %v797
      %v799 = vcombine.low %v352, %v356
      %v800 = vcombine.high %v352, %v356
      %v802 = vunpack.c.l.s4 1983009808
      %v803 = vunpack.c.0.s8 %v802
      %v804 = vlaneseq
      %v805 = vshrl.u32 %v804, 7
      %v806 = vsub.s32 %v803, %v805
      %v807 = vrot.slane %v799, %v806
      %v809 = vunpack.c.l.s4 1983009808
      %v810 = vunpack.c.0.s8 %v809
      %v811 = vlaneseq
      %v812 = vshrl.u32 %v811, 7
      %v813 = vsub.s32 %v810, %v812
      %v814 = vrot.slane %v800, %v813
      %v815 = vcombine.low %v354, %v358
      %v816 = vcombine.high %v354, %v358
      %v818 = vunpack.c.l.s4 1983009808
      %v819 = vunpack.c.0.s8 %v818
      %v820 = vlaneseq
      %v821 = vshrl.u32 %v820, 7
      %v822 = vsub.s32 %v819, %v821
      %v823 = vrot.slane %v815, %v822
      %v825 = vunpack.c.l.s4 1983009808
      %v826 = vunpack.c.0.s8 %v825
      %v827 = vlaneseq
      %v828 = vshrl.u32 %v827, 7
      %v829 = vsub.s32 %v826, %v828
      %v830 = vrot.slane %v816, %v829
      %v831 = vcombine.low %v775, %v791
      %v832 = vcombine.high %v775, %v791
      %v834 = vunpack.c.l.s4 1934713408
      %v835 = vunpack.c.0.s8 %v834
      %v836 = vlaneseq
      %v837 = vshrl.u32 %v836, 7
      %v838 = vsub.s32 %v835, %v837
      %v839 = vrot.slane %v831, %v838
      %v841 = vunpack.c.l.s4 1934713408
      %v842 = vunpack.c.0.s8 %v841
      %v843 = vlaneseq
      %v844 = vshrl.u32 %v843, 7
      %v845 = vsub.s32 %v842, %v844
      %v846 = vrot.slane %v832, %v845
      %v847 = vcombine.low %v782, %v798
      %v848 = vcombine.high %v782, %v798
      %v850 = vunpack.c.l.s4 1934713408
      %v851 = vunpack.c.0.s8 %v850
      %v852 = vlaneseq
      %v853 = vshrl.u32 %v852, 7
      %v854 = vsub.s32 %v851, %v853
      %v855 = vrot.slane %v847, %v854
      %v857 = vunpack.c.l.s4 1934713408
      %v858 = vunpack.c.0.s8 %v857
      %v859 = vlaneseq
      %v860 = vshrl.u32 %v859, 7
      %v861 = vsub.s32 %v858, %v860
      %v862 = vrot.slane %v848, %v861
      %v863 = vcombine.low %v807, %v823
      %v864 = vcombine.high %v807, %v823
      %v866 = vunpack.c.l.s4 1934713408
      %v867 = vunpack.c.0.s8 %v866
      %v868 = vlaneseq
      %v869 = vshrl.u32 %v868, 7
      %v870 = vsub.s32 %v867, %v869
      %v871 = vrot.slane %v863, %v870
      %v873 = vunpack.c.l.s4 1934713408
      %v874 = vunpack.c.0.s8 %v873
      %v875 = vlaneseq
      %v876 = vshrl.u32 %v875, 7
      %v877 = vsub.s32 %v874, %v876
      %v878 = vrot.slane %v864, %v877
      %v879 = vcombine.low %v814, %v830
      %v880 = vcombine.high %v814, %v830
      %v882 = vunpack.c.l.s4 1934713408
      %v883 = vunpack.c.0.s8 %v882
      %v884 = vlaneseq
      %v885 = vshrl.u32 %v884, 7
      %v886 = vsub.s32 %v883, %v885
      %v887 = vrot.slane %v879, %v886
      %v889 = vunpack.c.l.s4 1934713408
      %v890 = vunpack.c.0.s8 %v889
      %v891 = vlaneseq
      %v892 = vshrl.u32 %v891, 7
      %v893 = vsub.s32 %v890, %v892
      %v894 = vrot.slane %v880, %v893
      %v895 = vcombine.low %v839, %v871
      %v896 = vcombine.high %v839, %v871
      %v897 = vcombine.low %v846, %v878
      %v898 = vcombine.high %v846, %v878
      %v899 = vcombine.low %v855, %v887
      %v900 = vcombine.high %v855, %v887
      %v901 = vcombine.low %v862, %v894
      %v902 = vcombine.high %v862, %v894
      %905 = vrot.lane.b32.xlu0 %v488, 16
      %v906 = vpop.permute.xlu0 %905
      %907 = vrot.lane.b32.xlu0 %v624, 16
      %v908 = vpop.permute.xlu0 %907
      %913 = vrot.lane.b32.xlu0 %v489, 32
      %v914 = vpop.permute.xlu0 %913
      %915 = vrot.lane.b32.xlu0 %v625, 32
      %v916 = vpop.permute.xlu0 %915
      %921 = vrot.lane.b32.xlu0 %v490, 48
      %v922 = vpop.permute.xlu0 %921
      %923 = vrot.lane.b32.xlu0 %v626, 48
      %v924 = vpop.permute.xlu0 %923
      %929 = vrot.lane.b32.xlu0 %v491, 64
      %v930 = vpop.permute.xlu0 %929
      %931 = vrot.lane.b32.xlu0 %v627, 64
      %v932 = vpop.permute.xlu0 %931
      %937 = vrot.lane.b32.xlu0 %v492, 80
      %v938 = vpop.permute.xlu0 %937
      %939 = vrot.lane.b32.xlu0 %v628, 80
      %v940 = vpop.permute.xlu0 %939
      %945 = vrot.lane.b32.xlu0 %v493, 96
      %v946 = vpop.permute.xlu0 %945
      %947 = vrot.lane.b32.xlu0 %v629, 96
      %v948 = vpop.permute.xlu0 %947
      %953 = vrot.lane.b32.xlu0 %v494, 112
      %v954 = vpop.permute.xlu0 %953
      %955 = vrot.lane.b32.xlu0 %v630, 112
      %v956 = vpop.permute.xlu0 %955
      %961 = vrot.lane.b32.xlu0 %v760, 16
      %v962 = vpop.permute.xlu0 %961
      %963 = vrot.lane.b32.xlu0 %v896, 16
      %v964 = vpop.permute.xlu0 %963
      %969 = vrot.lane.b32.xlu0 %v761, 32
      %v970 = vpop.permute.xlu0 %969
      %971 = vrot.lane.b32.xlu0 %v897, 32
      %v972 = vpop.permute.xlu0 %971
      %977 = vrot.lane.b32.xlu0 %v762, 48
      %v978 = vpop.permute.xlu0 %977
      %979 = vrot.lane.b32.xlu0 %v898, 48
      %v980 = vpop.permute.xlu0 %979
      %985 = vrot.lane.b32.xlu0 %v763, 64
      %v986 = vpop.permute.xlu0 %985
      %987 = vrot.lane.b32.xlu0 %v899, 64
      %v988 = vpop.permute.xlu0 %987
      %993 = vrot.lane.b32.xlu0 %v764, 80
      %v994 = vpop.permute.xlu0 %993
      %995 = vrot.lane.b32.xlu0 %v900, 80
      %v996 = vpop.permute.xlu0 %995
      %1001 = vrot.lane.b32.xlu0 %v765, 96
      %v1002 = vpop.permute.xlu0 %1001
      %1003 = vrot.lane.b32.xlu0 %v901, 96
      %v1004 = vpop.permute.xlu0 %1003
      %1009 = vrot.lane.b32.xlu0 %v766, 112
      %v1010 = vpop.permute.xlu0 %1009
      %1011 = vrot.lane.b32.xlu0 %v902, 112
      %v1012 = vpop.permute.xlu0 %1011
      %vm1015 = vcmask 130048
      %v1016 = vsel %vm1015, %v487, %v906
      %v1017 = vsel %vm1015, %v623, %v908
      %vm1018 = vcmask 261120
      %v1019 = vsel %vm1018, %v1016, %v914
      %v1020 = vsel %vm1018, %v1017, %v916
      %vm1021 = vcmask 392192
      %v1022 = vsel %vm1021, %v1019, %v922
      %v1023 = vsel %vm1021, %v1020, %v924
      %vm1024 = vcmask 523264
      %v1025 = vsel %vm1024, %v1022, %v930
      %v1026 = vsel %vm1024, %v1023, %v932
      %vm1027 = vcmask 654336
      %v1028 = vsel %vm1027, %v1025, %v938
      %v1029 = vsel %vm1027, %v1026, %v940
      %vm1030 = vcmask 785408
      %v1031 = vsel %vm1030, %v1028, %v946
      %v1032 = vsel %vm1030, %v1029, %v948
      %vm1033 = vcmask 916480
      %v1034 = vsel %vm1033, %v1031, %v954
      %v1035 = vsel %vm1033, %v1032, %v956
      %v1036 = vsel %vm1015, %v759, %v962
      %v1037 = vsel %vm1015, %v895, %v964
      %v1038 = vsel %vm1018, %v1036, %v970
      %v1039 = vsel %vm1018, %v1037, %v972
      %v1040 = vsel %vm1021, %v1038, %v978
      %v1041 = vsel %vm1021, %v1039, %v980
      %v1042 = vsel %vm1024, %v1040, %v986
      %v1043 = vsel %vm1024, %v1041, %v988
      %v1044 = vsel %vm1027, %v1042, %v994
      %v1045 = vsel %vm1027, %v1043, %v996
      %v1046 = vsel %vm1030, %v1044, %v1002
      %v1047 = vsel %vm1030, %v1045, %v1004
      %v1048 = vsel %vm1033, %v1046, %v1010
      %v1049 = vsel %vm1033, %v1047, %v1012
      %v1050 = vpack.c.bf16 %v1035, %v1034
      %v1051 = vpack.c.bf16 %v1049, %v1048
      %1052 = vst [vmem:[#allocation3] sm:$0xff] %v1050
      %1053 = vst [vmem:[#allocation3 + $0x8] sm:$0xff] %v1051
      %v1054 = vld [vmem:[#allocation2] sm:$0xff]
      %v1055 = vld [vmem:[#allocation2 + $0x8] sm:$0xff]
      %v1056 = vld [vmem:[#allocation2 + $0x18] sm:$0xff]
      %v1057 = vld [vmem:[#allocation2 + $0x20] sm:$0xff]
      %v1058 = vld [vmem:[#allocation2 + $0x30] sm:$0xff]
      %v1059 = vld [vmem:[#allocation2 + $0x38] sm:$0xff]
      %v1060 = vld [vmem:[#allocation2 + $0x48] sm:$0xff]
      %v1061 = vld [vmem:[#allocation2 + $0x50] sm:$0xff]
      %v1062 = vld [vmem:[#allocation2 + $0x60] sm:$0xff]
      %v1063 = vld [vmem:[#allocation2 + $0x68] sm:$0xff]
      %v1064 = vld [vmem:[#allocation2 + $0x78] sm:$0xff]
      %v1065 = vld [vmem:[#allocation2 + $0x80] sm:$0xff]
      %v1066 = vld [vmem:[#allocation2 + $0x90] sm:$0xff]
      %v1067 = vld [vmem:[#allocation2 + $0x98] sm:$0xff]
      %v1068 = vld [vmem:[#allocation2 + $0xa8] sm:$0xff]
      %v1069 = vld [vmem:[#allocation2 + $0xb0] sm:$0xff]
      %v1070 = vld [vmem:[#allocation2 + $0xc0] sm:$0xff]
      %v1071 = vld [vmem:[#allocation2 + $0xc8] sm:$0xff]
      %v1072 = vld [vmem:[#allocation2 + $0xd8] sm:$0xff]
      %v1073 = vld [vmem:[#allocation2 + $0xe0] sm:$0xff]
      %v1074 = vld [vmem:[#allocation2 + $0xf0] sm:$0xff]
      %v1075 = vld [vmem:[#allocation2 + $0xf8] sm:$0xff]
      %v1076 = vld [vmem:[#allocation2 + $0x108] sm:$0xff]
      %v1077 = vld [vmem:[#allocation2 + $0x110] sm:$0xff]
      %v1078 = vld [vmem:[#allocation2 + $0x120] sm:$0xff]
      %v1079 = vld [vmem:[#allocation2 + $0x128] sm:$0xff]
      %v1080 = vld [vmem:[#allocation2 + $0x138] sm:$0xff]
      %v1081 = vld [vmem:[#allocation2 + $0x140] sm:$0xff]
      %v1082 = vld [vmem:[#allocation2 + $0x150] sm:$0xff]
      %v1083 = vld [vmem:[#allocation2 + $0x158] sm:$0xff]
      %v1084 = vld [vmem:[#allocation2 + $0x168] sm:$0xff]
      %v1085 = vld [vmem:[#allocation2 + $0x170] sm:$0xff]
      %1118 = vrot.lane.b32.xlu0 %v1054, 127
      %v1119 = vpop.permute.xlu0 %1118
      %1120 = vrot.lane.b32.xlu0 %v1055, 127
      %v1121 = vpop.permute.xlu0 %1120
      %1122 = vrot.lane.b32.xlu0 %v1056, 127
      %v1123 = vpop.permute.xlu0 %1122
      %1124 = vrot.lane.b32.xlu0 %v1057, 127
      %v1125 = vpop.permute.xlu0 %1124
      %1126 = vrot.lane.b32.xlu0 %v1058, 127
      %v1127 = vpop.permute.xlu0 %1126
      %1128 = vrot.lane.b32.xlu0 %v1059, 127
      %v1129 = vpop.permute.xlu0 %1128
      %1130 = vrot.lane.b32.xlu0 %v1060, 127
      %v1131 = vpop.permute.xlu0 %1130
      %1132 = vrot.lane.b32.xlu0 %v1061, 127
      %v1133 = vpop.permute.xlu0 %1132
      %1134 = vrot.lane.b32.xlu0 %v1062, 127
      %v1135 = vpop.permute.xlu0 %1134
      %1136 = vrot.lane.b32.xlu0 %v1063, 127
      %v1137 = vpop.permute.xlu0 %1136
      %1138 = vrot.lane.b32.xlu0 %v1064, 127
      %v1139 = vpop.permute.xlu0 %1138
      %1140 = vrot.lane.b32.xlu0 %v1065, 127
      %v1141 = vpop.permute.xlu0 %1140
      %1142 = vrot.lane.b32.xlu0 %v1066, 127
      %v1143 = vpop.permute.xlu0 %1142
      %1144 = vrot.lane.b32.xlu0 %v1067, 127
      %v1145 = vpop.permute.xlu0 %1144
      %1146 = vrot.lane.b32.xlu0 %v1068, 127
      %v1147 = vpop.permute.xlu0 %1146
      %1148 = vrot.lane.b32.xlu0 %v1069, 127
      %v1149 = vpop.permute.xlu0 %1148
      %1150 = vrot.lane.b32.xlu0 %v1070, 127
      %v1151 = vpop.permute.xlu0 %1150
      %1152 = vrot.lane.b32.xlu0 %v1071, 127
      %v1153 = vpop.permute.xlu0 %1152
      %1154 = vrot.lane.b32.xlu0 %v1072, 127
      %v1155 = vpop.permute.xlu0 %1154
      %1156 = vrot.lane.b32.xlu0 %v1073, 127
      %v1157 = vpop.permute.xlu0 %1156
      %1158 = vrot.lane.b32.xlu0 %v1074, 127
      %v1159 = vpop.permute.xlu0 %1158
      %1160 = vrot.lane.b32.xlu0 %v1075, 127
      %v1161 = vpop.permute.xlu0 %1160
      %1162 = vrot.lane.b32.xlu0 %v1076, 127
      %v1163 = vpop.permute.xlu0 %1162
      %1164 = vrot.lane.b32.xlu0 %v1077, 127
      %v1165 = vpop.permute.xlu0 %1164
      %1166 = vrot.lane.b32.xlu0 %v1078, 127
      %v1167 = vpop.permute.xlu0 %1166
      %1168 = vrot.lane.b32.xlu0 %v1079, 127
      %v1169 = vpop.permute.xlu0 %1168
      %1170 = vrot.lane.b32.xlu0 %v1080, 127
      %v1171 = vpop.permute.xlu0 %1170
      %1172 = vrot.lane.b32.xlu0 %v1081, 127
      %v1173 = vpop.permute.xlu0 %1172
      %1174 = vrot.lane.b32.xlu0 %v1082, 127
      %v1175 = vpop.permute.xlu0 %1174
      %1176 = vrot.lane.b32.xlu0 %v1083, 127
      %v1177 = vpop.permute.xlu0 %1176
      %1178 = vrot.lane.b32.xlu0 %v1084, 127
      %v1179 = vpop.permute.xlu0 %1178
      %1180 = vrot.lane.b32.xlu0 %v1085, 127
      %v1181 = vpop.permute.xlu0 %1180
      %v1214 = vcombine.low %v1119, %v1127
      %v1215 = vcombine.high %v1119, %v1127
      %v1217 = vunpack.c.l.s4 1983009808
      %v1218 = vunpack.c.0.s8 %v1217
      %v1219 = vlaneseq
      %v1220 = vshrl.u32 %v1219, 7
      %v1221 = vsub.s32 %v1218, %v1220
      %v1222 = vrot.slane %v1214, %v1221
      %v1224 = vunpack.c.l.s4 1983009808
      %v1225 = vunpack.c.0.s8 %v1224
      %v1226 = vlaneseq
      %v1227 = vshrl.u32 %v1226, 7
      %v1228 = vsub.s32 %v1225, %v1227
      %v1229 = vrot.slane %v1215, %v1228
      %v1230 = vcombine.low %v1123, %v1131
      %v1231 = vcombine.high %v1123, %v1131
      %v1233 = vunpack.c.l.s4 1983009808
      %v1234 = vunpack.c.0.s8 %v1233
      %v1235 = vlaneseq
      %v1236 = vshrl.u32 %v1235, 7
      %v1237 = vsub.s32 %v1234, %v1236
      %v1238 = vrot.slane %v1230, %v1237
      %v1240 = vunpack.c.l.s4 1983009808
      %v1241 = vunpack.c.0.s8 %v1240
      %v1242 = vlaneseq
      %v1243 = vshrl.u32 %v1242, 7
      %v1244 = vsub.s32 %v1241, %v1243
      %v1245 = vrot.slane %v1231, %v1244
      %v1246 = vcombine.low %v1135, %v1143
      %v1247 = vcombine.high %v1135, %v1143
      %v1249 = vunpack.c.l.s4 1983009808
      %v1250 = vunpack.c.0.s8 %v1249
      %v1251 = vlaneseq
      %v1252 = vshrl.u32 %v1251, 7
      %v1253 = vsub.s32 %v1250, %v1252
      %v1254 = vrot.slane %v1246, %v1253
      %v1256 = vunpack.c.l.s4 1983009808
      %v1257 = vunpack.c.0.s8 %v1256
      %v1258 = vlaneseq
      %v1259 = vshrl.u32 %v1258, 7
      %v1260 = vsub.s32 %v1257, %v1259
      %v1261 = vrot.slane %v1247, %v1260
      %v1262 = vcombine.low %v1139, %v1147
      %v1263 = vcombine.high %v1139, %v1147
      %v1265 = vunpack.c.l.s4 1983009808
      %v1266 = vunpack.c.0.s8 %v1265
      %v1267 = vlaneseq
      %v1268 = vshrl.u32 %v1267, 7
      %v1269 = vsub.s32 %v1266, %v1268
      %v1270 = vrot.slane %v1262, %v1269
      %v1272 = vunpack.c.l.s4 1983009808
      %v1273 = vunpack.c.0.s8 %v1272
      %v1274 = vlaneseq
      %v1275 = vshrl.u32 %v1274, 7
      %v1276 = vsub.s32 %v1273, %v1275
      %v1277 = vrot.slane %v1263, %v1276
      %v1278 = vcombine.low %v1222, %v1238
      %v1279 = vcombine.high %v1222, %v1238
      %v1281 = vunpack.c.l.s4 1934713408
      %v1282 = vunpack.c.0.s8 %v1281
      %v1283 = vlaneseq
      %v1284 = vshrl.u32 %v1283, 7
      %v1285 = vsub.s32 %v1282, %v1284
      %v1286 = vrot.slane %v1278, %v1285
      %v1288 = vunpack.c.l.s4 1934713408
      %v1289 = vunpack.c.0.s8 %v1288
      %v1290 = vlaneseq
      %v1291 = vshrl.u32 %v1290, 7
      %v1292 = vsub.s32 %v1289, %v1291
      %v1293 = vrot.slane %v1279, %v1292
      %v1294 = vcombine.low %v1229, %v1245
      %v1295 = vcombine.high %v1229, %v1245
      %v1297 = vunpack.c.l.s4 1934713408
      %v1298 = vunpack.c.0.s8 %v1297
      %v1299 = vlaneseq
      %v1300 = vshrl.u32 %v1299, 7
      %v1301 = vsub.s32 %v1298, %v1300
      %v1302 = vrot.slane %v1294, %v1301
      %v1304 = vunpack.c.l.s4 1934713408
      %v1305 = vunpack.c.0.s8 %v1304
      %v1306 = vlaneseq
      %v1307 = vshrl.u32 %v1306, 7
      %v1308 = vsub.s32 %v1305, %v1307
      %v1309 = vrot.slane %v1295, %v1308
      %v1310 = vcombine.low %v1254, %v1270
      %v1311 = vcombine.high %v1254, %v1270
      %v1313 = vunpack.c.l.s4 1934713408
      %v1314 = vunpack.c.0.s8 %v1313
      %v1315 = vlaneseq
      %v1316 = vshrl.u32 %v1315, 7
      %v1317 = vsub.s32 %v1314, %v1316
      %v1318 = vrot.slane %v1310, %v1317
      %v1320 = vunpack.c.l.s4 1934713408
      %v1321 = vunpack.c.0.s8 %v1320
      %v1322 = vlaneseq
      %v1323 = vshrl.u32 %v1322, 7
      %v1324 = vsub.s32 %v1321, %v1323
      %v1325 = vrot.slane %v1311, %v1324
      %v1326 = vcombine.low %v1261, %v1277
      %v1327 = vcombine.high %v1261, %v1277
      %v1329 = vunpack.c.l.s4 1934713408
      %v1330 = vunpack.c.0.s8 %v1329
      %v1331 = vlaneseq
      %v1332 = vshrl.u32 %v1331, 7
      %v1333 = vsub.s32 %v1330, %v1332
      %v1334 = vrot.slane %v1326, %v1333
      %v1336 = vunpack.c.l.s4 1934713408
      %v1337 = vunpack.c.0.s8 %v1336
      %v1338 = vlaneseq
      %v1339 = vshrl.u32 %v1338, 7
      %v1340 = vsub.s32 %v1337, %v1339
      %v1341 = vrot.slane %v1327, %v1340
      %v1342 = vcombine.low %v1286, %v1318
      %v1343 = vcombine.high %v1286, %v1318
      %v1344 = vcombine.low %v1293, %v1325
      %v1345 = vcombine.high %v1293, %v1325
      %v1346 = vcombine.low %v1302, %v1334
      %v1347 = vcombine.high %v1302, %v1334
      %v1348 = vcombine.low %v1309, %v1341
      %v1349 = vcombine.high %v1309, %v1341
      %v1350 = vcombine.low %v1151, %v1159
      %v1351 = vcombine.high %v1151, %v1159
      %v1353 = vunpack.c.l.s4 1983009808
      %v1354 = vunpack.c.0.s8 %v1353
      %v1355 = vlaneseq
      %v1356 = vshrl.u32 %v1355, 7
      %v1357 = vsub.s32 %v1354, %v1356
      %v1358 = vrot.slane %v1350, %v1357
      %v1360 = vunpack.c.l.s4 1983009808
      %v1361 = vunpack.c.0.s8 %v1360
      %v1362 = vlaneseq
      %v1363 = vshrl.u32 %v1362, 7
      %v1364 = vsub.s32 %v1361, %v1363
      %v1365 = vrot.slane %v1351, %v1364
      %v1366 = vcombine.low %v1155, %v1163
      %v1367 = vcombine.high %v1155, %v1163
      %v1369 = vunpack.c.l.s4 1983009808
      %v1370 = vunpack.c.0.s8 %v1369
      %v1371 = vlaneseq
      %v1372 = vshrl.u32 %v1371, 7
      %v1373 = vsub.s32 %v1370, %v1372
      %v1374 = vrot.slane %v1366, %v1373
      %v1376 = vunpack.c.l.s4 1983009808
      %v1377 = vunpack.c.0.s8 %v1376
      %v1378 = vlaneseq
      %v1379 = vshrl.u32 %v1378, 7
      %v1380 = vsub.s32 %v1377, %v1379
      %v1381 = vrot.slane %v1367, %v1380
      %v1382 = vcombine.low %v1167, %v1175
      %v1383 = vcombine.high %v1167, %v1175
      %v1385 = vunpack.c.l.s4 1983009808
      %v1386 = vunpack.c.0.s8 %v1385
      %v1387 = vlaneseq
      %v1388 = vshrl.u32 %v1387, 7
      %v1389 = vsub.s32 %v1386, %v1388
      %v1390 = vrot.slane %v1382, %v1389
      %v1392 = vunpack.c.l.s4 1983009808
      %v1393 = vunpack.c.0.s8 %v1392
      %v1394 = vlaneseq
      %v1395 = vshrl.u32 %v1394, 7
      %v1396 = vsub.s32 %v1393, %v1395
      %v1397 = vrot.slane %v1383, %v1396
      %v1398 = vcombine.low %v1171, %v1179
      %v1399 = vcombine.high %v1171, %v1179
      %v1401 = vunpack.c.l.s4 1983009808
      %v1402 = vunpack.c.0.s8 %v1401
      %v1403 = vlaneseq
      %v1404 = vshrl.u32 %v1403, 7
      %v1405 = vsub.s32 %v1402, %v1404
      %v1406 = vrot.slane %v1398, %v1405
      %v1408 = vunpack.c.l.s4 1983009808
      %v1409 = vunpack.c.0.s8 %v1408
      %v1410 = vlaneseq
      %v1411 = vshrl.u32 %v1410, 7
      %v1412 = vsub.s32 %v1409, %v1411
      %v1413 = vrot.slane %v1399, %v1412
      %v1414 = vcombine.low %v1358, %v1374
      %v1415 = vcombine.high %v1358, %v1374
      %v1417 = vunpack.c.l.s4 1934713408
      %v1418 = vunpack.c.0.s8 %v1417
      %v1419 = vlaneseq
      %v1420 = vshrl.u32 %v1419, 7
      %v1421 = vsub.s32 %v1418, %v1420
      %v1422 = vrot.slane %v1414, %v1421
      %v1424 = vunpack.c.l.s4 1934713408
      %v1425 = vunpack.c.0.s8 %v1424
      %v1426 = vlaneseq
      %v1427 = vshrl.u32 %v1426, 7
      %v1428 = vsub.s32 %v1425, %v1427
      %v1429 = vrot.slane %v1415, %v1428
      %v1430 = vcombine.low %v1365, %v1381
      %v1431 = vcombine.high %v1365, %v1381
      %v1433 = vunpack.c.l.s4 1934713408
      %v1434 = vunpack.c.0.s8 %v1433
      %v1435 = vlaneseq
      %v1436 = vshrl.u32 %v1435, 7
      %v1437 = vsub.s32 %v1434, %v1436
      %v1438 = vrot.slane %v1430, %v1437
      %v1440 = vunpack.c.l.s4 1934713408
      %v1441 = vunpack.c.0.s8 %v1440
      %v1442 = vlaneseq
      %v1443 = vshrl.u32 %v1442, 7
      %v1444 = vsub.s32 %v1441, %v1443
      %v1445 = vrot.slane %v1431, %v1444
      %v1446 = vcombine.low %v1390, %v1406
      %v1447 = vcombine.high %v1390, %v1406
      %v1449 = vunpack.c.l.s4 1934713408
      %v1450 = vunpack.c.0.s8 %v1449
      %v1451 = vlaneseq
      %v1452 = vshrl.u32 %v1451, 7
      %v1453 = vsub.s32 %v1450, %v1452
      %v1454 = vrot.slane %v1446, %v1453
      %v1456 = vunpack.c.l.s4 1934713408
      %v1457 = vunpack.c.0.s8 %v1456
      %v1458 = vlaneseq
      %v1459 = vshrl.u32 %v1458, 7
      %v1460 = vsub.s32 %v1457, %v1459
      %v1461 = vrot.slane %v1447, %v1460
      %v1462 = vcombine.low %v1397, %v1413
      %v1463 = vcombine.high %v1397, %v1413
      %v1465 = vunpack.c.l.s4 1934713408
      %v1466 = vunpack.c.0.s8 %v1465
      %v1467 = vlaneseq
      %v1468 = vshrl.u32 %v1467, 7
      %v1469 = vsub.s32 %v1466, %v1468
      %v1470 = vrot.slane %v1462, %v1469
      %v1472 = vunpack.c.l.s4 1934713408
      %v1473 = vunpack.c.0.s8 %v1472
      %v1474 = vlaneseq
      %v1475 = vshrl.u32 %v1474, 7
      %v1476 = vsub.s32 %v1473, %v1475
      %v1477 = vrot.slane %v1463, %v1476
      %v1478 = vcombine.low %v1422, %v1454
      %v1479 = vcombine.high %v1422, %v1454
      %v1480 = vcombine.low %v1429, %v1461
      %v1481 = vcombine.high %v1429, %v1461
      %v1482 = vcombine.low %v1438, %v1470
      %v1483 = vcombine.high %v1438, %v1470
      %v1484 = vcombine.low %v1445, %v1477
      %v1485 = vcombine.high %v1445, %v1477
      %v1486 = vcombine.low %v1121, %v1129
      %v1487 = vcombine.high %v1121, %v1129
      %v1489 = vunpack.c.l.s4 1983009808
      %v1490 = vunpack.c.0.s8 %v1489
      %v1491 = vlaneseq
      %v1492 = vshrl.u32 %v1491, 7
      %v1493 = vsub.s32 %v1490, %v1492
      %v1494 = vrot.slane %v1486, %v1493
      %v1496 = vunpack.c.l.s4 1983009808
      %v1497 = vunpack.c.0.s8 %v1496
      %v1498 = vlaneseq
      %v1499 = vshrl.u32 %v1498, 7
      %v1500 = vsub.s32 %v1497, %v1499
      %v1501 = vrot.slane %v1487, %v1500
      %v1502 = vcombine.low %v1125, %v1133
      %v1503 = vcombine.high %v1125, %v1133
      %v1505 = vunpack.c.l.s4 1983009808
      %v1506 = vunpack.c.0.s8 %v1505
      %v1507 = vlaneseq
      %v1508 = vshrl.u32 %v1507, 7
      %v1509 = vsub.s32 %v1506, %v1508
      %v1510 = vrot.slane %v1502, %v1509
      %v1512 = vunpack.c.l.s4 1983009808
      %v1513 = vunpack.c.0.s8 %v1512
      %v1514 = vlaneseq
      %v1515 = vshrl.u32 %v1514, 7
      %v1516 = vsub.s32 %v1513, %v1515
      %v1517 = vrot.slane %v1503, %v1516
      %v1518 = vcombine.low %v1137, %v1145
      %v1519 = vcombine.high %v1137, %v1145
      %v1521 = vunpack.c.l.s4 1983009808
      %v1522 = vunpack.c.0.s8 %v1521
      %v1523 = vlaneseq
      %v1524 = vshrl.u32 %v1523, 7
      %v1525 = vsub.s32 %v1522, %v1524
      %v1526 = vrot.slane %v1518, %v1525
      %v1528 = vunpack.c.l.s4 1983009808
      %v1529 = vunpack.c.0.s8 %v1528
      %v1530 = vlaneseq
      %v1531 = vshrl.u32 %v1530, 7
      %v1532 = vsub.s32 %v1529, %v1531
      %v1533 = vrot.slane %v1519, %v1532
      %v1534 = vcombine.low %v1141, %v1149
      %v1535 = vcombine.high %v1141, %v1149
      %v1537 = vunpack.c.l.s4 1983009808
      %v1538 = vunpack.c.0.s8 %v1537
      %v1539 = vlaneseq
      %v1540 = vshrl.u32 %v1539, 7
      %v1541 = vsub.s32 %v1538, %v1540
      %v1542 = vrot.slane %v1534, %v1541
      %v1544 = vunpack.c.l.s4 1983009808
      %v1545 = vunpack.c.0.s8 %v1544
      %v1546 = vlaneseq
      %v1547 = vshrl.u32 %v1546, 7
      %v1548 = vsub.s32 %v1545, %v1547
      %v1549 = vrot.slane %v1535, %v1548
      %v1550 = vcombine.low %v1494, %v1510
      %v1551 = vcombine.high %v1494, %v1510
      %v1553 = vunpack.c.l.s4 1934713408
      %v1554 = vunpack.c.0.s8 %v1553
      %v1555 = vlaneseq
      %v1556 = vshrl.u32 %v1555, 7
      %v1557 = vsub.s32 %v1554, %v1556
      %v1558 = vrot.slane %v1550, %v1557
      %v1560 = vunpack.c.l.s4 1934713408
      %v1561 = vunpack.c.0.s8 %v1560
      %v1562 = vlaneseq
      %v1563 = vshrl.u32 %v1562, 7
      %v1564 = vsub.s32 %v1561, %v1563
      %v1565 = vrot.slane %v1551, %v1564
      %v1566 = vcombine.low %v1501, %v1517
      %v1567 = vcombine.high %v1501, %v1517
      %v1569 = vunpack.c.l.s4 1934713408
      %v1570 = vunpack.c.0.s8 %v1569
      %v1571 = vlaneseq
      %v1572 = vshrl.u32 %v1571, 7
      %v1573 = vsub.s32 %v1570, %v1572
      %v1574 = vrot.slane %v1566, %v1573
      %v1576 = vunpack.c.l.s4 1934713408
      %v1577 = vunpack.c.0.s8 %v1576
      %v1578 = vlaneseq
      %v1579 = vshrl.u32 %v1578, 7
      %v1580 = vsub.s32 %v1577, %v1579
      %v1581 = vrot.slane %v1567, %v1580
      %v1582 = vcombine.low %v1526, %v1542
      %v1583 = vcombine.high %v1526, %v1542
      %v1585 = vunpack.c.l.s4 1934713408
      %v1586 = vunpack.c.0.s8 %v1585
      %v1587 = vlaneseq
      %v1588 = vshrl.u32 %v1587, 7
      %v1589 = vsub.s32 %v1586, %v1588
      %v1590 = vrot.slane %v1582, %v1589
      %v1592 = vunpack.c.l.s4 1934713408
      %v1593 = vunpack.c.0.s8 %v1592
      %v1594 = vlaneseq
      %v1595 = vshrl.u32 %v1594, 7
      %v1596 = vsub.s32 %v1593, %v1595
      %v1597 = vrot.slane %v1583, %v1596
      %v1598 = vcombine.low %v1533, %v1549
      %v1599 = vcombine.high %v1533, %v1549
      %v1601 = vunpack.c.l.s4 1934713408
      %v1602 = vunpack.c.0.s8 %v1601
      %v1603 = vlaneseq
      %v1604 = vshrl.u32 %v1603, 7
      %v1605 = vsub.s32 %v1602, %v1604
      %v1606 = vrot.slane %v1598, %v1605
      %v1608 = vunpack.c.l.s4 1934713408
      %v1609 = vunpack.c.0.s8 %v1608
      %v1610 = vlaneseq
      %v1611 = vshrl.u32 %v1610, 7
      %v1612 = vsub.s32 %v1609, %v1611
      %v1613 = vrot.slane %v1599, %v1612
      %v1614 = vcombine.low %v1558, %v1590
      %v1615 = vcombine.high %v1558, %v1590
      %v1616 = vcombine.low %v1565, %v1597
      %v1617 = vcombine.high %v1565, %v1597
      %v1618 = vcombine.low %v1574, %v1606
      %v1619 = vcombine.high %v1574, %v1606
      %v1620 = vcombine.low %v1581, %v1613
      %v1621 = vcombine.high %v1581, %v1613
      %v1622 = vcombine.low %v1153, %v1161
      %v1623 = vcombine.high %v1153, %v1161
      %v1625 = vunpack.c.l.s4 1983009808
      %v1626 = vunpack.c.0.s8 %v1625
      %v1627 = vlaneseq
      %v1628 = vshrl.u32 %v1627, 7
      %v1629 = vsub.s32 %v1626, %v1628
      %v1630 = vrot.slane %v1622, %v1629
      %v1632 = vunpack.c.l.s4 1983009808
      %v1633 = vunpack.c.0.s8 %v1632
      %v1634 = vlaneseq
      %v1635 = vshrl.u32 %v1634, 7
      %v1636 = vsub.s32 %v1633, %v1635
      %v1637 = vrot.slane %v1623, %v1636
      %v1638 = vcombine.low %v1157, %v1165
      %v1639 = vcombine.high %v1157, %v1165
      %v1641 = vunpack.c.l.s4 1983009808
      %v1642 = vunpack.c.0.s8 %v1641
      %v1643 = vlaneseq
      %v1644 = vshrl.u32 %v1643, 7
      %v1645 = vsub.s32 %v1642, %v1644
      %v1646 = vrot.slane %v1638, %v1645
      %v1648 = vunpack.c.l.s4 1983009808
      %v1649 = vunpack.c.0.s8 %v1648
      %v1650 = vlaneseq
      %v1651 = vshrl.u32 %v1650, 7
      %v1652 = vsub.s32 %v1649, %v1651
      %v1653 = vrot.slane %v1639, %v1652
      %v1654 = vcombine.low %v1169, %v1177
      %v1655 = vcombine.high %v1169, %v1177
      %v1657 = vunpack.c.l.s4 1983009808
      %v1658 = vunpack.c.0.s8 %v1657
      %v1659 = vlaneseq
      %v1660 = vshrl.u32 %v1659, 7
      %v1661 = vsub.s32 %v1658, %v1660
      %v1662 = vrot.slane %v1654, %v1661
      %v1664 = vunpack.c.l.s4 1983009808
      %v1665 = vunpack.c.0.s8 %v1664
      %v1666 = vlaneseq
      %v1667 = vshrl.u32 %v1666, 7
      %v1668 = vsub.s32 %v1665, %v1667
      %v1669 = vrot.slane %v1655, %v1668
      %v1670 = vcombine.low %v1173, %v1181
      %v1671 = vcombine.high %v1173, %v1181
      %v1673 = vunpack.c.l.s4 1983009808
      %v1674 = vunpack.c.0.s8 %v1673
      %v1675 = vlaneseq
      %v1676 = vshrl.u32 %v1675, 7
      %v1677 = vsub.s32 %v1674, %v1676
      %v1678 = vrot.slane %v1670, %v1677
      %v1680 = vunpack.c.l.s4 1983009808
      %v1681 = vunpack.c.0.s8 %v1680
      %v1682 = vlaneseq
      %v1683 = vshrl.u32 %v1682, 7
      %v1684 = vsub.s32 %v1681, %v1683
      %v1685 = vrot.slane %v1671, %v1684
      %v1686 = vcombine.low %v1630, %v1646
      %v1687 = vcombine.high %v1630, %v1646
      %v1689 = vunpack.c.l.s4 1934713408
      %v1690 = vunpack.c.0.s8 %v1689
      %v1691 = vlaneseq
      %v1692 = vshrl.u32 %v1691, 7
      %v1693 = vsub.s32 %v1690, %v1692
      %v1694 = vrot.slane %v1686, %v1693
      %v1696 = vunpack.c.l.s4 1934713408
      %v1697 = vunpack.c.0.s8 %v1696
      %v1698 = vlaneseq
      %v1699 = vshrl.u32 %v1698, 7
      %v1700 = vsub.s32 %v1697, %v1699
      %v1701 = vrot.slane %v1687, %v1700
      %v1702 = vcombine.low %v1637, %v1653
      %v1703 = vcombine.high %v1637, %v1653
      %v1705 = vunpack.c.l.s4 1934713408
      %v1706 = vunpack.c.0.s8 %v1705
      %v1707 = vlaneseq
      %v1708 = vshrl.u32 %v1707, 7
      %v1709 = vsub.s32 %v1706, %v1708
      %v1710 = vrot.slane %v1702, %v1709
      %v1712 = vunpack.c.l.s4 1934713408
      %v1713 = vunpack.c.0.s8 %v1712
      %v1714 = vlaneseq
      %v1715 = vshrl.u32 %v1714, 7
      %v1716 = vsub.s32 %v1713, %v1715
      %v1717 = vrot.slane %v1703, %v1716
      %v1718 = vcombine.low %v1662, %v1678
      %v1719 = vcombine.high %v1662, %v1678
      %v1721 = vunpack.c.l.s4 1934713408
      %v1722 = vunpack.c.0.s8 %v1721
      %v1723 = vlaneseq
      %v1724 = vshrl.u32 %v1723, 7
      %v1725 = vsub.s32 %v1722, %v1724
      %v1726 = vrot.slane %v1718, %v1725
      %v1728 = vunpack.c.l.s4 1934713408
      %v1729 = vunpack.c.0.s8 %v1728
      %v1730 = vlaneseq
      %v1731 = vshrl.u32 %v1730, 7
      %v1732 = vsub.s32 %v1729, %v1731
      %v1733 = vrot.slane %v1719, %v1732
      %v1734 = vcombine.low %v1669, %v1685
      %v1735 = vcombine.high %v1669, %v1685
      %v1737 = vunpack.c.l.s4 1934713408
      %v1738 = vunpack.c.0.s8 %v1737
      %v1739 = vlaneseq
      %v1740 = vshrl.u32 %v1739, 7
      %v1741 = vsub.s32 %v1738, %v1740
      %v1742 = vrot.slane %v1734, %v1741
      %v1744 = vunpack.c.l.s4 1934713408
      %v1745 = vunpack.c.0.s8 %v1744
      %v1746 = vlaneseq
      %v1747 = vshrl.u32 %v1746, 7
      %v1748 = vsub.s32 %v1745, %v1747
      %v1749 = vrot.slane %v1735, %v1748
      %v1750 = vcombine.low %v1694, %v1726
      %v1751 = vcombine.high %v1694, %v1726
      %v1752 = vcombine.low %v1701, %v1733
      %v1753 = vcombine.high %v1701, %v1733
      %v1754 = vcombine.low %v1710, %v1742
      %v1755 = vcombine.high %v1710, %v1742
      %v1756 = vcombine.low %v1717, %v1749
      %v1757 = vcombine.high %v1717, %v1749
      %1760 = vrot.lane.b32.xlu0 %v1343, 16
      %v1761 = vpop.permute.xlu0 %1760
      %1762 = vrot.lane.b32.xlu0 %v1479, 16
      %v1763 = vpop.permute.xlu0 %1762
      %1768 = vrot.lane.b32.xlu0 %v1344, 32
      %v1769 = vpop.permute.xlu0 %1768
      %1770 = vrot.lane.b32.xlu0 %v1480, 32
      %v1771 = vpop.permute.xlu0 %1770
      %1776 = vrot.lane.b32.xlu0 %v1345, 48
      %v1777 = vpop.permute.xlu0 %1776
      %1778 = vrot.lane.b32.xlu0 %v1481, 48
      %v1779 = vpop.permute.xlu0 %1778
      %1784 = vrot.lane.b32.xlu0 %v1346, 64
      %v1785 = vpop.permute.xlu0 %1784
      %1786 = vrot.lane.b32.xlu0 %v1482, 64
      %v1787 = vpop.permute.xlu0 %1786
      %1792 = vrot.lane.b32.xlu0 %v1347, 80
      %v1793 = vpop.permute.xlu0 %1792
      %1794 = vrot.lane.b32.xlu0 %v1483, 80
      %v1795 = vpop.permute.xlu0 %1794
      %1800 = vrot.lane.b32.xlu0 %v1348, 96
      %v1801 = vpop.permute.xlu0 %1800
      %1802 = vrot.lane.b32.xlu0 %v1484, 96
      %v1803 = vpop.permute.xlu0 %1802
      %1808 = vrot.lane.b32.xlu0 %v1349, 112
      %v1809 = vpop.permute.xlu0 %1808
      %1810 = vrot.lane.b32.xlu0 %v1485, 112
      %v1811 = vpop.permute.xlu0 %1810
      %1816 = vrot.lane.b32.xlu0 %v1615, 16
      %v1817 = vpop.permute.xlu0 %1816
      %1818 = vrot.lane.b32.xlu0 %v1751, 16
      %v1819 = vpop.permute.xlu0 %1818
      %1824 = vrot.lane.b32.xlu0 %v1616, 32
      %v1825 = vpop.permute.xlu0 %1824
      %1826 = vrot.lane.b32.xlu0 %v1752, 32
      %v1827 = vpop.permute.xlu0 %1826
      %1832 = vrot.lane.b32.xlu0 %v1617, 48
      %v1833 = vpop.permute.xlu0 %1832
      %1834 = vrot.lane.b32.xlu0 %v1753, 48
      %v1835 = vpop.permute.xlu0 %1834
      %1840 = vrot.lane.b32.xlu0 %v1618, 64
      %v1841 = vpop.permute.xlu0 %1840
      %1842 = vrot.lane.b32.xlu0 %v1754, 64
      %v1843 = vpop.permute.xlu0 %1842
      %1848 = vrot.lane.b32.xlu0 %v1619, 80
      %v1849 = vpop.permute.xlu0 %1848
      %1850 = vrot.lane.b32.xlu0 %v1755, 80
      %v1851 = vpop.permute.xlu0 %1850
      %1856 = vrot.lane.b32.xlu0 %v1620, 96
      %v1857 = vpop.permute.xlu0 %1856
      %1858 = vrot.lane.b32.xlu0 %v1756, 96
      %v1859 = vpop.permute.xlu0 %1858
      %1864 = vrot.lane.b32.xlu0 %v1621, 112
      %v1865 = vpop.permute.xlu0 %1864
      %1866 = vrot.lane.b32.xlu0 %v1757, 112
      %v1867 = vpop.permute.xlu0 %1866
      %v1870 = vsel %vm1015, %v1342, %v1761
      %v1871 = vsel %vm1015, %v1478, %v1763
      %v1872 = vsel %vm1018, %v1870, %v1769
      %v1873 = vsel %vm1018, %v1871, %v1771
      %v1874 = vsel %vm1021, %v1872, %v1777
      %v1875 = vsel %vm1021, %v1873, %v1779
      %v1876 = vsel %vm1024, %v1874, %v1785
      %v1877 = vsel %vm1024, %v1875, %v1787
      %v1878 = vsel %vm1027, %v1876, %v1793
      %v1879 = vsel %vm1027, %v1877, %v1795
      %v1880 = vsel %vm1030, %v1878, %v1801
      %v1881 = vsel %vm1030, %v1879, %v1803
      %v1882 = vsel %vm1033, %v1880, %v1809
      %v1883 = vsel %vm1033, %v1881, %v1811
      %v1884 = vsel %vm1015, %v1614, %v1817
      %v1885 = vsel %vm1015, %v1750, %v1819
      %v1886 = vsel %vm1018, %v1884, %v1825
      %v1887 = vsel %vm1018, %v1885, %v1827
      %v1888 = vsel %vm1021, %v1886, %v1833
      %v1889 = vsel %vm1021, %v1887, %v1835
      %v1890 = vsel %vm1024, %v1888, %v1841
      %v1891 = vsel %vm1024, %v1889, %v1843
      %v1892 = vsel %vm1027, %v1890, %v1849
      %v1893 = vsel %vm1027, %v1891, %v1851
      %v1894 = vsel %vm1030, %v1892, %v1857
      %v1895 = vsel %vm1030, %v1893, %v1859
      %v1896 = vsel %vm1033, %v1894, %v1865
      %v1897 = vsel %vm1033, %v1895, %v1867
      %v1898 = vpack.c.bf16 %v1883, %v1882
      %v1899 = vpack.c.bf16 %v1897, %v1896
      %1900 = vst [vmem:[#allocation3 + $0x10] sm:$0xff] %v1898
      %1901 = vst [vmem:[#allocation3 + $0x18] sm:$0xff] %v1899
      %v1902 = vld [vmem:[#allocation2] sm:$0xff]
      %v1903 = vld [vmem:[#allocation2 + $0x8] sm:$0xff]
      %v1904 = vld [vmem:[#allocation2 + $0x18] sm:$0xff]
      %v1905 = vld [vmem:[#allocation2 + $0x20] sm:$0xff]
      %v1906 = vld [vmem:[#allocation2 + $0x30] sm:$0xff]
      %v1907 = vld [vmem:[#allocation2 + $0x38] sm:$0xff]
      %v1908 = vld [vmem:[#allocation2 + $0x48] sm:$0xff]
      %v1909 = vld [vmem:[#allocation2 + $0x50] sm:$0xff]
      %v1910 = vld [vmem:[#allocation2 + $0x60] sm:$0xff]
      %v1911 = vld [vmem:[#allocation2 + $0x68] sm:$0xff]
      %v1912 = vld [vmem:[#allocation2 + $0x78] sm:$0xff]
      %v1913 = vld [vmem:[#allocation2 + $0x80] sm:$0xff]
      %v1914 = vld [vmem:[#allocation2 + $0x90] sm:$0xff]
      %v1915 = vld [vmem:[#allocation2 + $0x98] sm:$0xff]
      %v1916 = vld [vmem:[#allocation2 + $0xa8] sm:$0xff]
      %v1917 = vld [vmem:[#allocation2 + $0xb0] sm:$0xff]
      %v1918 = vld [vmem:[#allocation2 + $0xc0] sm:$0xff]
      %v1919 = vld [vmem:[#allocation2 + $0xc8] sm:$0xff]
      %v1920 = vld [vmem:[#allocation2 + $0xd8] sm:$0xff]
      %v1921 = vld [vmem:[#allocation2 + $0xe0] sm:$0xff]
      %v1922 = vld [vmem:[#allocation2 + $0xf0] sm:$0xff]
      %v1923 = vld [vmem:[#allocation2 + $0xf8] sm:$0xff]
      %v1924 = vld [vmem:[#allocation2 + $0x108] sm:$0xff]
      %v1925 = vld [vmem:[#allocation2 + $0x110] sm:$0xff]
      %v1926 = vld [vmem:[#allocation2 + $0x120] sm:$0xff]
      %v1927 = vld [vmem:[#allocation2 + $0x128] sm:$0xff]
      %v1928 = vld [vmem:[#allocation2 + $0x138] sm:$0xff]
      %v1929 = vld [vmem:[#allocation2 + $0x140] sm:$0xff]
      %v1930 = vld [vmem:[#allocation2 + $0x150] sm:$0xff]
      %v1931 = vld [vmem:[#allocation2 + $0x158] sm:$0xff]
      %v1932 = vld [vmem:[#allocation2 + $0x168] sm:$0xff]
      %v1933 = vld [vmem:[#allocation2 + $0x170] sm:$0xff]
      %1966 = vrot.lane.b32.xlu0 %v1902, 126
      %v1967 = vpop.permute.xlu0 %1966
      %1968 = vrot.lane.b32.xlu0 %v1903, 126
      %v1969 = vpop.permute.xlu0 %1968
      %1970 = vrot.lane.b32.xlu0 %v1904, 126
      %v1971 = vpop.permute.xlu0 %1970
      %1972 = vrot.lane.b32.xlu0 %v1905, 126
      %v1973 = vpop.permute.xlu0 %1972
      %1974 = vrot.lane.b32.xlu0 %v1906, 126
      %v1975 = vpop.permute.xlu0 %1974
      %1976 = vrot.lane.b32.xlu0 %v1907, 126
      %v1977 = vpop.permute.xlu0 %1976
      %1978 = vrot.lane.b32.xlu0 %v1908, 126
      %v1979 = vpop.permute.xlu0 %1978
      %1980 = vrot.lane.b32.xlu0 %v1909, 126
      %v1981 = vpop.permute.xlu0 %1980
      %1982 = vrot.lane.b32.xlu0 %v1910, 126
      %v1983 = vpop.permute.xlu0 %1982
      %1984 = vrot.lane.b32.xlu0 %v1911, 126
      %v1985 = vpop.permute.xlu0 %1984
      %1986 = vrot.lane.b32.xlu0 %v1912, 126
      %v1987 = vpop.permute.xlu0 %1986
      %1988 = vrot.lane.b32.xlu0 %v1913, 126
      %v1989 = vpop.permute.xlu0 %1988
      %1990 = vrot.lane.b32.xlu0 %v1914, 126
      %v1991 = vpop.permute.xlu0 %1990
      %1992 = vrot.lane.b32.xlu0 %v1915, 126
      %v1993 = vpop.permute.xlu0 %1992
      %1994 = vrot.lane.b32.xlu0 %v1916, 126
      %v1995 = vpop.permute.xlu0 %1994
      %1996 = vrot.lane.b32.xlu0 %v1917, 126
      %v1997 = vpop.permute.xlu0 %1996
      %1998 = vrot.lane.b32.xlu0 %v1918, 126
      %v1999 = vpop.permute.xlu0 %1998
      %2000 = vrot.lane.b32.xlu0 %v1919, 126
      %v2001 = vpop.permute.xlu0 %2000
      %2002 = vrot.lane.b32.xlu0 %v1920, 126
      %v2003 = vpop.permute.xlu0 %2002
      %2004 = vrot.lane.b32.xlu0 %v1921, 126
      %v2005 = vpop.permute.xlu0 %2004
      %2006 = vrot.lane.b32.xlu0 %v1922, 126
      %v2007 = vpop.permute.xlu0 %2006
      %2008 = vrot.lane.b32.xlu0 %v1923, 126
      %v2009 = vpop.permute.xlu0 %2008
      %2010 = vrot.lane.b32.xlu0 %v1924, 126
      %v2011 = vpop.permute.xlu0 %2010
      %2012 = vrot.lane.b32.xlu0 %v1925, 126
      %v2013 = vpop.permute.xlu0 %2012
      %2014 = vrot.lane.b32.xlu0 %v1926, 126
      %v2015 = vpop.permute.xlu0 %2014
      %2016 = vrot.lane.b32.xlu0 %v1927, 126
      %v2017 = vpop.permute.xlu0 %2016
      %2018 = vrot.lane.b32.xlu0 %v1928, 126
      %v2019 = vpop.permute.xlu0 %2018
      %2020 = vrot.lane.b32.xlu0 %v1929, 126
      %v2021 = vpop.permute.xlu0 %2020
      %2022 = vrot.lane.b32.xlu0 %v1930, 126
      %v2023 = vpop.permute.xlu0 %2022
      %2024 = vrot.lane.b32.xlu0 %v1931, 126
      %v2025 = vpop.permute.xlu0 %2024
      %2026 = vrot.lane.b32.xlu0 %v1932, 126
      %v2027 = vpop.permute.xlu0 %2026
      %2028 = vrot.lane.b32.xlu0 %v1933, 126
      %v2029 = vpop.permute.xlu0 %2028
      %v2062 = vcombine.low %v1967, %v1975
      %v2063 = vcombine.high %v1967, %v1975
      %v2065 = vunpack.c.l.s4 1983009808
      %v2066 = vunpack.c.0.s8 %v2065
      %v2067 = vlaneseq
      %v2068 = vshrl.u32 %v2067, 7
      %v2069 = vsub.s32 %v2066, %v2068
      %v2070 = vrot.slane %v2062, %v2069
      %v2072 = vunpack.c.l.s4 1983009808
      %v2073 = vunpack.c.0.s8 %v2072
      %v2074 = vlaneseq
      %v2075 = vshrl.u32 %v2074, 7
      %v2076 = vsub.s32 %v2073, %v2075
      %v2077 = vrot.slane %v2063, %v2076
      %v2078 = vcombine.low %v1971, %v1979
      %v2079 = vcombine.high %v1971, %v1979
      %v2081 = vunpack.c.l.s4 1983009808
      %v2082 = vunpack.c.0.s8 %v2081
      %v2083 = vlaneseq
      %v2084 = vshrl.u32 %v2083, 7
      %v2085 = vsub.s32 %v2082, %v2084
      %v2086 = vrot.slane %v2078, %v2085
      %v2088 = vunpack.c.l.s4 1983009808
      %v2089 = vunpack.c.0.s8 %v2088
      %v2090 = vlaneseq
      %v2091 = vshrl.u32 %v2090, 7
      %v2092 = vsub.s32 %v2089, %v2091
      %v2093 = vrot.slane %v2079, %v2092
      %v2094 = vcombine.low %v1983, %v1991
      %v2095 = vcombine.high %v1983, %v1991
      %v2097 = vunpack.c.l.s4 1983009808
      %v2098 = vunpack.c.0.s8 %v2097
      %v2099 = vlaneseq
      %v2100 = vshrl.u32 %v2099, 7
      %v2101 = vsub.s32 %v2098, %v2100
      %v2102 = vrot.slane %v2094, %v2101
      %v2104 = vunpack.c.l.s4 1983009808
      %v2105 = vunpack.c.0.s8 %v2104
      %v2106 = vlaneseq
      %v2107 = vshrl.u32 %v2106, 7
      %v2108 = vsub.s32 %v2105, %v2107
      %v2109 = vrot.slane %v2095, %v2108
      %v2110 = vcombine.low %v1987, %v1995
      %v2111 = vcombine.high %v1987, %v1995
      %v2113 = vunpack.c.l.s4 1983009808
      %v2114 = vunpack.c.0.s8 %v2113
      %v2115 = vlaneseq
      %v2116 = vshrl.u32 %v2115, 7
      %v2117 = vsub.s32 %v2114, %v2116
      %v2118 = vrot.slane %v2110, %v2117
      %v2120 = vunpack.c.l.s4 1983009808
      %v2121 = vunpack.c.0.s8 %v2120
      %v2122 = vlaneseq
      %v2123 = vshrl.u32 %v2122, 7
      %v2124 = vsub.s32 %v2121, %v2123
      %v2125 = vrot.slane %v2111, %v2124
      %v2126 = vcombine.low %v2070, %v2086
      %v2127 = vcombine.high %v2070, %v2086
      %v2129 = vunpack.c.l.s4 1934713408
      %v2130 = vunpack.c.0.s8 %v2129
      %v2131 = vlaneseq
      %v2132 = vshrl.u32 %v2131, 7
      %v2133 = vsub.s32 %v2130, %v2132
      %v2134 = vrot.slane %v2126, %v2133
      %v2136 = vunpack.c.l.s4 1934713408
      %v2137 = vunpack.c.0.s8 %v2136
      %v2138 = vlaneseq
      %v2139 = vshrl.u32 %v2138, 7
      %v2140 = vsub.s32 %v2137, %v2139
      %v2141 = vrot.slane %v2127, %v2140
      %v2142 = vcombine.low %v2077, %v2093
      %v2143 = vcombine.high %v2077, %v2093
      %v2145 = vunpack.c.l.s4 1934713408
      %v2146 = vunpack.c.0.s8 %v2145
      %v2147 = vlaneseq
      %v2148 = vshrl.u32 %v2147, 7
      %v2149 = vsub.s32 %v2146, %v2148
      %v2150 = vrot.slane %v2142, %v2149
      %v2152 = vunpack.c.l.s4 1934713408
      %v2153 = vunpack.c.0.s8 %v2152
      %v2154 = vlaneseq
      %v2155 = vshrl.u32 %v2154, 7
      %v2156 = vsub.s32 %v2153, %v2155
      %v2157 = vrot.slane %v2143, %v2156
      %v2158 = vcombine.low %v2102, %v2118
      %v2159 = vcombine.high %v2102, %v2118
      %v2161 = vunpack.c.l.s4 1934713408
      %v2162 = vunpack.c.0.s8 %v2161
      %v2163 = vlaneseq
      %v2164 = vshrl.u32 %v2163, 7
      %v2165 = vsub.s32 %v2162, %v2164
      %v2166 = vrot.slane %v2158, %v2165
      %v2168 = vunpack.c.l.s4 1934713408
      %v2169 = vunpack.c.0.s8 %v2168
      %v2170 = vlaneseq
      %v2171 = vshrl.u32 %v2170, 7
      %v2172 = vsub.s32 %v2169, %v2171
      %v2173 = vrot.slane %v2159, %v2172
      %v2174 = vcombine.low %v2109, %v2125
      %v2175 = vcombine.high %v2109, %v2125
      %v2177 = vunpack.c.l.s4 1934713408
      %v2178 = vunpack.c.0.s8 %v2177
      %v2179 = vlaneseq
      %v2180 = vshrl.u32 %v2179, 7
      %v2181 = vsub.s32 %v2178, %v2180
      %v2182 = vrot.slane %v2174, %v2181
      %v2184 = vunpack.c.l.s4 1934713408
      %v2185 = vunpack.c.0.s8 %v2184
      %v2186 = vlaneseq
      %v2187 = vshrl.u32 %v2186, 7
      %v2188 = vsub.s32 %v2185, %v2187
      %v2189 = vrot.slane %v2175, %v2188
      %v2190 = vcombine.low %v2134, %v2166
      %v2191 = vcombine.high %v2134, %v2166
      %v2192 = vcombine.low %v2141, %v2173
      %v2193 = vcombine.high %v2141, %v2173
      %v2194 = vcombine.low %v2150, %v2182
      %v2195 = vcombine.high %v2150, %v2182
      %v2196 = vcombine.low %v2157, %v2189
      %v2197 = vcombine.high %v2157, %v2189
      %v2198 = vcombine.low %v1999, %v2007
      %v2199 = vcombine.high %v1999, %v2007
      %v2201 = vunpack.c.l.s4 1983009808
      %v2202 = vunpack.c.0.s8 %v2201
      %v2203 = vlaneseq
      %v2204 = vshrl.u32 %v2203, 7
      %v2205 = vsub.s32 %v2202, %v2204
      %v2206 = vrot.slane %v2198, %v2205
      %v2208 = vunpack.c.l.s4 1983009808
      %v2209 = vunpack.c.0.s8 %v2208
      %v2210 = vlaneseq
      %v2211 = vshrl.u32 %v2210, 7
      %v2212 = vsub.s32 %v2209, %v2211
      %v2213 = vrot.slane %v2199, %v2212
      %v2214 = vcombine.low %v2003, %v2011
      %v2215 = vcombine.high %v2003, %v2011
      %v2217 = vunpack.c.l.s4 1983009808
      %v2218 = vunpack.c.0.s8 %v2217
      %v2219 = vlaneseq
      %v2220 = vshrl.u32 %v2219, 7
      %v2221 = vsub.s32 %v2218, %v2220
      %v2222 = vrot.slane %v2214, %v2221
      %v2224 = vunpack.c.l.s4 1983009808
      %v2225 = vunpack.c.0.s8 %v2224
      %v2226 = vlaneseq
      %v2227 = vshrl.u32 %v2226, 7
      %v2228 = vsub.s32 %v2225, %v2227
      %v2229 = vrot.slane %v2215, %v2228
      %v2230 = vcombine.low %v2015, %v2023
      %v2231 = vcombine.high %v2015, %v2023
      %v2233 = vunpack.c.l.s4 1983009808
      %v2234 = vunpack.c.0.s8 %v2233
      %v2235 = vlaneseq
      %v2236 = vshrl.u32 %v2235, 7
      %v2237 = vsub.s32 %v2234, %v2236
      %v2238 = vrot.slane %v2230, %v2237
      %v2240 = vunpack.c.l.s4 1983009808
      %v2241 = vunpack.c.0.s8 %v2240
      %v2242 = vlaneseq
      %v2243 = vshrl.u32 %v2242, 7
      %v2244 = vsub.s32 %v2241, %v2243
      %v2245 = vrot.slane %v2231, %v2244
      %v2246 = vcombine.low %v2019, %v2027
      %v2247 = vcombine.high %v2019, %v2027
      %v2249 = vunpack.c.l.s4 1983009808
      %v2250 = vunpack.c.0.s8 %v2249
      %v2251 = vlaneseq
      %v2252 = vshrl.u32 %v2251, 7
      %v2253 = vsub.s32 %v2250, %v2252
      %v2254 = vrot.slane %v2246, %v2253
      %v2256 = vunpack.c.l.s4 1983009808
      %v2257 = vunpack.c.0.s8 %v2256
      %v2258 = vlaneseq
      %v2259 = vshrl.u32 %v2258, 7
      %v2260 = vsub.s32 %v2257, %v2259
      %v2261 = vrot.slane %v2247, %v2260
      %v2262 = vcombine.low %v2206, %v2222
      %v2263 = vcombine.high %v2206, %v2222
      %v2265 = vunpack.c.l.s4 1934713408
      %v2266 = vunpack.c.0.s8 %v2265
      %v2267 = vlaneseq
      %v2268 = vshrl.u32 %v2267, 7
      %v2269 = vsub.s32 %v2266, %v2268
      %v2270 = vrot.slane %v2262, %v2269
      %v2272 = vunpack.c.l.s4 1934713408
      %v2273 = vunpack.c.0.s8 %v2272
      %v2274 = vlaneseq
      %v2275 = vshrl.u32 %v2274, 7
      %v2276 = vsub.s32 %v2273, %v2275
      %v2277 = vrot.slane %v2263, %v2276
      %v2278 = vcombine.low %v2213, %v2229
      %v2279 = vcombine.high %v2213, %v2229
      %v2281 = vunpack.c.l.s4 1934713408
      %v2282 = vunpack.c.0.s8 %v2281
      %v2283 = vlaneseq
      %v2284 = vshrl.u32 %v2283, 7
      %v2285 = vsub.s32 %v2282, %v2284
      %v2286 = vrot.slane %v2278, %v2285
      %v2288 = vunpack.c.l.s4 1934713408
      %v2289 = vunpack.c.0.s8 %v2288
      %v2290 = vlaneseq
      %v2291 = vshrl.u32 %v2290, 7
      %v2292 = vsub.s32 %v2289, %v2291
      %v2293 = vrot.slane %v2279, %v2292
      %v2294 = vcombine.low %v2238, %v2254
      %v2295 = vcombine.high %v2238, %v2254
      %v2297 = vunpack.c.l.s4 1934713408
      %v2298 = vunpack.c.0.s8 %v2297
      %v2299 = vlaneseq
      %v2300 = vshrl.u32 %v2299, 7
      %v2301 = vsub.s32 %v2298, %v2300
      %v2302 = vrot.slane %v2294, %v2301
      %v2304 = vunpack.c.l.s4 1934713408
      %v2305 = vunpack.c.0.s8 %v2304
      %v2306 = vlaneseq
      %v2307 = vshrl.u32 %v2306, 7
      %v2308 = vsub.s32 %v2305, %v2307
      %v2309 = vrot.slane %v2295, %v2308
      %v2310 = vcombine.low %v2245, %v2261
      %v2311 = vcombine.high %v2245, %v2261
      %v2313 = vunpack.c.l.s4 1934713408
      %v2314 = vunpack.c.0.s8 %v2313
      %v2315 = vlaneseq
      %v2316 = vshrl.u32 %v2315, 7
      %v2317 = vsub.s32 %v2314, %v2316
      %v2318 = vrot.slane %v2310, %v2317
      %v2320 = vunpack.c.l.s4 1934713408
      %v2321 = vunpack.c.0.s8 %v2320
      %v2322 = vlaneseq
      %v2323 = vshrl.u32 %v2322, 7
      %v2324 = vsub.s32 %v2321, %v2323
      %v2325 = vrot.slane %v2311, %v2324
      %v2326 = vcombine.low %v2270, %v2302
      %v2327 = vcombine.high %v2270, %v2302
      %v2328 = vcombine.low %v2277, %v2309
      %v2329 = vcombine.high %v2277, %v2309
      %v2330 = vcombine.low %v2286, %v2318
      %v2331 = vcombine.high %v2286, %v2318
      %v2332 = vcombine.low %v2293, %v2325
      %v2333 = vcombine.high %v2293, %v2325
      %v2334 = vcombine.low %v1969, %v1977
      %v2335 = vcombine.high %v1969, %v1977
      %v2337 = vunpack.c.l.s4 1983009808
      %v2338 = vunpack.c.0.s8 %v2337
      %v2339 = vlaneseq
      %v2340 = vshrl.u32 %v2339, 7
      %v2341 = vsub.s32 %v2338, %v2340
      %v2342 = vrot.slane %v2334, %v2341
      %v2344 = vunpack.c.l.s4 1983009808
      %v2345 = vunpack.c.0.s8 %v2344
      %v2346 = vlaneseq
      %v2347 = vshrl.u32 %v2346, 7
      %v2348 = vsub.s32 %v2345, %v2347
      %v2349 = vrot.slane %v2335, %v2348
      %v2350 = vcombine.low %v1973, %v1981
      %v2351 = vcombine.high %v1973, %v1981
      %v2353 = vunpack.c.l.s4 1983009808
      %v2354 = vunpack.c.0.s8 %v2353
      %v2355 = vlaneseq
      %v2356 = vshrl.u32 %v2355, 7
      %v2357 = vsub.s32 %v2354, %v2356
      %v2358 = vrot.slane %v2350, %v2357
      %v2360 = vunpack.c.l.s4 1983009808
      %v2361 = vunpack.c.0.s8 %v2360
      %v2362 = vlaneseq
      %v2363 = vshrl.u32 %v2362, 7
      %v2364 = vsub.s32 %v2361, %v2363
      %v2365 = vrot.slane %v2351, %v2364
      %v2366 = vcombine.low %v1985, %v1993
      %v2367 = vcombine.high %v1985, %v1993
      %v2369 = vunpack.c.l.s4 1983009808
      %v2370 = vunpack.c.0.s8 %v2369
      %v2371 = vlaneseq
      %v2372 = vshrl.u32 %v2371, 7
      %v2373 = vsub.s32 %v2370, %v2372
      %v2374 = vrot.slane %v2366, %v2373
      %v2376 = vunpack.c.l.s4 1983009808
      %v2377 = vunpack.c.0.s8 %v2376
      %v2378 = vlaneseq
      %v2379 = vshrl.u32 %v2378, 7
      %v2380 = vsub.s32 %v2377, %v2379
      %v2381 = vrot.slane %v2367, %v2380
      %v2382 = vcombine.low %v1989, %v1997
      %v2383 = vcombine.high %v1989, %v1997
      %v2385 = vunpack.c.l.s4 1983009808
      %v2386 = vunpack.c.0.s8 %v2385
      %v2387 = vlaneseq
      %v2388 = vshrl.u32 %v2387, 7
      %v2389 = vsub.s32 %v2386, %v2388
      %v2390 = vrot.slane %v2382, %v2389
      %v2392 = vunpack.c.l.s4 1983009808
      %v2393 = vunpack.c.0.s8 %v2392
      %v2394 = vlaneseq
      %v2395 = vshrl.u32 %v2394, 7
      %v2396 = vsub.s32 %v2393, %v2395
      %v2397 = vrot.slane %v2383, %v2396
      %v2398 = vcombine.low %v2342, %v2358
      %v2399 = vcombine.high %v2342, %v2358
      %v2401 = vunpack.c.l.s4 1934713408
      %v2402 = vunpack.c.0.s8 %v2401
      %v2403 = vlaneseq
      %v2404 = vshrl.u32 %v2403, 7
      %v2405 = vsub.s32 %v2402, %v2404
      %v2406 = vrot.slane %v2398, %v2405
      %v2408 = vunpack.c.l.s4 1934713408
      %v2409 = vunpack.c.0.s8 %v2408
      %v2410 = vlaneseq
      %v2411 = vshrl.u32 %v2410, 7
      %v2412 = vsub.s32 %v2409, %v2411
      %v2413 = vrot.slane %v2399, %v2412
      %v2414 = vcombine.low %v2349, %v2365
      %v2415 = vcombine.high %v2349, %v2365
      %v2417 = vunpack.c.l.s4 1934713408
      %v2418 = vunpack.c.0.s8 %v2417
      %v2419 = vlaneseq
      %v2420 = vshrl.u32 %v2419, 7
      %v2421 = vsub.s32 %v2418, %v2420
      %v2422 = vrot.slane %v2414, %v2421
      %v2424 = vunpack.c.l.s4 1934713408
      %v2425 = vunpack.c.0.s8 %v2424
      %v2426 = vlaneseq
      %v2427 = vshrl.u32 %v2426, 7
      %v2428 = vsub.s32 %v2425, %v2427
      %v2429 = vrot.slane %v2415, %v2428
      %v2430 = vcombine.low %v2374, %v2390
      %v2431 = vcombine.high %v2374, %v2390
      %v2433 = vunpack.c.l.s4 1934713408
      %v2434 = vunpack.c.0.s8 %v2433
      %v2435 = vlaneseq
      %v2436 = vshrl.u32 %v2435, 7
      %v2437 = vsub.s32 %v2434, %v2436
      %v2438 = vrot.slane %v2430, %v2437
      %v2440 = vunpack.c.l.s4 1934713408
      %v2441 = vunpack.c.0.s8 %v2440
      %v2442 = vlaneseq
      %v2443 = vshrl.u32 %v2442, 7
      %v2444 = vsub.s32 %v2441, %v2443
      %v2445 = vrot.slane %v2431, %v2444
      %v2446 = vcombine.low %v2381, %v2397
      %v2447 = vcombine.high %v2381, %v2397
      %v2449 = vunpack.c.l.s4 1934713408
      %v2450 = vunpack.c.0.s8 %v2449
      %v2451 = vlaneseq
      %v2452 = vshrl.u32 %v2451, 7
      %v2453 = vsub.s32 %v2450, %v2452
      %v2454 = vrot.slane %v2446, %v2453
      %v2456 = vunpack.c.l.s4 1934713408
      %v2457 = vunpack.c.0.s8 %v2456
      %v2458 = vlaneseq
      %v2459 = vshrl.u32 %v2458, 7
      %v2460 = vsub.s32 %v2457, %v2459
      %v2461 = vrot.slane %v2447, %v2460
      %v2462 = vcombine.low %v2406, %v2438
      %v2463 = vcombine.high %v2406, %v2438
      %v2464 = vcombine.low %v2413, %v2445
      %v2465 = vcombine.high %v2413, %v2445
      %v2466 = vcombine.low %v2422, %v2454
      %v2467 = vcombine.high %v2422, %v2454
      %v2468 = vcombine.low %v2429, %v2461
      %v2469 = vcombine.high %v2429, %v2461
      %v2470 = vcombine.low %v2001, %v2009
      %v2471 = vcombine.high %v2001, %v2009
      %v2473 = vunpack.c.l.s4 1983009808
      %v2474 = vunpack.c.0.s8 %v2473
      %v2475 = vlaneseq
      %v2476 = vshrl.u32 %v2475, 7
      %v2477 = vsub.s32 %v2474, %v2476
      %v2478 = vrot.slane %v2470, %v2477
      %v2480 = vunpack.c.l.s4 1983009808
      %v2481 = vunpack.c.0.s8 %v2480
      %v2482 = vlaneseq
      %v2483 = vshrl.u32 %v2482, 7
      %v2484 = vsub.s32 %v2481, %v2483
      %v2485 = vrot.slane %v2471, %v2484
      %v2486 = vcombine.low %v2005, %v2013
      %v2487 = vcombine.high %v2005, %v2013
      %v2489 = vunpack.c.l.s4 1983009808
      %v2490 = vunpack.c.0.s8 %v2489
      %v2491 = vlaneseq
      %v2492 = vshrl.u32 %v2491, 7
      %v2493 = vsub.s32 %v2490, %v2492
      %v2494 = vrot.slane %v2486, %v2493
      %v2496 = vunpack.c.l.s4 1983009808
      %v2497 = vunpack.c.0.s8 %v2496
      %v2498 = vlaneseq
      %v2499 = vshrl.u32 %v2498, 7
      %v2500 = vsub.s32 %v2497, %v2499
      %v2501 = vrot.slane %v2487, %v2500
      %v2502 = vcombine.low %v2017, %v2025
      %v2503 = vcombine.high %v2017, %v2025
      %v2505 = vunpack.c.l.s4 1983009808
      %v2506 = vunpack.c.0.s8 %v2505
      %v2507 = vlaneseq
      %v2508 = vshrl.u32 %v2507, 7
      %v2509 = vsub.s32 %v2506, %v2508
      %v2510 = vrot.slane %v2502, %v2509
      %v2512 = vunpack.c.l.s4 1983009808
      %v2513 = vunpack.c.0.s8 %v2512
      %v2514 = vlaneseq
      %v2515 = vshrl.u32 %v2514, 7
      %v2516 = vsub.s32 %v2513, %v2515
      %v2517 = vrot.slane %v2503, %v2516
      %v2518 = vcombine.low %v2021, %v2029
      %v2519 = vcombine.high %v2021, %v2029
      %v2521 = vunpack.c.l.s4 1983009808
      %v2522 = vunpack.c.0.s8 %v2521
      %v2523 = vlaneseq
      %v2524 = vshrl.u32 %v2523, 7
      %v2525 = vsub.s32 %v2522, %v2524
      %v2526 = vrot.slane %v2518, %v2525
      %v2528 = vunpack.c.l.s4 1983009808
      %v2529 = vunpack.c.0.s8 %v2528
      %v2530 = vlaneseq
      %v2531 = vshrl.u32 %v2530, 7
      %v2532 = vsub.s32 %v2529, %v2531
      %v2533 = vrot.slane %v2519, %v2532
      %v2534 = vcombine.low %v2478, %v2494
      %v2535 = vcombine.high %v2478, %v2494
      %v2537 = vunpack.c.l.s4 1934713408
      %v2538 = vunpack.c.0.s8 %v2537
      %v2539 = vlaneseq
      %v2540 = vshrl.u32 %v2539, 7
      %v2541 = vsub.s32 %v2538, %v2540
      %v2542 = vrot.slane %v2534, %v2541
      %v2544 = vunpack.c.l.s4 1934713408
      %v2545 = vunpack.c.0.s8 %v2544
      %v2546 = vlaneseq
      %v2547 = vshrl.u32 %v2546, 7
      %v2548 = vsub.s32 %v2545, %v2547
      %v2549 = vrot.slane %v2535, %v2548
      %v2550 = vcombine.low %v2485, %v2501
      %v2551 = vcombine.high %v2485, %v2501
      %v2553 = vunpack.c.l.s4 1934713408
      %v2554 = vunpack.c.0.s8 %v2553
      %v2555 = vlaneseq
      %v2556 = vshrl.u32 %v2555, 7
      %v2557 = vsub.s32 %v2554, %v2556
      %v2558 = vrot.slane %v2550, %v2557
      %v2560 = vunpack.c.l.s4 1934713408
      %v2561 = vunpack.c.0.s8 %v2560
      %v2562 = vlaneseq
      %v2563 = vshrl.u32 %v2562, 7
      %v2564 = vsub.s32 %v2561, %v2563
      %v2565 = vrot.slane %v2551, %v2564
      %v2566 = vcombine.low %v2510, %v2526
      %v2567 = vcombine.high %v2510, %v2526
      %v2569 = vunpack.c.l.s4 1934713408
      %v2570 = vunpack.c.0.s8 %v2569
      %v2571 = vlaneseq
      %v2572 = vshrl.u32 %v2571, 7
      %v2573 = vsub.s32 %v2570, %v2572
      %v2574 = vrot.slane %v2566, %v2573
      %v2576 = vunpack.c.l.s4 1934713408
      %v2577 = vunpack.c.0.s8 %v2576
      %v2578 = vlaneseq
      %v2579 = vshrl.u32 %v2578, 7
      %v2580 = vsub.s32 %v2577, %v2579
      %v2581 = vrot.slane %v2567, %v2580
      %v2582 = vcombine.low %v2517, %v2533
      %v2583 = vcombine.high %v2517, %v2533
      %v2585 = vunpack.c.l.s4 1934713408
      %v2586 = vunpack.c.0.s8 %v2585
      %v2587 = vlaneseq
      %v2588 = vshrl.u32 %v2587, 7
      %v2589 = vsub.s32 %v2586, %v2588
      %v2590 = vrot.slane %v2582, %v2589
      %v2592 = vunpack.c.l.s4 1934713408
      %v2593 = vunpack.c.0.s8 %v2592
      %v2594 = vlaneseq
      %v2595 = vshrl.u32 %v2594, 7
      %v2596 = vsub.s32 %v2593, %v2595
      %v2597 = vrot.slane %v2583, %v2596
      %v2598 = vcombine.low %v2542, %v2574
      %v2599 = vcombine.high %v2542, %v2574
      %v2600 = vcombine.low %v2549, %v2581
      %v2601 = vcombine.high %v2549, %v2581
      %v2602 = vcombine.low %v2558, %v2590
      %v2603 = vcombine.high %v2558, %v2590
      %v2604 = vcombine.low %v2565, %v2597
      %v2605 = vcombine.high %v2565, %v2597
      %2608 = vrot.lane.b32.xlu0 %v2191, 16
      %v2609 = vpop.permute.xlu0 %2608
      %2610 = vrot.lane.b32.xlu0 %v2327, 16
      %v2611 = vpop.permute.xlu0 %2610
      %2616 = vrot.lane.b32.xlu0 %v2192, 32
      %v2617 = vpop.permute.xlu0 %2616
      %2618 = vrot.lane.b32.xlu0 %v2328, 32
      %v2619 = vpop.permute.xlu0 %2618
      %2624 = vrot.lane.b32.xlu0 %v2193, 48
      %v2625 = vpop.permute.xlu0 %2624
      %2626 = vrot.lane.b32.xlu0 %v2329, 48
      %v2627 = vpop.permute.xlu0 %2626
      %2632 = vrot.lane.b32.xlu0 %v2194, 64
      %v2633 = vpop.permute.xlu0 %2632
      %2634 = vrot.lane.b32.xlu0 %v2330, 64
      %v2635 = vpop.permute.xlu0 %2634
      %2640 = vrot.lane.b32.xlu0 %v2195, 80
      %v2641 = vpop.permute.xlu0 %2640
      %2642 = vrot.lane.b32.xlu0 %v2331, 80
      %v2643 = vpop.permute.xlu0 %2642
      %2648 = vrot.lane.b32.xlu0 %v2196, 96
      %v2649 = vpop.permute.xlu0 %2648
      %2650 = vrot.lane.b32.xlu0 %v2332, 96
      %v2651 = vpop.permute.xlu0 %2650
      %2656 = vrot.lane.b32.xlu0 %v2197, 112
      %v2657 = vpop.permute.xlu0 %2656
      %2658 = vrot.lane.b32.xlu0 %v2333, 112
      %v2659 = vpop.permute.xlu0 %2658
      %2664 = vrot.lane.b32.xlu0 %v2463, 16
      %v2665 = vpop.permute.xlu0 %2664
      %2666 = vrot.lane.b32.xlu0 %v2599, 16
      %v2667 = vpop.permute.xlu0 %2666
      %2672 = vrot.lane.b32.xlu0 %v2464, 32
      %v2673 = vpop.permute.xlu0 %2672
      %2674 = vrot.lane.b32.xlu0 %v2600, 32
      %v2675 = vpop.permute.xlu0 %2674
      %2680 = vrot.lane.b32.xlu0 %v2465, 48
      %v2681 = vpop.permute.xlu0 %2680
      %2682 = vrot.lane.b32.xlu0 %v2601, 48
      %v2683 = vpop.permute.xlu0 %2682
      %2688 = vrot.lane.b32.xlu0 %v2466, 64
      %v2689 = vpop.permute.xlu0 %2688
      %2690 = vrot.lane.b32.xlu0 %v2602, 64
      %v2691 = vpop.permute.xlu0 %2690
      %2696 = vrot.lane.b32.xlu0 %v2467, 80
      %v2697 = vpop.permute.xlu0 %2696
      %2698 = vrot.lane.b32.xlu0 %v2603, 80
      %v2699 = vpop.permute.xlu0 %2698
      %2704 = vrot.lane.b32.xlu0 %v2468, 96
      %v2705 = vpop.permute.xlu0 %2704
      %2706 = vrot.lane.b32.xlu0 %v2604, 96
      %v2707 = vpop.permute.xlu0 %2706
      %2712 = vrot.lane.b32.xlu0 %v2469, 112
      %v2713 = vpop.permute.xlu0 %2712
      %2714 = vrot.lane.b32.xlu0 %v2605, 112
      %v2715 = vpop.permute.xlu0 %2714
      %v2718 = vsel %vm1015, %v2190, %v2609
      %v2719 = vsel %vm1015, %v2326, %v2611
      %v2720 = vsel %vm1018, %v2718, %v2617
      %v2721 = vsel %vm1018, %v2719, %v2619
      %v2722 = vsel %vm1021, %v2720, %v2625
      %v2723 = vsel %vm1021, %v2721, %v2627
      %v2724 = vsel %vm1024, %v2722, %v2633
      %v2725 = vsel %vm1024, %v2723, %v2635
      %v2726 = vsel %vm1027, %v2724, %v2641
      %v2727 = vsel %vm1027, %v2725, %v2643
      %v2728 = vsel %vm1030, %v2726, %v2649
      %v2729 = vsel %vm1030, %v2727, %v2651
      %v2730 = vsel %vm1033, %v2728, %v2657
      %v2731 = vsel %vm1033, %v2729, %v2659
      %v2732 = vsel %vm1015, %v2462, %v2665
      %v2733 = vsel %vm1015, %v2598, %v2667
      %v2734 = vsel %vm1018, %v2732, %v2673
      %v2735 = vsel %vm1018, %v2733, %v2675
      %v2736 = vsel %vm1021, %v2734, %v2681
      %v2737 = vsel %vm1021, %v2735, %v2683
      %v2738 = vsel %vm1024, %v2736, %v2689
      %v2739 = vsel %vm1024, %v2737, %v2691
      %v2740 = vsel %vm1027, %v2738, %v2697
      %v2741 = vsel %vm1027, %v2739, %v2699
      %v2742 = vsel %vm1030, %v2740, %v2705
      %v2743 = vsel %vm1030, %v2741, %v2707
      %v2744 = vsel %vm1033, %v2742, %v2713
      %v2745 = vsel %vm1033, %v2743, %v2715
      %v2746 = vpack.c.bf16 %v2731, %v2730
      %v2747 = vpack.c.bf16 %v2745, %v2744
      %2748 = vst [vmem:[#allocation3 + $0x20] sm:$0xff] %v2746
      %2749 = vst [vmem:[#allocation3 + $0x28] sm:$0xff] %v2747
      %v2750 = vld [vmem:[#allocation2 + $0x1] sm:$0xff]
      %v2751 = vld [vmem:[#allocation2 + $0x9] sm:$0xff]
      %v2752 = vld [vmem:[#allocation2 + $0x19] sm:$0xff]
      %v2753 = vld [vmem:[#allocation2 + $0x21] sm:$0xff]
      %v2754 = vld [vmem:[#allocation2 + $0x31] sm:$0xff]
      %v2755 = vld [vmem:[#allocation2 + $0x39] sm:$0xff]
      %v2756 = vld [vmem:[#allocation2 + $0x49] sm:$0xff]
      %v2757 = vld [vmem:[#allocation2 + $0x51] sm:$0xff]
      %v2758 = vld [vmem:[#allocation2 + $0x61] sm:$0xff]
      %v2759 = vld [vmem:[#allocation2 + $0x69] sm:$0xff]
      %v2760 = vld [vmem:[#allocation2 + $0x79] sm:$0xff]
      %v2761 = vld [vmem:[#allocation2 + $0x81] sm:$0xff]
      %v2762 = vld [vmem:[#allocation2 + $0x91] sm:$0xff]
      %v2763 = vld [vmem:[#allocation2 + $0x99] sm:$0xff]
      %v2764 = vld [vmem:[#allocation2 + $0xa9] sm:$0xff]
      %v2765 = vld [vmem:[#allocation2 + $0xb1] sm:$0xff]
      %v2766 = vld [vmem:[#allocation2 + $0xc1] sm:$0xff]
      %v2767 = vld [vmem:[#allocation2 + $0xc9] sm:$0xff]
      %v2768 = vld [vmem:[#allocation2 + $0xd9] sm:$0xff]
      %v2769 = vld [vmem:[#allocation2 + $0xe1] sm:$0xff]
      %v2770 = vld [vmem:[#allocation2 + $0xf1] sm:$0xff]
      %v2771 = vld [vmem:[#allocation2 + $0xf9] sm:$0xff]
      %v2772 = vld [vmem:[#allocation2 + $0x109] sm:$0xff]
      %v2773 = vld [vmem:[#allocation2 + $0x111] sm:$0xff]
      %v2774 = vld [vmem:[#allocation2 + $0x121] sm:$0xff]
      %v2775 = vld [vmem:[#allocation2 + $0x129] sm:$0xff]
      %v2776 = vld [vmem:[#allocation2 + $0x139] sm:$0xff]
      %v2777 = vld [vmem:[#allocation2 + $0x141] sm:$0xff]
      %v2778 = vld [vmem:[#allocation2 + $0x151] sm:$0xff]
      %v2779 = vld [vmem:[#allocation2 + $0x159] sm:$0xff]
      %v2780 = vld [vmem:[#allocation2 + $0x169] sm:$0xff]
      %v2781 = vld [vmem:[#allocation2 + $0x171] sm:$0xff]
      %v2782 = vcombine.low %v2750, %v2754
      %v2783 = vcombine.high %v2750, %v2754
      %v2785 = vunpack.c.l.s4 1983009808
      %v2786 = vunpack.c.0.s8 %v2785
      %v2787 = vlaneseq
      %v2788 = vshrl.u32 %v2787, 7
      %v2789 = vsub.s32 %v2786, %v2788
      %v2790 = vrot.slane %v2782, %v2789
      %v2792 = vunpack.c.l.s4 1983009808
      %v2793 = vunpack.c.0.s8 %v2792
      %v2794 = vlaneseq
      %v2795 = vshrl.u32 %v2794, 7
      %v2796 = vsub.s32 %v2793, %v2795
      %v2797 = vrot.slane %v2783, %v2796
      %v2798 = vcombine.low %v2752, %v2756
      %v2799 = vcombine.high %v2752, %v2756
      %v2801 = vunpack.c.l.s4 1983009808
      %v2802 = vunpack.c.0.s8 %v2801
      %v2803 = vlaneseq
      %v2804 = vshrl.u32 %v2803, 7
      %v2805 = vsub.s32 %v2802, %v2804
      %v2806 = vrot.slane %v2798, %v2805
      %v2808 = vunpack.c.l.s4 1983009808
      %v2809 = vunpack.c.0.s8 %v2808
      %v2810 = vlaneseq
      %v2811 = vshrl.u32 %v2810, 7
      %v2812 = vsub.s32 %v2809, %v2811
      %v2813 = vrot.slane %v2799, %v2812
      %v2814 = vcombine.low %v2758, %v2762
      %v2815 = vcombine.high %v2758, %v2762
      %v2817 = vunpack.c.l.s4 1983009808
      %v2818 = vunpack.c.0.s8 %v2817
      %v2819 = vlaneseq
      %v2820 = vshrl.u32 %v2819, 7
      %v2821 = vsub.s32 %v2818, %v2820
      %v2822 = vrot.slane %v2814, %v2821
      %v2824 = vunpack.c.l.s4 1983009808
      %v2825 = vunpack.c.0.s8 %v2824
      %v2826 = vlaneseq
      %v2827 = vshrl.u32 %v2826, 7
      %v2828 = vsub.s32 %v2825, %v2827
      %v2829 = vrot.slane %v2815, %v2828
      %v2830 = vcombine.low %v2760, %v2764
      %v2831 = vcombine.high %v2760, %v2764
      %v2833 = vunpack.c.l.s4 1983009808
      %v2834 = vunpack.c.0.s8 %v2833
      %v2835 = vlaneseq
      %v2836 = vshrl.u32 %v2835, 7
      %v2837 = vsub.s32 %v2834, %v2836
      %v2838 = vrot.slane %v2830, %v2837
      %v2840 = vunpack.c.l.s4 1983009808
      %v2841 = vunpack.c.0.s8 %v2840
      %v2842 = vlaneseq
      %v2843 = vshrl.u32 %v2842, 7
      %v2844 = vsub.s32 %v2841, %v2843
      %v2845 = vrot.slane %v2831, %v2844
      %v2846 = vcombine.low %v2790, %v2806
      %v2847 = vcombine.high %v2790, %v2806
      %v2849 = vunpack.c.l.s4 1934713408
      %v2850 = vunpack.c.0.s8 %v2849
      %v2851 = vlaneseq
      %v2852 = vshrl.u32 %v2851, 7
      %v2853 = vsub.s32 %v2850, %v2852
      %v2854 = vrot.slane %v2846, %v2853
      %v2856 = vunpack.c.l.s4 1934713408
      %v2857 = vunpack.c.0.s8 %v2856
      %v2858 = vlaneseq
      %v2859 = vshrl.u32 %v2858, 7
      %v2860 = vsub.s32 %v2857, %v2859
      %v2861 = vrot.slane %v2847, %v2860
      %v2862 = vcombine.low %v2797, %v2813
      %v2863 = vcombine.high %v2797, %v2813
      %v2865 = vunpack.c.l.s4 1934713408
      %v2866 = vunpack.c.0.s8 %v2865
      %v2867 = vlaneseq
      %v2868 = vshrl.u32 %v2867, 7
      %v2869 = vsub.s32 %v2866, %v2868
      %v2870 = vrot.slane %v2862, %v2869
      %v2872 = vunpack.c.l.s4 1934713408
      %v2873 = vunpack.c.0.s8 %v2872
      %v2874 = vlaneseq
      %v2875 = vshrl.u32 %v2874, 7
      %v2876 = vsub.s32 %v2873, %v2875
      %v2877 = vrot.slane %v2863, %v2876
      %v2878 = vcombine.low %v2822, %v2838
      %v2879 = vcombine.high %v2822, %v2838
      %v2881 = vunpack.c.l.s4 1934713408
      %v2882 = vunpack.c.0.s8 %v2881
      %v2883 = vlaneseq
      %v2884 = vshrl.u32 %v2883, 7
      %v2885 = vsub.s32 %v2882, %v2884
      %v2886 = vrot.slane %v2878, %v2885
      %v2888 = vunpack.c.l.s4 1934713408
      %v2889 = vunpack.c.0.s8 %v2888
      %v2890 = vlaneseq
      %v2891 = vshrl.u32 %v2890, 7
      %v2892 = vsub.s32 %v2889, %v2891
      %v2893 = vrot.slane %v2879, %v2892
      %v2894 = vcombine.low %v2829, %v2845
      %v2895 = vcombine.high %v2829, %v2845
      %v2897 = vunpack.c.l.s4 1934713408
      %v2898 = vunpack.c.0.s8 %v2897
      %v2899 = vlaneseq
      %v2900 = vshrl.u32 %v2899, 7
      %v2901 = vsub.s32 %v2898, %v2900
      %v2902 = vrot.slane %v2894, %v2901
      %v2904 = vunpack.c.l.s4 1934713408
      %v2905 = vunpack.c.0.s8 %v2904
      %v2906 = vlaneseq
      %v2907 = vshrl.u32 %v2906, 7
      %v2908 = vsub.s32 %v2905, %v2907
      %v2909 = vrot.slane %v2895, %v2908
      %v2910 = vcombine.low %v2854, %v2886
      %v2911 = vcombine.high %v2854, %v2886
      %v2912 = vcombine.low %v2861, %v2893
      %v2913 = vcombine.high %v2861, %v2893
      %v2914 = vcombine.low %v2870, %v2902
      %v2915 = vcombine.high %v2870, %v2902
      %v2916 = vcombine.low %v2877, %v2909
      %v2917 = vcombine.high %v2877, %v2909
      %v2918 = vcombine.low %v2766, %v2770
      %v2919 = vcombine.high %v2766, %v2770
      %v2921 = vunpack.c.l.s4 1983009808
      %v2922 = vunpack.c.0.s8 %v2921
      %v2923 = vlaneseq
      %v2924 = vshrl.u32 %v2923, 7
      %v2925 = vsub.s32 %v2922, %v2924
      %v2926 = vrot.slane %v2918, %v2925
      %v2928 = vunpack.c.l.s4 1983009808
      %v2929 = vunpack.c.0.s8 %v2928
      %v2930 = vlaneseq
      %v2931 = vshrl.u32 %v2930, 7
      %v2932 = vsub.s32 %v2929, %v2931
      %v2933 = vrot.slane %v2919, %v2932
      %v2934 = vcombine.low %v2768, %v2772
      %v2935 = vcombine.high %v2768, %v2772
      %v2937 = vunpack.c.l.s4 1983009808
      %v2938 = vunpack.c.0.s8 %v2937
      %v2939 = vlaneseq
      %v2940 = vshrl.u32 %v2939, 7
      %v2941 = vsub.s32 %v2938, %v2940
      %v2942 = vrot.slane %v2934, %v2941
      %v2944 = vunpack.c.l.s4 1983009808
      %v2945 = vunpack.c.0.s8 %v2944
      %v2946 = vlaneseq
      %v2947 = vshrl.u32 %v2946, 7
      %v2948 = vsub.s32 %v2945, %v2947
      %v2949 = vrot.slane %v2935, %v2948
      %v2950 = vcombine.low %v2774, %v2778
      %v2951 = vcombine.high %v2774, %v2778
      %v2953 = vunpack.c.l.s4 1983009808
      %v2954 = vunpack.c.0.s8 %v2953
      %v2955 = vlaneseq
      %v2956 = vshrl.u32 %v2955, 7
      %v2957 = vsub.s32 %v2954, %v2956
      %v2958 = vrot.slane %v2950, %v2957
      %v2960 = vunpack.c.l.s4 1983009808
      %v2961 = vunpack.c.0.s8 %v2960
      %v2962 = vlaneseq
      %v2963 = vshrl.u32 %v2962, 7
      %v2964 = vsub.s32 %v2961, %v2963
      %v2965 = vrot.slane %v2951, %v2964
      %v2966 = vcombine.low %v2776, %v2780
      %v2967 = vcombine.high %v2776, %v2780
      %v2969 = vunpack.c.l.s4 1983009808
      %v2970 = vunpack.c.0.s8 %v2969
      %v2971 = vlaneseq
      %v2972 = vshrl.u32 %v2971, 7
      %v2973 = vsub.s32 %v2970, %v2972
      %v2974 = vrot.slane %v2966, %v2973
      %v2976 = vunpack.c.l.s4 1983009808
      %v2977 = vunpack.c.0.s8 %v2976
      %v2978 = vlaneseq
      %v2979 = vshrl.u32 %v2978, 7
      %v2980 = vsub.s32 %v2977, %v2979
      %v2981 = vrot.slane %v2967, %v2980
      %v2982 = vcombine.low %v2926, %v2942
      %v2983 = vcombine.high %v2926, %v2942
      %v2985 = vunpack.c.l.s4 1934713408
      %v2986 = vunpack.c.0.s8 %v2985
      %v2987 = vlaneseq
      %v2988 = vshrl.u32 %v2987, 7
      %v2989 = vsub.s32 %v2986, %v2988
      %v2990 = vrot.slane %v2982, %v2989
      %v2992 = vunpack.c.l.s4 1934713408
      %v2993 = vunpack.c.0.s8 %v2992
      %v2994 = vlaneseq
      %v2995 = vshrl.u32 %v2994, 7
      %v2996 = vsub.s32 %v2993, %v2995
      %v2997 = vrot.slane %v2983, %v2996
      %v2998 = vcombine.low %v2933, %v2949
      %v2999 = vcombine.high %v2933, %v2949
      %v3001 = vunpack.c.l.s4 1934713408
      %v3002 = vunpack.c.0.s8 %v3001
      %v3003 = vlaneseq
      %v3004 = vshrl.u32 %v3003, 7
      %v3005 = vsub.s32 %v3002, %v3004
      %v3006 = vrot.slane %v2998, %v3005
      %v3008 = vunpack.c.l.s4 1934713408
      %v3009 = vunpack.c.0.s8 %v3008
      %v3010 = vlaneseq
      %v3011 = vshrl.u32 %v3010, 7
      %v3012 = vsub.s32 %v3009, %v3011
      %v3013 = vrot.slane %v2999, %v3012
      %v3014 = vcombine.low %v2958, %v2974
      %v3015 = vcombine.high %v2958, %v2974
      %v3017 = vunpack.c.l.s4 1934713408
      %v3018 = vunpack.c.0.s8 %v3017
      %v3019 = vlaneseq
      %v3020 = vshrl.u32 %v3019, 7
      %v3021 = vsub.s32 %v3018, %v3020
      %v3022 = vrot.slane %v3014, %v3021
      %v3024 = vunpack.c.l.s4 1934713408
      %v3025 = vunpack.c.0.s8 %v3024
      %v3026 = vlaneseq
      %v3027 = vshrl.u32 %v3026, 7
      %v3028 = vsub.s32 %v3025, %v3027
      %v3029 = vrot.slane %v3015, %v3028
      %v3030 = vcombine.low %v2965, %v2981
      %v3031 = vcombine.high %v2965, %v2981
      %v3033 = vunpack.c.l.s4 1934713408
      %v3034 = vunpack.c.0.s8 %v3033
      %v3035 = vlaneseq
      %v3036 = vshrl.u32 %v3035, 7
      %v3037 = vsub.s32 %v3034, %v3036
      %v3038 = vrot.slane %v3030, %v3037
      %v3040 = vunpack.c.l.s4 1934713408
      %v3041 = vunpack.c.0.s8 %v3040
      %v3042 = vlaneseq
      %v3043 = vshrl.u32 %v3042, 7
      %v3044 = vsub.s32 %v3041, %v3043
      %v3045 = vrot.slane %v3031, %v3044
      %v3046 = vcombine.low %v2990, %v3022
      %v3047 = vcombine.high %v2990, %v3022
      %v3048 = vcombine.low %v2997, %v3029
      %v3049 = vcombine.high %v2997, %v3029
      %v3050 = vcombine.low %v3006, %v3038
      %v3051 = vcombine.high %v3006, %v3038
      %v3052 = vcombine.low %v3013, %v3045
      %v3053 = vcombine.high %v3013, %v3045
      %v3054 = vcombine.low %v2751, %v2755
      %v3055 = vcombine.high %v2751, %v2755
      %v3057 = vunpack.c.l.s4 1983009808
      %v3058 = vunpack.c.0.s8 %v3057
      %v3059 = vlaneseq
      %v3060 = vshrl.u32 %v3059, 7
      %v3061 = vsub.s32 %v3058, %v3060
      %v3062 = vrot.slane %v3054, %v3061
      %v3064 = vunpack.c.l.s4 1983009808
      %v3065 = vunpack.c.0.s8 %v3064
      %v3066 = vlaneseq
      %v3067 = vshrl.u32 %v3066, 7
      %v3068 = vsub.s32 %v3065, %v3067
      %v3069 = vrot.slane %v3055, %v3068
      %v3070 = vcombine.low %v2753, %v2757
      %v3071 = vcombine.high %v2753, %v2757
      %v3073 = vunpack.c.l.s4 1983009808
      %v3074 = vunpack.c.0.s8 %v3073
      %v3075 = vlaneseq
      %v3076 = vshrl.u32 %v3075, 7
      %v3077 = vsub.s32 %v3074, %v3076
      %v3078 = vrot.slane %v3070, %v3077
      %v3080 = vunpack.c.l.s4 1983009808
      %v3081 = vunpack.c.0.s8 %v3080
      %v3082 = vlaneseq
      %v3083 = vshrl.u32 %v3082, 7
      %v3084 = vsub.s32 %v3081, %v3083
      %v3085 = vrot.slane %v3071, %v3084
      %v3086 = vcombine.low %v2759, %v2763
      %v3087 = vcombine.high %v2759, %v2763
      %v3089 = vunpack.c.l.s4 1983009808
      %v3090 = vunpack.c.0.s8 %v3089
      %v3091 = vlaneseq
      %v3092 = vshrl.u32 %v3091, 7
      %v3093 = vsub.s32 %v3090, %v3092
      %v3094 = vrot.slane %v3086, %v3093
      %v3096 = vunpack.c.l.s4 1983009808
      %v3097 = vunpack.c.0.s8 %v3096
      %v3098 = vlaneseq
      %v3099 = vshrl.u32 %v3098, 7
      %v3100 = vsub.s32 %v3097, %v3099
      %v3101 = vrot.slane %v3087, %v3100
      %v3102 = vcombine.low %v2761, %v2765
      %v3103 = vcombine.high %v2761, %v2765
      %v3105 = vunpack.c.l.s4 1983009808
      %v3106 = vunpack.c.0.s8 %v3105
      %v3107 = vlaneseq
      %v3108 = vshrl.u32 %v3107, 7
      %v3109 = vsub.s32 %v3106, %v3108
      %v3110 = vrot.slane %v3102, %v3109
      %v3112 = vunpack.c.l.s4 1983009808
      %v3113 = vunpack.c.0.s8 %v3112
      %v3114 = vlaneseq
      %v3115 = vshrl.u32 %v3114, 7
      %v3116 = vsub.s32 %v3113, %v3115
      %v3117 = vrot.slane %v3103, %v3116
      %v3118 = vcombine.low %v3062, %v3078
      %v3119 = vcombine.high %v3062, %v3078
      %v3121 = vunpack.c.l.s4 1934713408
      %v3122 = vunpack.c.0.s8 %v3121
      %v3123 = vlaneseq
      %v3124 = vshrl.u32 %v3123, 7
      %v3125 = vsub.s32 %v3122, %v3124
      %v3126 = vrot.slane %v3118, %v3125
      %v3128 = vunpack.c.l.s4 1934713408
      %v3129 = vunpack.c.0.s8 %v3128
      %v3130 = vlaneseq
      %v3131 = vshrl.u32 %v3130, 7
      %v3132 = vsub.s32 %v3129, %v3131
      %v3133 = vrot.slane %v3119, %v3132
      %v3134 = vcombine.low %v3069, %v3085
      %v3135 = vcombine.high %v3069, %v3085
      %v3137 = vunpack.c.l.s4 1934713408
      %v3138 = vunpack.c.0.s8 %v3137
      %v3139 = vlaneseq
      %v3140 = vshrl.u32 %v3139, 7
      %v3141 = vsub.s32 %v3138, %v3140
      %v3142 = vrot.slane %v3134, %v3141
      %v3144 = vunpack.c.l.s4 1934713408
      %v3145 = vunpack.c.0.s8 %v3144
      %v3146 = vlaneseq
      %v3147 = vshrl.u32 %v3146, 7
      %v3148 = vsub.s32 %v3145, %v3147
      %v3149 = vrot.slane %v3135, %v3148
      %v3150 = vcombine.low %v3094, %v3110
      %v3151 = vcombine.high %v3094, %v3110
      %v3153 = vunpack.c.l.s4 1934713408
      %v3154 = vunpack.c.0.s8 %v3153
      %v3155 = vlaneseq
      %v3156 = vshrl.u32 %v3155, 7
      %v3157 = vsub.s32 %v3154, %v3156
      %v3158 = vrot.slane %v3150, %v3157
      %v3160 = vunpack.c.l.s4 1934713408
      %v3161 = vunpack.c.0.s8 %v3160
      %v3162 = vlaneseq
      %v3163 = vshrl.u32 %v3162, 7
      %v3164 = vsub.s32 %v3161, %v3163
      %v3165 = vrot.slane %v3151, %v3164
      %v3166 = vcombine.low %v3101, %v3117
      %v3167 = vcombine.high %v3101, %v3117
      %v3169 = vunpack.c.l.s4 1934713408
      %v3170 = vunpack.c.0.s8 %v3169
      %v3171 = vlaneseq
      %v3172 = vshrl.u32 %v3171, 7
      %v3173 = vsub.s32 %v3170, %v3172
      %v3174 = vrot.slane %v3166, %v3173
      %v3176 = vunpack.c.l.s4 1934713408
      %v3177 = vunpack.c.0.s8 %v3176
      %v3178 = vlaneseq
      %v3179 = vshrl.u32 %v3178, 7
      %v3180 = vsub.s32 %v3177, %v3179
      %v3181 = vrot.slane %v3167, %v3180
      %v3182 = vcombine.low %v3126, %v3158
      %v3183 = vcombine.high %v3126, %v3158
      %v3184 = vcombine.low %v3133, %v3165
      %v3185 = vcombine.high %v3133, %v3165
      %v3186 = vcombine.low %v3142, %v3174
      %v3187 = vcombine.high %v3142, %v3174
      %v3188 = vcombine.low %v3149, %v3181
      %v3189 = vcombine.high %v3149, %v3181
      %v3190 = vcombine.low %v2767, %v2771
      %v3191 = vcombine.high %v2767, %v2771
      %v3193 = vunpack.c.l.s4 1983009808
      %v3194 = vunpack.c.0.s8 %v3193
      %v3195 = vlaneseq
      %v3196 = vshrl.u32 %v3195, 7
      %v3197 = vsub.s32 %v3194, %v3196
      %v3198 = vrot.slane %v3190, %v3197
      %v3200 = vunpack.c.l.s4 1983009808
      %v3201 = vunpack.c.0.s8 %v3200
      %v3202 = vlaneseq
      %v3203 = vshrl.u32 %v3202, 7
      %v3204 = vsub.s32 %v3201, %v3203
      %v3205 = vrot.slane %v3191, %v3204
      %v3206 = vcombine.low %v2769, %v2773
      %v3207 = vcombine.high %v2769, %v2773
      %v3209 = vunpack.c.l.s4 1983009808
      %v3210 = vunpack.c.0.s8 %v3209
      %v3211 = vlaneseq
      %v3212 = vshrl.u32 %v3211, 7
      %v3213 = vsub.s32 %v3210, %v3212
      %v3214 = vrot.slane %v3206, %v3213
      %v3216 = vunpack.c.l.s4 1983009808
      %v3217 = vunpack.c.0.s8 %v3216
      %v3218 = vlaneseq
      %v3219 = vshrl.u32 %v3218, 7
      %v3220 = vsub.s32 %v3217, %v3219
      %v3221 = vrot.slane %v3207, %v3220
      %v3222 = vcombine.low %v2775, %v2779
      %v3223 = vcombine.high %v2775, %v2779
      %v3225 = vunpack.c.l.s4 1983009808
      %v3226 = vunpack.c.0.s8 %v3225
      %v3227 = vlaneseq
      %v3228 = vshrl.u32 %v3227, 7
      %v3229 = vsub.s32 %v3226, %v3228
      %v3230 = vrot.slane %v3222, %v3229
      %v3232 = vunpack.c.l.s4 1983009808
      %v3233 = vunpack.c.0.s8 %v3232
      %v3234 = vlaneseq
      %v3235 = vshrl.u32 %v3234, 7
      %v3236 = vsub.s32 %v3233, %v3235
      %v3237 = vrot.slane %v3223, %v3236
      %v3238 = vcombine.low %v2777, %v2781
      %v3239 = vcombine.high %v2777, %v2781
      %v3241 = vunpack.c.l.s4 1983009808
      %v3242 = vunpack.c.0.s8 %v3241
      %v3243 = vlaneseq
      %v3244 = vshrl.u32 %v3243, 7
      %v3245 = vsub.s32 %v3242, %v3244
      %v3246 = vrot.slane %v3238, %v3245
      %v3248 = vunpack.c.l.s4 1983009808
      %v3249 = vunpack.c.0.s8 %v3248
      %v3250 = vlaneseq
      %v3251 = vshrl.u32 %v3250, 7
      %v3252 = vsub.s32 %v3249, %v3251
      %v3253 = vrot.slane %v3239, %v3252
      %v3254 = vcombine.low %v3198, %v3214
      %v3255 = vcombine.high %v3198, %v3214
      %v3257 = vunpack.c.l.s4 1934713408
      %v3258 = vunpack.c.0.s8 %v3257
      %v3259 = vlaneseq
      %v3260 = vshrl.u32 %v3259, 7
      %v3261 = vsub.s32 %v3258, %v3260
      %v3262 = vrot.slane %v3254, %v3261
      %v3264 = vunpack.c.l.s4 1934713408
      %v3265 = vunpack.c.0.s8 %v3264
      %v3266 = vlaneseq
      %v3267 = vshrl.u32 %v3266, 7
      %v3268 = vsub.s32 %v3265, %v3267
      %v3269 = vrot.slane %v3255, %v3268
      %v3270 = vcombine.low %v3205, %v3221
      %v3271 = vcombine.high %v3205, %v3221
      %v3273 = vunpack.c.l.s4 1934713408
      %v3274 = vunpack.c.0.s8 %v3273
      %v3275 = vlaneseq
      %v3276 = vshrl.u32 %v3275, 7
      %v3277 = vsub.s32 %v3274, %v3276
      %v3278 = vrot.slane %v3270, %v3277
      %v3280 = vunpack.c.l.s4 1934713408
      %v3281 = vunpack.c.0.s8 %v3280
      %v3282 = vlaneseq
      %v3283 = vshrl.u32 %v3282, 7
      %v3284 = vsub.s32 %v3281, %v3283
      %v3285 = vrot.slane %v3271, %v3284
      %v3286 = vcombine.low %v3230, %v3246
      %v3287 = vcombine.high %v3230, %v3246
      %v3289 = vunpack.c.l.s4 1934713408
      %v3290 = vunpack.c.0.s8 %v3289
      %v3291 = vlaneseq
      %v3292 = vshrl.u32 %v3291, 7
      %v3293 = vsub.s32 %v3290, %v3292
      %v3294 = vrot.slane %v3286, %v3293
      %v3296 = vunpack.c.l.s4 1934713408
      %v3297 = vunpack.c.0.s8 %v3296
      %v3298 = vlaneseq
      %v3299 = vshrl.u32 %v3298, 7
      %v3300 = vsub.s32 %v3297, %v3299
      %v3301 = vrot.slane %v3287, %v3300
      %v3302 = vcombine.low %v3237, %v3253
      %v3303 = vcombine.high %v3237, %v3253
      %v3305 = vunpack.c.l.s4 1934713408
      %v3306 = vunpack.c.0.s8 %v3305
      %v3307 = vlaneseq
      %v3308 = vshrl.u32 %v3307, 7
      %v3309 = vsub.s32 %v3306, %v3308
      %v3310 = vrot.slane %v3302, %v3309
      %v3312 = vunpack.c.l.s4 1934713408
      %v3313 = vunpack.c.0.s8 %v3312
      %v3314 = vlaneseq
      %v3315 = vshrl.u32 %v3314, 7
      %v3316 = vsub.s32 %v3313, %v3315
      %v3317 = vrot.slane %v3303, %v3316
      %v3318 = vcombine.low %v3262, %v3294
      %v3319 = vcombine.high %v3262, %v3294
      %v3320 = vcombine.low %v3269, %v3301
      %v3321 = vcombine.high %v3269, %v3301
      %v3322 = vcombine.low %v3278, %v3310
      %v3323 = vcombine.high %v3278, %v3310
      %v3324 = vcombine.low %v3285, %v3317
      %v3325 = vcombine.high %v3285, %v3317
      %3328 = vrot.lane.b32.xlu0 %v2911, 16
      %v3329 = vpop.permute.xlu0 %3328
      %3330 = vrot.lane.b32.xlu0 %v3047, 16
      %v3331 = vpop.permute.xlu0 %3330
      %3336 = vrot.lane.b32.xlu0 %v2912, 32
      %v3337 = vpop.permute.xlu0 %3336
      %3338 = vrot.lane.b32.xlu0 %v3048, 32
      %v3339 = vpop.permute.xlu0 %3338
      %3344 = vrot.lane.b32.xlu0 %v2913, 48
      %v3345 = vpop.permute.xlu0 %3344
      %3346 = vrot.lane.b32.xlu0 %v3049, 48
      %v3347 = vpop.permute.xlu0 %3346
      %3352 = vrot.lane.b32.xlu0 %v2914, 64
      %v3353 = vpop.permute.xlu0 %3352
      %3354 = vrot.lane.b32.xlu0 %v3050, 64
      %v3355 = vpop.permute.xlu0 %3354
      %3360 = vrot.lane.b32.xlu0 %v2915, 80
      %v3361 = vpop.permute.xlu0 %3360
      %3362 = vrot.lane.b32.xlu0 %v3051, 80
      %v3363 = vpop.permute.xlu0 %3362
      %3368 = vrot.lane.b32.xlu0 %v2916, 96
      %v3369 = vpop.permute.xlu0 %3368
      %3370 = vrot.lane.b32.xlu0 %v3052, 96
      %v3371 = vpop.permute.xlu0 %3370
      %3376 = vrot.lane.b32.xlu0 %v2917, 112
      %v3377 = vpop.permute.xlu0 %3376
      %3378 = vrot.lane.b32.xlu0 %v3053, 112
      %v3379 = vpop.permute.xlu0 %3378
      %3384 = vrot.lane.b32.xlu0 %v3183, 16
      %v3385 = vpop.permute.xlu0 %3384
      %3386 = vrot.lane.b32.xlu0 %v3319, 16
      %v3387 = vpop.permute.xlu0 %3386
      %3392 = vrot.lane.b32.xlu0 %v3184, 32
      %v3393 = vpop.permute.xlu0 %3392
      %3394 = vrot.lane.b32.xlu0 %v3320, 32
      %v3395 = vpop.permute.xlu0 %3394
      %3400 = vrot.lane.b32.xlu0 %v3185, 48
      %v3401 = vpop.permute.xlu0 %3400
      %3402 = vrot.lane.b32.xlu0 %v3321, 48
      %v3403 = vpop.permute.xlu0 %3402
      %3408 = vrot.lane.b32.xlu0 %v3186, 64
      %v3409 = vpop.permute.xlu0 %3408
      %3410 = vrot.lane.b32.xlu0 %v3322, 64
      %v3411 = vpop.permute.xlu0 %3410
      %3416 = vrot.lane.b32.xlu0 %v3187, 80
      %v3417 = vpop.permute.xlu0 %3416
      %3418 = vrot.lane.b32.xlu0 %v3323, 80
      %v3419 = vpop.permute.xlu0 %3418
      %3424 = vrot.lane.b32.xlu0 %v3188, 96
      %v3425 = vpop.permute.xlu0 %3424
      %3426 = vrot.lane.b32.xlu0 %v3324, 96
      %v3427 = vpop.permute.xlu0 %3426
      %3432 = vrot.lane.b32.xlu0 %v3189, 112
      %v3433 = vpop.permute.xlu0 %3432
      %3434 = vrot.lane.b32.xlu0 %v3325, 112
      %v3435 = vpop.permute.xlu0 %3434
      %v3438 = vsel %vm1015, %v2910, %v3329
      %v3439 = vsel %vm1015, %v3046, %v3331
      %v3440 = vsel %vm1018, %v3438, %v3337
      %v3441 = vsel %vm1018, %v3439, %v3339
      %v3442 = vsel %vm1021, %v3440, %v3345
      %v3443 = vsel %vm1021, %v3441, %v3347
      %v3444 = vsel %vm1024, %v3442, %v3353
      %v3445 = vsel %vm1024, %v3443, %v3355
      %v3446 = vsel %vm1027, %v3444, %v3361
      %v3447 = vsel %vm1027, %v3445, %v3363
      %v3448 = vsel %vm1030, %v3446, %v3369
      %v3449 = vsel %vm1030, %v3447, %v3371
      %v3450 = vsel %vm1033, %v3448, %v3377
      %v3451 = vsel %vm1033, %v3449, %v3379
      %v3452 = vsel %vm1015, %v3182, %v3385
      %v3453 = vsel %vm1015, %v3318, %v3387
      %v3454 = vsel %vm1018, %v3452, %v3393
      %v3455 = vsel %vm1018, %v3453, %v3395
      %v3456 = vsel %vm1021, %v3454, %v3401
      %v3457 = vsel %vm1021, %v3455, %v3403
      %v3458 = vsel %vm1024, %v3456, %v3409
      %v3459 = vsel %vm1024, %v3457, %v3411
      %v3460 = vsel %vm1027, %v3458, %v3417
      %v3461 = vsel %vm1027, %v3459, %v3419
      %v3462 = vsel %vm1030, %v3460, %v3425
      %v3463 = vsel %vm1030, %v3461, %v3427
      %v3464 = vsel %vm1033, %v3462, %v3433
      %v3465 = vsel %vm1033, %v3463, %v3435
      %v3466 = vpack.c.bf16 %v3451, %v3450
      %v3467 = vpack.c.bf16 %v3465, %v3464
      %3468 = vst [vmem:[#allocation3 + $0x30] sm:$0xff] %v3466
      %3469 = vst [vmem:[#allocation3 + $0x38] sm:$0xff] %v3467
      %v3470 = vld [vmem:[#allocation2 + $0x1] sm:$0xff]
      %v3471 = vld [vmem:[#allocation2 + $0x9] sm:$0xff]
      %v3472 = vld [vmem:[#allocation2 + $0x19] sm:$0xff]
      %v3473 = vld [vmem:[#allocation2 + $0x21] sm:$0xff]
      %v3474 = vld [vmem:[#allocation2 + $0x31] sm:$0xff]
      %v3475 = vld [vmem:[#allocation2 + $0x39] sm:$0xff]
      %v3476 = vld [vmem:[#allocation2 + $0x49] sm:$0xff]
      %v3477 = vld [vmem:[#allocation2 + $0x51] sm:$0xff]
      %v3478 = vld [vmem:[#allocation2 + $0x61] sm:$0xff]
      %v3479 = vld [vmem:[#allocation2 + $0x69] sm:$0xff]
      %v3480 = vld [vmem:[#allocation2 + $0x79] sm:$0xff]
      %v3481 = vld [vmem:[#allocation2 + $0x81] sm:$0xff]
      %v3482 = vld [vmem:[#allocation2 + $0x91] sm:$0xff]
      %v3483 = vld [vmem:[#allocation2 + $0x99] sm:$0xff]
      %v3484 = vld [vmem:[#allocation2 + $0xa9] sm:$0xff]
      %v3485 = vld [vmem:[#allocation2 + $0xb1] sm:$0xff]
      %v3486 = vld [vmem:[#allocation2 + $0xc1] sm:$0xff]
      %v3487 = vld [vmem:[#allocation2 + $0xc9] sm:$0xff]
      %v3488 = vld [vmem:[#allocation2 + $0xd9] sm:$0xff]
      %v3489 = vld [vmem:[#allocation2 + $0xe1] sm:$0xff]
      %v3490 = vld [vmem:[#allocation2 + $0xf1] sm:$0xff]
      %v3491 = vld [vmem:[#allocation2 + $0xf9] sm:$0xff]
      %v3492 = vld [vmem:[#allocation2 + $0x109] sm:$0xff]
      %v3493 = vld [vmem:[#allocation2 + $0x111] sm:$0xff]
      %v3494 = vld [vmem:[#allocation2 + $0x121] sm:$0xff]
      %v3495 = vld [vmem:[#allocation2 + $0x129] sm:$0xff]
      %v3496 = vld [vmem:[#allocation2 + $0x139] sm:$0xff]
      %v3497 = vld [vmem:[#allocation2 + $0x141] sm:$0xff]
      %v3498 = vld [vmem:[#allocation2 + $0x151] sm:$0xff]
      %v3499 = vld [vmem:[#allocation2 + $0x159] sm:$0xff]
      %v3500 = vld [vmem:[#allocation2 + $0x169] sm:$0xff]
      %v3501 = vld [vmem:[#allocation2 + $0x171] sm:$0xff]
      %3534 = vrot.lane.b32.xlu0 %v3470, 127
      %v3535 = vpop.permute.xlu0 %3534
      %3536 = vrot.lane.b32.xlu0 %v3471, 127
      %v3537 = vpop.permute.xlu0 %3536
      %3538 = vrot.lane.b32.xlu0 %v3472, 127
      %v3539 = vpop.permute.xlu0 %3538
      %3540 = vrot.lane.b32.xlu0 %v3473, 127
      %v3541 = vpop.permute.xlu0 %3540
      %3542 = vrot.lane.b32.xlu0 %v3474, 127
      %v3543 = vpop.permute.xlu0 %3542
      %3544 = vrot.lane.b32.xlu0 %v3475, 127
      %v3545 = vpop.permute.xlu0 %3544
      %3546 = vrot.lane.b32.xlu0 %v3476, 127
      %v3547 = vpop.permute.xlu0 %3546
      %3548 = vrot.lane.b32.xlu0 %v3477, 127
      %v3549 = vpop.permute.xlu0 %3548
      %3550 = vrot.lane.b32.xlu0 %v3478, 127
      %v3551 = vpop.permute.xlu0 %3550
      %3552 = vrot.lane.b32.xlu0 %v3479, 127
      %v3553 = vpop.permute.xlu0 %3552
      %3554 = vrot.lane.b32.xlu0 %v3480, 127
      %v3555 = vpop.permute.xlu0 %3554
      %3556 = vrot.lane.b32.xlu0 %v3481, 127
      %v3557 = vpop.permute.xlu0 %3556
      %3558 = vrot.lane.b32.xlu0 %v3482, 127
      %v3559 = vpop.permute.xlu0 %3558
      %3560 = vrot.lane.b32.xlu0 %v3483, 127
      %v3561 = vpop.permute.xlu0 %3560
      %3562 = vrot.lane.b32.xlu0 %v3484, 127
      %v3563 = vpop.permute.xlu0 %3562
      %3564 = vrot.lane.b32.xlu0 %v3485, 127
      %v3565 = vpop.permute.xlu0 %3564
      %3566 = vrot.lane.b32.xlu0 %v3486, 127
      %v3567 = vpop.permute.xlu0 %3566
      %3568 = vrot.lane.b32.xlu0 %v3487, 127
      %v3569 = vpop.permute.xlu0 %3568
      %3570 = vrot.lane.b32.xlu0 %v3488, 127
      %v3571 = vpop.permute.xlu0 %3570
      %3572 = vrot.lane.b32.xlu0 %v3489, 127
      %v3573 = vpop.permute.xlu0 %3572
      %3574 = vrot.lane.b32.xlu0 %v3490, 127
      %v3575 = vpop.permute.xlu0 %3574
      %3576 = vrot.lane.b32.xlu0 %v3491, 127
      %v3577 = vpop.permute.xlu0 %3576
      %3578 = vrot.lane.b32.xlu0 %v3492, 127
      %v3579 = vpop.permute.xlu0 %3578
      %3580 = vrot.lane.b32.xlu0 %v3493, 127
      %v3581 = vpop.permute.xlu0 %3580
      %3582 = vrot.lane.b32.xlu0 %v3494, 127
      %v3583 = vpop.permute.xlu0 %3582
      %3584 = vrot.lane.b32.xlu0 %v3495, 127
      %v3585 = vpop.permute.xlu0 %3584
      %3586 = vrot.lane.b32.xlu0 %v3496, 127
      %v3587 = vpop.permute.xlu0 %3586
      %3588 = vrot.lane.b32.xlu0 %v3497, 127
      %v3589 = vpop.permute.xlu0 %3588
      %3590 = vrot.lane.b32.xlu0 %v3498, 127
      %v3591 = vpop.permute.xlu0 %3590
      %3592 = vrot.lane.b32.xlu0 %v3499, 127
      %v3593 = vpop.permute.xlu0 %3592
      %3594 = vrot.lane.b32.xlu0 %v3500, 127
      %v3595 = vpop.permute.xlu0 %3594
      %3596 = vrot.lane.b32.xlu0 %v3501, 127
      %v3597 = vpop.permute.xlu0 %3596
      %v3630 = vcombine.low %v3535, %v3543
      %v3631 = vcombine.high %v3535, %v3543
      %v3633 = vunpack.c.l.s4 1983009808
      %v3634 = vunpack.c.0.s8 %v3633
      %v3635 = vlaneseq
      %v3636 = vshrl.u32 %v3635, 7
      %v3637 = vsub.s32 %v3634, %v3636
      %v3638 = vrot.slane %v3630, %v3637
      %v3640 = vunpack.c.l.s4 1983009808
      %v3641 = vunpack.c.0.s8 %v3640
      %v3642 = vlaneseq
      %v3643 = vshrl.u32 %v3642, 7
      %v3644 = vsub.s32 %v3641, %v3643
      %v3645 = vrot.slane %v3631, %v3644
      %v3646 = vcombine.low %v3539, %v3547
      %v3647 = vcombine.high %v3539, %v3547
      %v3649 = vunpack.c.l.s4 1983009808
      %v3650 = vunpack.c.0.s8 %v3649
      %v3651 = vlaneseq
      %v3652 = vshrl.u32 %v3651, 7
      %v3653 = vsub.s32 %v3650, %v3652
      %v3654 = vrot.slane %v3646, %v3653
      %v3656 = vunpack.c.l.s4 1983009808
      %v3657 = vunpack.c.0.s8 %v3656
      %v3658 = vlaneseq
      %v3659 = vshrl.u32 %v3658, 7
      %v3660 = vsub.s32 %v3657, %v3659
      %v3661 = vrot.slane %v3647, %v3660
      %v3662 = vcombine.low %v3551, %v3559
      %v3663 = vcombine.high %v3551, %v3559
      %v3665 = vunpack.c.l.s4 1983009808
      %v3666 = vunpack.c.0.s8 %v3665
      %v3667 = vlaneseq
      %v3668 = vshrl.u32 %v3667, 7
      %v3669 = vsub.s32 %v3666, %v3668
      %v3670 = vrot.slane %v3662, %v3669
      %v3672 = vunpack.c.l.s4 1983009808
      %v3673 = vunpack.c.0.s8 %v3672
      %v3674 = vlaneseq
      %v3675 = vshrl.u32 %v3674, 7
      %v3676 = vsub.s32 %v3673, %v3675
      %v3677 = vrot.slane %v3663, %v3676
      %v3678 = vcombine.low %v3555, %v3563
      %v3679 = vcombine.high %v3555, %v3563
      %v3681 = vunpack.c.l.s4 1983009808
      %v3682 = vunpack.c.0.s8 %v3681
      %v3683 = vlaneseq
      %v3684 = vshrl.u32 %v3683, 7
      %v3685 = vsub.s32 %v3682, %v3684
      %v3686 = vrot.slane %v3678, %v3685
      %v3688 = vunpack.c.l.s4 1983009808
      %v3689 = vunpack.c.0.s8 %v3688
      %v3690 = vlaneseq
      %v3691 = vshrl.u32 %v3690, 7
      %v3692 = vsub.s32 %v3689, %v3691
      %v3693 = vrot.slane %v3679, %v3692
      %v3694 = vcombine.low %v3638, %v3654
      %v3695 = vcombine.high %v3638, %v3654
      %v3697 = vunpack.c.l.s4 1934713408
      %v3698 = vunpack.c.0.s8 %v3697
      %v3699 = vlaneseq
      %v3700 = vshrl.u32 %v3699, 7
      %v3701 = vsub.s32 %v3698, %v3700
      %v3702 = vrot.slane %v3694, %v3701
      %v3704 = vunpack.c.l.s4 1934713408
      %v3705 = vunpack.c.0.s8 %v3704
      %v3706 = vlaneseq
      %v3707 = vshrl.u32 %v3706, 7
      %v3708 = vsub.s32 %v3705, %v3707
      %v3709 = vrot.slane %v3695, %v3708
      %v3710 = vcombine.low %v3645, %v3661
      %v3711 = vcombine.high %v3645, %v3661
      %v3713 = vunpack.c.l.s4 1934713408
      %v3714 = vunpack.c.0.s8 %v3713
      %v3715 = vlaneseq
      %v3716 = vshrl.u32 %v3715, 7
      %v3717 = vsub.s32 %v3714, %v3716
      %v3718 = vrot.slane %v3710, %v3717
      %v3720 = vunpack.c.l.s4 1934713408
      %v3721 = vunpack.c.0.s8 %v3720
      %v3722 = vlaneseq
      %v3723 = vshrl.u32 %v3722, 7
      %v3724 = vsub.s32 %v3721, %v3723
      %v3725 = vrot.slane %v3711, %v3724
      %v3726 = vcombine.low %v3670, %v3686
      %v3727 = vcombine.high %v3670, %v3686
      %v3729 = vunpack.c.l.s4 1934713408
      %v3730 = vunpack.c.0.s8 %v3729
      %v3731 = vlaneseq
      %v3732 = vshrl.u32 %v3731, 7
      %v3733 = vsub.s32 %v3730, %v3732
      %v3734 = vrot.slane %v3726, %v3733
      %v3736 = vunpack.c.l.s4 1934713408
      %v3737 = vunpack.c.0.s8 %v3736
      %v3738 = vlaneseq
      %v3739 = vshrl.u32 %v3738, 7
      %v3740 = vsub.s32 %v3737, %v3739
      %v3741 = vrot.slane %v3727, %v3740
      %v3742 = vcombine.low %v3677, %v3693
      %v3743 = vcombine.high %v3677, %v3693
      %v3745 = vunpack.c.l.s4 1934713408
      %v3746 = vunpack.c.0.s8 %v3745
      %v3747 = vlaneseq
      %v3748 = vshrl.u32 %v3747, 7
      %v3749 = vsub.s32 %v3746, %v3748
      %v3750 = vrot.slane %v3742, %v3749
      %v3752 = vunpack.c.l.s4 1934713408
      %v3753 = vunpack.c.0.s8 %v3752
      %v3754 = vlaneseq
      %v3755 = vshrl.u32 %v3754, 7
      %v3756 = vsub.s32 %v3753, %v3755
      %v3757 = vrot.slane %v3743, %v3756
      %v3758 = vcombine.low %v3702, %v3734
      %v3759 = vcombine.high %v3702, %v3734
      %v3760 = vcombine.low %v3709, %v3741
      %v3761 = vcombine.high %v3709, %v3741
      %v3762 = vcombine.low %v3718, %v3750
      %v3763 = vcombine.high %v3718, %v3750
      %v3764 = vcombine.low %v3725, %v3757
      %v3765 = vcombine.high %v3725, %v3757
      %v3766 = vcombine.low %v3567, %v3575
      %v3767 = vcombine.high %v3567, %v3575
      %v3769 = vunpack.c.l.s4 1983009808
      %v3770 = vunpack.c.0.s8 %v3769
      %v3771 = vlaneseq
      %v3772 = vshrl.u32 %v3771, 7
      %v3773 = vsub.s32 %v3770, %v3772
      %v3774 = vrot.slane %v3766, %v3773
      %v3776 = vunpack.c.l.s4 1983009808
      %v3777 = vunpack.c.0.s8 %v3776
      %v3778 = vlaneseq
      %v3779 = vshrl.u32 %v3778, 7
      %v3780 = vsub.s32 %v3777, %v3779
      %v3781 = vrot.slane %v3767, %v3780
      %v3782 = vcombine.low %v3571, %v3579
      %v3783 = vcombine.high %v3571, %v3579
      %v3785 = vunpack.c.l.s4 1983009808
      %v3786 = vunpack.c.0.s8 %v3785
      %v3787 = vlaneseq
      %v3788 = vshrl.u32 %v3787, 7
      %v3789 = vsub.s32 %v3786, %v3788
      %v3790 = vrot.slane %v3782, %v3789
      %v3792 = vunpack.c.l.s4 1983009808
      %v3793 = vunpack.c.0.s8 %v3792
      %v3794 = vlaneseq
      %v3795 = vshrl.u32 %v3794, 7
      %v3796 = vsub.s32 %v3793, %v3795
      %v3797 = vrot.slane %v3783, %v3796
      %v3798 = vcombine.low %v3583, %v3591
      %v3799 = vcombine.high %v3583, %v3591
      %v3801 = vunpack.c.l.s4 1983009808
      %v3802 = vunpack.c.0.s8 %v3801
      %v3803 = vlaneseq
      %v3804 = vshrl.u32 %v3803, 7
      %v3805 = vsub.s32 %v3802, %v3804
      %v3806 = vrot.slane %v3798, %v3805
      %v3808 = vunpack.c.l.s4 1983009808
      %v3809 = vunpack.c.0.s8 %v3808
      %v3810 = vlaneseq
      %v3811 = vshrl.u32 %v3810, 7
      %v3812 = vsub.s32 %v3809, %v3811
      %v3813 = vrot.slane %v3799, %v3812
      %v3814 = vcombine.low %v3587, %v3595
      %v3815 = vcombine.high %v3587, %v3595
      %v3817 = vunpack.c.l.s4 1983009808
      %v3818 = vunpack.c.0.s8 %v3817
      %v3819 = vlaneseq
      %v3820 = vshrl.u32 %v3819, 7
      %v3821 = vsub.s32 %v3818, %v3820
      %v3822 = vrot.slane %v3814, %v3821
      %v3824 = vunpack.c.l.s4 1983009808
      %v3825 = vunpack.c.0.s8 %v3824
      %v3826 = vlaneseq
      %v3827 = vshrl.u32 %v3826, 7
      %v3828 = vsub.s32 %v3825, %v3827
      %v3829 = vrot.slane %v3815, %v3828
      %v3830 = vcombine.low %v3774, %v3790
      %v3831 = vcombine.high %v3774, %v3790
      %v3833 = vunpack.c.l.s4 1934713408
      %v3834 = vunpack.c.0.s8 %v3833
      %v3835 = vlaneseq
      %v3836 = vshrl.u32 %v3835, 7
      %v3837 = vsub.s32 %v3834, %v3836
      %v3838 = vrot.slane %v3830, %v3837
      %v3840 = vunpack.c.l.s4 1934713408
      %v3841 = vunpack.c.0.s8 %v3840
      %v3842 = vlaneseq
      %v3843 = vshrl.u32 %v3842, 7
      %v3844 = vsub.s32 %v3841, %v3843
      %v3845 = vrot.slane %v3831, %v3844
      %v3846 = vcombine.low %v3781, %v3797
      %v3847 = vcombine.high %v3781, %v3797
      %v3849 = vunpack.c.l.s4 1934713408
      %v3850 = vunpack.c.0.s8 %v3849
      %v3851 = vlaneseq
      %v3852 = vshrl.u32 %v3851, 7
      %v3853 = vsub.s32 %v3850, %v3852
      %v3854 = vrot.slane %v3846, %v3853
      %v3856 = vunpack.c.l.s4 1934713408
      %v3857 = vunpack.c.0.s8 %v3856
      %v3858 = vlaneseq
      %v3859 = vshrl.u32 %v3858, 7
      %v3860 = vsub.s32 %v3857, %v3859
      %v3861 = vrot.slane %v3847, %v3860
      %v3862 = vcombine.low %v3806, %v3822
      %v3863 = vcombine.high %v3806, %v3822
      %v3865 = vunpack.c.l.s4 1934713408
      %v3866 = vunpack.c.0.s8 %v3865
      %v3867 = vlaneseq
      %v3868 = vshrl.u32 %v3867, 7
      %v3869 = vsub.s32 %v3866, %v3868
      %v3870 = vrot.slane %v3862, %v3869
      %v3872 = vunpack.c.l.s4 1934713408
      %v3873 = vunpack.c.0.s8 %v3872
      %v3874 = vlaneseq
      %v3875 = vshrl.u32 %v3874, 7
      %v3876 = vsub.s32 %v3873, %v3875
      %v3877 = vrot.slane %v3863, %v3876
      %v3878 = vcombine.low %v3813, %v3829
      %v3879 = vcombine.high %v3813, %v3829
      %v3881 = vunpack.c.l.s4 1934713408
      %v3882 = vunpack.c.0.s8 %v3881
      %v3883 = vlaneseq
      %v3884 = vshrl.u32 %v3883, 7
      %v3885 = vsub.s32 %v3882, %v3884
      %v3886 = vrot.slane %v3878, %v3885
      %v3888 = vunpack.c.l.s4 1934713408
      %v3889 = vunpack.c.0.s8 %v3888
      %v3890 = vlaneseq
      %v3891 = vshrl.u32 %v3890, 7
      %v3892 = vsub.s32 %v3889, %v3891
      %v3893 = vrot.slane %v3879, %v3892
      %v3894 = vcombine.low %v3838, %v3870
      %v3895 = vcombine.high %v3838, %v3870
      %v3896 = vcombine.low %v3845, %v3877
      %v3897 = vcombine.high %v3845, %v3877
      %v3898 = vcombine.low %v3854, %v3886
      %v3899 = vcombine.high %v3854, %v3886
      %v3900 = vcombine.low %v3861, %v3893
      %v3901 = vcombine.high %v3861, %v3893
      %v3902 = vcombine.low %v3537, %v3545
      %v3903 = vcombine.high %v3537, %v3545
      %v3905 = vunpack.c.l.s4 1983009808
      %v3906 = vunpack.c.0.s8 %v3905
      %v3907 = vlaneseq
      %v3908 = vshrl.u32 %v3907, 7
      %v3909 = vsub.s32 %v3906, %v3908
      %v3910 = vrot.slane %v3902, %v3909
      %v3912 = vunpack.c.l.s4 1983009808
      %v3913 = vunpack.c.0.s8 %v3912
      %v3914 = vlaneseq
      %v3915 = vshrl.u32 %v3914, 7
      %v3916 = vsub.s32 %v3913, %v3915
      %v3917 = vrot.slane %v3903, %v3916
      %v3918 = vcombine.low %v3541, %v3549
      %v3919 = vcombine.high %v3541, %v3549
      %v3921 = vunpack.c.l.s4 1983009808
      %v3922 = vunpack.c.0.s8 %v3921
      %v3923 = vlaneseq
      %v3924 = vshrl.u32 %v3923, 7
      %v3925 = vsub.s32 %v3922, %v3924
      %v3926 = vrot.slane %v3918, %v3925
      %v3928 = vunpack.c.l.s4 1983009808
      %v3929 = vunpack.c.0.s8 %v3928
      %v3930 = vlaneseq
      %v3931 = vshrl.u32 %v3930, 7
      %v3932 = vsub.s32 %v3929, %v3931
      %v3933 = vrot.slane %v3919, %v3932
      %v3934 = vcombine.low %v3553, %v3561
      %v3935 = vcombine.high %v3553, %v3561
      %v3937 = vunpack.c.l.s4 1983009808
      %v3938 = vunpack.c.0.s8 %v3937
      %v3939 = vlaneseq
      %v3940 = vshrl.u32 %v3939, 7
      %v3941 = vsub.s32 %v3938, %v3940
      %v3942 = vrot.slane %v3934, %v3941
      %v3944 = vunpack.c.l.s4 1983009808
      %v3945 = vunpack.c.0.s8 %v3944
      %v3946 = vlaneseq
      %v3947 = vshrl.u32 %v3946, 7
      %v3948 = vsub.s32 %v3945, %v3947
      %v3949 = vrot.slane %v3935, %v3948
      %v3950 = vcombine.low %v3557, %v3565
      %v3951 = vcombine.high %v3557, %v3565
      %v3953 = vunpack.c.l.s4 1983009808
      %v3954 = vunpack.c.0.s8 %v3953
      %v3955 = vlaneseq
      %v3956 = vshrl.u32 %v3955, 7
      %v3957 = vsub.s32 %v3954, %v3956
      %v3958 = vrot.slane %v3950, %v3957
      %v3960 = vunpack.c.l.s4 1983009808
      %v3961 = vunpack.c.0.s8 %v3960
      %v3962 = vlaneseq
      %v3963 = vshrl.u32 %v3962, 7
      %v3964 = vsub.s32 %v3961, %v3963
      %v3965 = vrot.slane %v3951, %v3964
      %v3966 = vcombine.low %v3910, %v3926
      %v3967 = vcombine.high %v3910, %v3926
      %v3969 = vunpack.c.l.s4 1934713408
      %v3970 = vunpack.c.0.s8 %v3969
      %v3971 = vlaneseq
      %v3972 = vshrl.u32 %v3971, 7
      %v3973 = vsub.s32 %v3970, %v3972
      %v3974 = vrot.slane %v3966, %v3973
      %v3976 = vunpack.c.l.s4 1934713408
      %v3977 = vunpack.c.0.s8 %v3976
      %v3978 = vlaneseq
      %v3979 = vshrl.u32 %v3978, 7
      %v3980 = vsub.s32 %v3977, %v3979
      %v3981 = vrot.slane %v3967, %v3980
      %v3982 = vcombine.low %v3917, %v3933
      %v3983 = vcombine.high %v3917, %v3933
      %v3985 = vunpack.c.l.s4 1934713408
      %v3986 = vunpack.c.0.s8 %v3985
      %v3987 = vlaneseq
      %v3988 = vshrl.u32 %v3987, 7
      %v3989 = vsub.s32 %v3986, %v3988
      %v3990 = vrot.slane %v3982, %v3989
      %v3992 = vunpack.c.l.s4 1934713408
      %v3993 = vunpack.c.0.s8 %v3992
      %v3994 = vlaneseq
      %v3995 = vshrl.u32 %v3994, 7
      %v3996 = vsub.s32 %v3993, %v3995
      %v3997 = vrot.slane %v3983, %v3996
      %v3998 = vcombine.low %v3942, %v3958
      %v3999 = vcombine.high %v3942, %v3958
      %v4001 = vunpack.c.l.s4 1934713408
      %v4002 = vunpack.c.0.s8 %v4001
      %v4003 = vlaneseq
      %v4004 = vshrl.u32 %v4003, 7
      %v4005 = vsub.s32 %v4002, %v4004
      %v4006 = vrot.slane %v3998, %v4005
      %v4008 = vunpack.c.l.s4 1934713408
      %v4009 = vunpack.c.0.s8 %v4008
      %v4010 = vlaneseq
      %v4011 = vshrl.u32 %v4010, 7
      %v4012 = vsub.s32 %v4009, %v4011
      %v4013 = vrot.slane %v3999, %v4012
      %v4014 = vcombine.low %v3949, %v3965
      %v4015 = vcombine.high %v3949, %v3965
      %v4017 = vunpack.c.l.s4 1934713408
      %v4018 = vunpack.c.0.s8 %v4017
      %v4019 = vlaneseq
      %v4020 = vshrl.u32 %v4019, 7
      %v4021 = vsub.s32 %v4018, %v4020
      %v4022 = vrot.slane %v4014, %v4021
      %v4024 = vunpack.c.l.s4 1934713408
      %v4025 = vunpack.c.0.s8 %v4024
      %v4026 = vlaneseq
      %v4027 = vshrl.u32 %v4026, 7
      %v4028 = vsub.s32 %v4025, %v4027
      %v4029 = vrot.slane %v4015, %v4028
      %v4030 = vcombine.low %v3974, %v4006
      %v4031 = vcombine.high %v3974, %v4006
      %v4032 = vcombine.low %v3981, %v4013
      %v4033 = vcombine.high %v3981, %v4013
      %v4034 = vcombine.low %v3990, %v4022
      %v4035 = vcombine.high %v3990, %v4022
      %v4036 = vcombine.low %v3997, %v4029
      %v4037 = vcombine.high %v3997, %v4029
      %v4038 = vcombine.low %v3569, %v3577
      %v4039 = vcombine.high %v3569, %v3577
      %v4041 = vunpack.c.l.s4 1983009808
      %v4042 = vunpack.c.0.s8 %v4041
      %v4043 = vlaneseq
      %v4044 = vshrl.u32 %v4043, 7
      %v4045 = vsub.s32 %v4042, %v4044
      %v4046 = vrot.slane %v4038, %v4045
      %v4048 = vunpack.c.l.s4 1983009808
      %v4049 = vunpack.c.0.s8 %v4048
      %v4050 = vlaneseq
      %v4051 = vshrl.u32 %v4050, 7
      %v4052 = vsub.s32 %v4049, %v4051
      %v4053 = vrot.slane %v4039, %v4052
      %v4054 = vcombine.low %v3573, %v3581
      %v4055 = vcombine.high %v3573, %v3581
      %v4057 = vunpack.c.l.s4 1983009808
      %v4058 = vunpack.c.0.s8 %v4057
      %v4059 = vlaneseq
      %v4060 = vshrl.u32 %v4059, 7
      %v4061 = vsub.s32 %v4058, %v4060
      %v4062 = vrot.slane %v4054, %v4061
      %v4064 = vunpack.c.l.s4 1983009808
      %v4065 = vunpack.c.0.s8 %v4064
      %v4066 = vlaneseq
      %v4067 = vshrl.u32 %v4066, 7
      %v4068 = vsub.s32 %v4065, %v4067
      %v4069 = vrot.slane %v4055, %v4068
      %v4070 = vcombine.low %v3585, %v3593
      %v4071 = vcombine.high %v3585, %v3593
      %v4073 = vunpack.c.l.s4 1983009808
      %v4074 = vunpack.c.0.s8 %v4073
      %v4075 = vlaneseq
      %v4076 = vshrl.u32 %v4075, 7
      %v4077 = vsub.s32 %v4074, %v4076
      %v4078 = vrot.slane %v4070, %v4077
      %v4080 = vunpack.c.l.s4 1983009808
      %v4081 = vunpack.c.0.s8 %v4080
      %v4082 = vlaneseq
      %v4083 = vshrl.u32 %v4082, 7
      %v4084 = vsub.s32 %v4081, %v4083
      %v4085 = vrot.slane %v4071, %v4084
      %v4086 = vcombine.low %v3589, %v3597
      %v4087 = vcombine.high %v3589, %v3597
      %v4089 = vunpack.c.l.s4 1983009808
      %v4090 = vunpack.c.0.s8 %v4089
      %v4091 = vlaneseq
      %v4092 = vshrl.u32 %v4091, 7
      %v4093 = vsub.s32 %v4090, %v4092
      %v4094 = vrot.slane %v4086, %v4093
      %v4096 = vunpack.c.l.s4 1983009808
      %v4097 = vunpack.c.0.s8 %v4096
      %v4098 = vlaneseq
      %v4099 = vshrl.u32 %v4098, 7
      %v4100 = vsub.s32 %v4097, %v4099
      %v4101 = vrot.slane %v4087, %v4100
      %v4102 = vcombine.low %v4046, %v4062
      %v4103 = vcombine.high %v4046, %v4062
      %v4105 = vunpack.c.l.s4 1934713408
      %v4106 = vunpack.c.0.s8 %v4105
      %v4107 = vlaneseq
      %v4108 = vshrl.u32 %v4107, 7
      %v4109 = vsub.s32 %v4106, %v4108
      %v4110 = vrot.slane %v4102, %v4109
      %v4112 = vunpack.c.l.s4 1934713408
      %v4113 = vunpack.c.0.s8 %v4112
      %v4114 = vlaneseq
      %v4115 = vshrl.u32 %v4114, 7
      %v4116 = vsub.s32 %v4113, %v4115
      %v4117 = vrot.slane %v4103, %v4116
      %v4118 = vcombine.low %v4053, %v4069
      %v4119 = vcombine.high %v4053, %v4069
      %v4121 = vunpack.c.l.s4 1934713408
      %v4122 = vunpack.c.0.s8 %v4121
      %v4123 = vlaneseq
      %v4124 = vshrl.u32 %v4123, 7
      %v4125 = vsub.s32 %v4122, %v4124
      %v4126 = vrot.slane %v4118, %v4125
      %v4128 = vunpack.c.l.s4 1934713408
      %v4129 = vunpack.c.0.s8 %v4128
      %v4130 = vlaneseq
      %v4131 = vshrl.u32 %v4130, 7
      %v4132 = vsub.s32 %v4129, %v4131
      %v4133 = vrot.slane %v4119, %v4132
      %v4134 = vcombine.low %v4078, %v4094
      %v4135 = vcombine.high %v4078, %v4094
      %v4137 = vunpack.c.l.s4 1934713408
      %v4138 = vunpack.c.0.s8 %v4137
      %v4139 = vlaneseq
      %v4140 = vshrl.u32 %v4139, 7
      %v4141 = vsub.s32 %v4138, %v4140
      %v4142 = vrot.slane %v4134, %v4141
      %v4144 = vunpack.c.l.s4 1934713408
      %v4145 = vunpack.c.0.s8 %v4144
      %v4146 = vlaneseq
      %v4147 = vshrl.u32 %v4146, 7
      %v4148 = vsub.s32 %v4145, %v4147
      %v4149 = vrot.slane %v4135, %v4148
      %v4150 = vcombine.low %v4085, %v4101
      %v4151 = vcombine.high %v4085, %v4101
      %v4153 = vunpack.c.l.s4 1934713408
      %v4154 = vunpack.c.0.s8 %v4153
      %v4155 = vlaneseq
      %v4156 = vshrl.u32 %v4155, 7
      %v4157 = vsub.s32 %v4154, %v4156
      %v4158 = vrot.slane %v4150, %v4157
      %v4160 = vunpack.c.l.s4 1934713408
      %v4161 = vunpack.c.0.s8 %v4160
      %v4162 = vlaneseq
      %v4163 = vshrl.u32 %v4162, 7
      %v4164 = vsub.s32 %v4161, %v4163
      %v4165 = vrot.slane %v4151, %v4164
      %v4166 = vcombine.low %v4110, %v4142
      %v4167 = vcombine.high %v4110, %v4142
      %v4168 = vcombine.low %v4117, %v4149
      %v4169 = vcombine.high %v4117, %v4149
      %v4170 = vcombine.low %v4126, %v4158
      %v4171 = vcombine.high %v4126, %v4158
      %v4172 = vcombine.low %v4133, %v4165
      %v4173 = vcombine.high %v4133, %v4165
      %4176 = vrot.lane.b32.xlu0 %v3759, 16
      %v4177 = vpop.permute.xlu0 %4176
      %4178 = vrot.lane.b32.xlu0 %v3895, 16
      %v4179 = vpop.permute.xlu0 %4178
      %4184 = vrot.lane.b32.xlu0 %v3760, 32
      %v4185 = vpop.permute.xlu0 %4184
      %4186 = vrot.lane.b32.xlu0 %v3896, 32
      %v4187 = vpop.permute.xlu0 %4186
      %4192 = vrot.lane.b32.xlu0 %v3761, 48
      %v4193 = vpop.permute.xlu0 %4192
      %4194 = vrot.lane.b32.xlu0 %v3897, 48
      %v4195 = vpop.permute.xlu0 %4194
      %4200 = vrot.lane.b32.xlu0 %v3762, 64
      %v4201 = vpop.permute.xlu0 %4200
      %4202 = vrot.lane.b32.xlu0 %v3898, 64
      %v4203 = vpop.permute.xlu0 %4202
      %4208 = vrot.lane.b32.xlu0 %v3763, 80
      %v4209 = vpop.permute.xlu0 %4208
      %4210 = vrot.lane.b32.xlu0 %v3899, 80
      %v4211 = vpop.permute.xlu0 %4210
      %4216 = vrot.lane.b32.xlu0 %v3764, 96
      %v4217 = vpop.permute.xlu0 %4216
      %4218 = vrot.lane.b32.xlu0 %v3900, 96
      %v4219 = vpop.permute.xlu0 %4218
      %4224 = vrot.lane.b32.xlu0 %v3765, 112
      %v4225 = vpop.permute.xlu0 %4224
      %4226 = vrot.lane.b32.xlu0 %v3901, 112
      %v4227 = vpop.permute.xlu0 %4226
      %4232 = vrot.lane.b32.xlu0 %v4031, 16
      %v4233 = vpop.permute.xlu0 %4232
      %4234 = vrot.lane.b32.xlu0 %v4167, 16
      %v4235 = vpop.permute.xlu0 %4234
      %4240 = vrot.lane.b32.xlu0 %v4032, 32
      %v4241 = vpop.permute.xlu0 %4240
      %4242 = vrot.lane.b32.xlu0 %v4168, 32
      %v4243 = vpop.permute.xlu0 %4242
      %4248 = vrot.lane.b32.xlu0 %v4033, 48
      %v4249 = vpop.permute.xlu0 %4248
      %4250 = vrot.lane.b32.xlu0 %v4169, 48
      %v4251 = vpop.permute.xlu0 %4250
      %4256 = vrot.lane.b32.xlu0 %v4034, 64
      %v4257 = vpop.permute.xlu0 %4256
      %4258 = vrot.lane.b32.xlu0 %v4170, 64
      %v4259 = vpop.permute.xlu0 %4258
      %4264 = vrot.lane.b32.xlu0 %v4035, 80
      %v4265 = vpop.permute.xlu0 %4264
      %4266 = vrot.lane.b32.xlu0 %v4171, 80
      %v4267 = vpop.permute.xlu0 %4266
      %4272 = vrot.lane.b32.xlu0 %v4036, 96
      %v4273 = vpop.permute.xlu0 %4272
      %4274 = vrot.lane.b32.xlu0 %v4172, 96
      %v4275 = vpop.permute.xlu0 %4274
      %4280 = vrot.lane.b32.xlu0 %v4037, 112
      %v4281 = vpop.permute.xlu0 %4280
      %4282 = vrot.lane.b32.xlu0 %v4173, 112
      %v4283 = vpop.permute.xlu0 %4282
      %v4286 = vsel %vm1015, %v3758, %v4177
      %v4287 = vsel %vm1015, %v3894, %v4179
      %v4288 = vsel %vm1018, %v4286, %v4185
      %v4289 = vsel %vm1018, %v4287, %v4187
      %v4290 = vsel %vm1021, %v4288, %v4193
      %v4291 = vsel %vm1021, %v4289, %v4195
      %v4292 = vsel %vm1024, %v4290, %v4201
      %v4293 = vsel %vm1024, %v4291, %v4203
      %v4294 = vsel %vm1027, %v4292, %v4209
      %v4295 = vsel %vm1027, %v4293, %v4211
      %v4296 = vsel %vm1030, %v4294, %v4217
      %v4297 = vsel %vm1030, %v4295, %v4219
      %v4298 = vsel %vm1033, %v4296, %v4225
      %v4299 = vsel %vm1033, %v4297, %v4227
      %v4300 = vsel %vm1015, %v4030, %v4233
      %v4301 = vsel %vm1015, %v4166, %v4235
      %v4302 = vsel %vm1018, %v4300, %v4241
      %v4303 = vsel %vm1018, %v4301, %v4243
      %v4304 = vsel %vm1021, %v4302, %v4249
      %v4305 = vsel %vm1021, %v4303, %v4251
      %v4306 = vsel %vm1024, %v4304, %v4257
      %v4307 = vsel %vm1024, %v4305, %v4259
      %v4308 = vsel %vm1027, %v4306, %v4265
      %v4309 = vsel %vm1027, %v4307, %v4267
      %v4310 = vsel %vm1030, %v4308, %v4273
      %v4311 = vsel %vm1030, %v4309, %v4275
      %v4312 = vsel %vm1033, %v4310, %v4281
      %v4313 = vsel %vm1033, %v4311, %v4283
      %v4314 = vpack.c.bf16 %v4299, %v4298
      %v4315 = vpack.c.bf16 %v4313, %v4312
      %4316 = vst [vmem:[#allocation3 + $0x40] sm:$0xff] %v4314
      %4317 = vst [vmem:[#allocation3 + $0x48] sm:$0xff] %v4315
      %v4318 = vld [vmem:[#allocation2 + $0x1] sm:$0xff]
      %v4319 = vld [vmem:[#allocation2 + $0x9] sm:$0xff]
      %v4320 = vld [vmem:[#allocation2 + $0x19] sm:$0xff]
      %v4321 = vld [vmem:[#allocation2 + $0x21] sm:$0xff]
      %v4322 = vld [vmem:[#allocation2 + $0x31] sm:$0xff]
      %v4323 = vld [vmem:[#allocation2 + $0x39] sm:$0xff]
      %v4324 = vld [vmem:[#allocation2 + $0x49] sm:$0xff]
      %v4325 = vld [vmem:[#allocation2 + $0x51] sm:$0xff]
      %v4326 = vld [vmem:[#allocation2 + $0x61] sm:$0xff]
      %v4327 = vld [vmem:[#allocation2 + $0x69] sm:$0xff]
      %v4328 = vld [vmem:[#allocation2 + $0x79] sm:$0xff]
      %v4329 = vld [vmem:[#allocation2 + $0x81] sm:$0xff]
      %v4330 = vld [vmem:[#allocation2 + $0x91] sm:$0xff]
      %v4331 = vld [vmem:[#allocation2 + $0x99] sm:$0xff]
      %v4332 = vld [vmem:[#allocation2 + $0xa9] sm:$0xff]
      %v4333 = vld [vmem:[#allocation2 + $0xb1] sm:$0xff]
      %v4334 = vld [vmem:[#allocation2 + $0xc1] sm:$0xff]
      %v4335 = vld [vmem:[#allocation2 + $0xc9] sm:$0xff]
      %v4336 = vld [vmem:[#allocation2 + $0xd9] sm:$0xff]
      %v4337 = vld [vmem:[#allocation2 + $0xe1] sm:$0xff]
      %v4338 = vld [vmem:[#allocation2 + $0xf1] sm:$0xff]
      %v4339 = vld [vmem:[#allocation2 + $0xf9] sm:$0xff]
      %v4340 = vld [vmem:[#allocation2 + $0x109] sm:$0xff]
      %v4341 = vld [vmem:[#allocation2 + $0x111] sm:$0xff]
      %v4342 = vld [vmem:[#allocation2 + $0x121] sm:$0xff]
      %v4343 = vld [vmem:[#allocation2 + $0x129] sm:$0xff]
      %v4344 = vld [vmem:[#allocation2 + $0x139] sm:$0xff]
      %v4345 = vld [vmem:[#allocation2 + $0x141] sm:$0xff]
      %v4346 = vld [vmem:[#allocation2 + $0x151] sm:$0xff]
      %v4347 = vld [vmem:[#allocation2 + $0x159] sm:$0xff]
      %v4348 = vld [vmem:[#allocation2 + $0x169] sm:$0xff]
      %v4349 = vld [vmem:[#allocation2 + $0x171] sm:$0xff]
      %4382 = vrot.lane.b32.xlu0 %v4318, 126
      %v4383 = vpop.permute.xlu0 %4382
      %4384 = vrot.lane.b32.xlu0 %v4319, 126
      %v4385 = vpop.permute.xlu0 %4384
      %4386 = vrot.lane.b32.xlu0 %v4320, 126
      %v4387 = vpop.permute.xlu0 %4386
      %4388 = vrot.lane.b32.xlu0 %v4321, 126
      %v4389 = vpop.permute.xlu0 %4388
      %4390 = vrot.lane.b32.xlu0 %v4322, 126
      %v4391 = vpop.permute.xlu0 %4390
      %4392 = vrot.lane.b32.xlu0 %v4323, 126
      %v4393 = vpop.permute.xlu0 %4392
      %4394 = vrot.lane.b32.xlu0 %v4324, 126
      %v4395 = vpop.permute.xlu0 %4394
      %4396 = vrot.lane.b32.xlu0 %v4325, 126
      %v4397 = vpop.permute.xlu0 %4396
      %4398 = vrot.lane.b32.xlu0 %v4326, 126
      %v4399 = vpop.permute.xlu0 %4398
      %4400 = vrot.lane.b32.xlu0 %v4327, 126
      %v4401 = vpop.permute.xlu0 %4400
      %4402 = vrot.lane.b32.xlu0 %v4328, 126
      %v4403 = vpop.permute.xlu0 %4402
      %4404 = vrot.lane.b32.xlu0 %v4329, 126
      %v4405 = vpop.permute.xlu0 %4404
      %4406 = vrot.lane.b32.xlu0 %v4330, 126
      %v4407 = vpop.permute.xlu0 %4406
      %4408 = vrot.lane.b32.xlu0 %v4331, 126
      %v4409 = vpop.permute.xlu0 %4408
      %4410 = vrot.lane.b32.xlu0 %v4332, 126
      %v4411 = vpop.permute.xlu0 %4410
      %4412 = vrot.lane.b32.xlu0 %v4333, 126
      %v4413 = vpop.permute.xlu0 %4412
      %4414 = vrot.lane.b32.xlu0 %v4334, 126
      %v4415 = vpop.permute.xlu0 %4414
      %4416 = vrot.lane.b32.xlu0 %v4335, 126
      %v4417 = vpop.permute.xlu0 %4416
      %4418 = vrot.lane.b32.xlu0 %v4336, 126
      %v4419 = vpop.permute.xlu0 %4418
      %4420 = vrot.lane.b32.xlu0 %v4337, 126
      %v4421 = vpop.permute.xlu0 %4420
      %4422 = vrot.lane.b32.xlu0 %v4338, 126
      %v4423 = vpop.permute.xlu0 %4422
      %4424 = vrot.lane.b32.xlu0 %v4339, 126
      %v4425 = vpop.permute.xlu0 %4424
      %4426 = vrot.lane.b32.xlu0 %v4340, 126
      %v4427 = vpop.permute.xlu0 %4426
      %4428 = vrot.lane.b32.xlu0 %v4341, 126
      %v4429 = vpop.permute.xlu0 %4428
      %4430 = vrot.lane.b32.xlu0 %v4342, 126
      %v4431 = vpop.permute.xlu0 %4430
      %4432 = vrot.lane.b32.xlu0 %v4343, 126
      %v4433 = vpop.permute.xlu0 %4432
      %4434 = vrot.lane.b32.xlu0 %v4344, 126
      %v4435 = vpop.permute.xlu0 %4434
      %4436 = vrot.lane.b32.xlu0 %v4345, 126
      %v4437 = vpop.permute.xlu0 %4436
      %4438 = vrot.lane.b32.xlu0 %v4346, 126
      %v4439 = vpop.permute.xlu0 %4438
      %4440 = vrot.lane.b32.xlu0 %v4347, 126
      %v4441 = vpop.permute.xlu0 %4440
      %4442 = vrot.lane.b32.xlu0 %v4348, 126
      %v4443 = vpop.permute.xlu0 %4442
      %4444 = vrot.lane.b32.xlu0 %v4349, 126
      %v4445 = vpop.permute.xlu0 %4444
      %v4478 = vcombine.low %v4383, %v4391
      %v4479 = vcombine.high %v4383, %v4391
      %v4481 = vunpack.c.l.s4 1983009808
      %v4482 = vunpack.c.0.s8 %v4481
      %v4483 = vlaneseq
      %v4484 = vshrl.u32 %v4483, 7
      %v4485 = vsub.s32 %v4482, %v4484
      %v4486 = vrot.slane %v4478, %v4485
      %v4488 = vunpack.c.l.s4 1983009808
      %v4489 = vunpack.c.0.s8 %v4488
      %v4490 = vlaneseq
      %v4491 = vshrl.u32 %v4490, 7
      %v4492 = vsub.s32 %v4489, %v4491
      %v4493 = vrot.slane %v4479, %v4492
      %v4494 = vcombine.low %v4387, %v4395
      %v4495 = vcombine.high %v4387, %v4395
      %v4497 = vunpack.c.l.s4 1983009808
      %v4498 = vunpack.c.0.s8 %v4497
      %v4499 = vlaneseq
      %v4500 = vshrl.u32 %v4499, 7
      %v4501 = vsub.s32 %v4498, %v4500
      %v4502 = vrot.slane %v4494, %v4501
      %v4504 = vunpack.c.l.s4 1983009808
      %v4505 = vunpack.c.0.s8 %v4504
      %v4506 = vlaneseq
      %v4507 = vshrl.u32 %v4506, 7
      %v4508 = vsub.s32 %v4505, %v4507
      %v4509 = vrot.slane %v4495, %v4508
      %v4510 = vcombine.low %v4399, %v4407
      %v4511 = vcombine.high %v4399, %v4407
      %v4513 = vunpack.c.l.s4 1983009808
      %v4514 = vunpack.c.0.s8 %v4513
      %v4515 = vlaneseq
      %v4516 = vshrl.u32 %v4515, 7
      %v4517 = vsub.s32 %v4514, %v4516
      %v4518 = vrot.slane %v4510, %v4517
      %v4520 = vunpack.c.l.s4 1983009808
      %v4521 = vunpack.c.0.s8 %v4520
      %v4522 = vlaneseq
      %v4523 = vshrl.u32 %v4522, 7
      %v4524 = vsub.s32 %v4521, %v4523
      %v4525 = vrot.slane %v4511, %v4524
      %v4526 = vcombine.low %v4403, %v4411
      %v4527 = vcombine.high %v4403, %v4411
      %v4529 = vunpack.c.l.s4 1983009808
      %v4530 = vunpack.c.0.s8 %v4529
      %v4531 = vlaneseq
      %v4532 = vshrl.u32 %v4531, 7
      %v4533 = vsub.s32 %v4530, %v4532
      %v4534 = vrot.slane %v4526, %v4533
      %v4536 = vunpack.c.l.s4 1983009808
      %v4537 = vunpack.c.0.s8 %v4536
      %v4538 = vlaneseq
      %v4539 = vshrl.u32 %v4538, 7
      %v4540 = vsub.s32 %v4537, %v4539
      %v4541 = vrot.slane %v4527, %v4540
      %v4542 = vcombine.low %v4486, %v4502
      %v4543 = vcombine.high %v4486, %v4502
      %v4545 = vunpack.c.l.s4 1934713408
      %v4546 = vunpack.c.0.s8 %v4545
      %v4547 = vlaneseq
      %v4548 = vshrl.u32 %v4547, 7
      %v4549 = vsub.s32 %v4546, %v4548
      %v4550 = vrot.slane %v4542, %v4549
      %v4552 = vunpack.c.l.s4 1934713408
      %v4553 = vunpack.c.0.s8 %v4552
      %v4554 = vlaneseq
      %v4555 = vshrl.u32 %v4554, 7
      %v4556 = vsub.s32 %v4553, %v4555
      %v4557 = vrot.slane %v4543, %v4556
      %v4558 = vcombine.low %v4493, %v4509
      %v4559 = vcombine.high %v4493, %v4509
      %v4561 = vunpack.c.l.s4 1934713408
      %v4562 = vunpack.c.0.s8 %v4561
      %v4563 = vlaneseq
      %v4564 = vshrl.u32 %v4563, 7
      %v4565 = vsub.s32 %v4562, %v4564
      %v4566 = vrot.slane %v4558, %v4565
      %v4568 = vunpack.c.l.s4 1934713408
      %v4569 = vunpack.c.0.s8 %v4568
      %v4570 = vlaneseq
      %v4571 = vshrl.u32 %v4570, 7
      %v4572 = vsub.s32 %v4569, %v4571
      %v4573 = vrot.slane %v4559, %v4572
      %v4574 = vcombine.low %v4518, %v4534
      %v4575 = vcombine.high %v4518, %v4534
      %v4577 = vunpack.c.l.s4 1934713408
      %v4578 = vunpack.c.0.s8 %v4577
      %v4579 = vlaneseq
      %v4580 = vshrl.u32 %v4579, 7
      %v4581 = vsub.s32 %v4578, %v4580
      %v4582 = vrot.slane %v4574, %v4581
      %v4584 = vunpack.c.l.s4 1934713408
      %v4585 = vunpack.c.0.s8 %v4584
      %v4586 = vlaneseq
      %v4587 = vshrl.u32 %v4586, 7
      %v4588 = vsub.s32 %v4585, %v4587
      %v4589 = vrot.slane %v4575, %v4588
      %v4590 = vcombine.low %v4525, %v4541
      %v4591 = vcombine.high %v4525, %v4541
      %v4593 = vunpack.c.l.s4 1934713408
      %v4594 = vunpack.c.0.s8 %v4593
      %v4595 = vlaneseq
      %v4596 = vshrl.u32 %v4595, 7
      %v4597 = vsub.s32 %v4594, %v4596
      %v4598 = vrot.slane %v4590, %v4597
      %v4600 = vunpack.c.l.s4 1934713408
      %v4601 = vunpack.c.0.s8 %v4600
      %v4602 = vlaneseq
      %v4603 = vshrl.u32 %v4602, 7
      %v4604 = vsub.s32 %v4601, %v4603
      %v4605 = vrot.slane %v4591, %v4604
      %v4606 = vcombine.low %v4550, %v4582
      %v4607 = vcombine.high %v4550, %v4582
      %v4608 = vcombine.low %v4557, %v4589
      %v4609 = vcombine.high %v4557, %v4589
      %v4610 = vcombine.low %v4566, %v4598
      %v4611 = vcombine.high %v4566, %v4598
      %v4612 = vcombine.low %v4573, %v4605
      %v4613 = vcombine.high %v4573, %v4605
      %v4614 = vcombine.low %v4415, %v4423
      %v4615 = vcombine.high %v4415, %v4423
      %v4617 = vunpack.c.l.s4 1983009808
      %v4618 = vunpack.c.0.s8 %v4617
      %v4619 = vlaneseq
      %v4620 = vshrl.u32 %v4619, 7
      %v4621 = vsub.s32 %v4618, %v4620
      %v4622 = vrot.slane %v4614, %v4621
      %v4624 = vunpack.c.l.s4 1983009808
      %v4625 = vunpack.c.0.s8 %v4624
      %v4626 = vlaneseq
      %v4627 = vshrl.u32 %v4626, 7
      %v4628 = vsub.s32 %v4625, %v4627
      %v4629 = vrot.slane %v4615, %v4628
      %v4630 = vcombine.low %v4419, %v4427
      %v4631 = vcombine.high %v4419, %v4427
      %v4633 = vunpack.c.l.s4 1983009808
      %v4634 = vunpack.c.0.s8 %v4633
      %v4635 = vlaneseq
      %v4636 = vshrl.u32 %v4635, 7
      %v4637 = vsub.s32 %v4634, %v4636
      %v4638 = vrot.slane %v4630, %v4637
      %v4640 = vunpack.c.l.s4 1983009808
      %v4641 = vunpack.c.0.s8 %v4640
      %v4642 = vlaneseq
      %v4643 = vshrl.u32 %v4642, 7
      %v4644 = vsub.s32 %v4641, %v4643
      %v4645 = vrot.slane %v4631, %v4644
      %v4646 = vcombine.low %v4431, %v4439
      %v4647 = vcombine.high %v4431, %v4439
      %v4649 = vunpack.c.l.s4 1983009808
      %v4650 = vunpack.c.0.s8 %v4649
      %v4651 = vlaneseq
      %v4652 = vshrl.u32 %v4651, 7
      %v4653 = vsub.s32 %v4650, %v4652
      %v4654 = vrot.slane %v4646, %v4653
      %v4656 = vunpack.c.l.s4 1983009808
      %v4657 = vunpack.c.0.s8 %v4656
      %v4658 = vlaneseq
      %v4659 = vshrl.u32 %v4658, 7
      %v4660 = vsub.s32 %v4657, %v4659
      %v4661 = vrot.slane %v4647, %v4660
      %v4662 = vcombine.low %v4435, %v4443
      %v4663 = vcombine.high %v4435, %v4443
      %v4665 = vunpack.c.l.s4 1983009808
      %v4666 = vunpack.c.0.s8 %v4665
      %v4667 = vlaneseq
      %v4668 = vshrl.u32 %v4667, 7
      %v4669 = vsub.s32 %v4666, %v4668
      %v4670 = vrot.slane %v4662, %v4669
      %v4672 = vunpack.c.l.s4 1983009808
      %v4673 = vunpack.c.0.s8 %v4672
      %v4674 = vlaneseq
      %v4675 = vshrl.u32 %v4674, 7
      %v4676 = vsub.s32 %v4673, %v4675
      %v4677 = vrot.slane %v4663, %v4676
      %v4678 = vcombine.low %v4622, %v4638
      %v4679 = vcombine.high %v4622, %v4638
      %v4681 = vunpack.c.l.s4 1934713408
      %v4682 = vunpack.c.0.s8 %v4681
      %v4683 = vlaneseq
      %v4684 = vshrl.u32 %v4683, 7
      %v4685 = vsub.s32 %v4682, %v4684
      %v4686 = vrot.slane %v4678, %v4685
      %v4688 = vunpack.c.l.s4 1934713408
      %v4689 = vunpack.c.0.s8 %v4688
      %v4690 = vlaneseq
      %v4691 = vshrl.u32 %v4690, 7
      %v4692 = vsub.s32 %v4689, %v4691
      %v4693 = vrot.slane %v4679, %v4692
      %v4694 = vcombine.low %v4629, %v4645
      %v4695 = vcombine.high %v4629, %v4645
      %v4697 = vunpack.c.l.s4 1934713408
      %v4698 = vunpack.c.0.s8 %v4697
      %v4699 = vlaneseq
      %v4700 = vshrl.u32 %v4699, 7
      %v4701 = vsub.s32 %v4698, %v4700
      %v4702 = vrot.slane %v4694, %v4701
      %v4704 = vunpack.c.l.s4 1934713408
      %v4705 = vunpack.c.0.s8 %v4704
      %v4706 = vlaneseq
      %v4707 = vshrl.u32 %v4706, 7
      %v4708 = vsub.s32 %v4705, %v4707
      %v4709 = vrot.slane %v4695, %v4708
      %v4710 = vcombine.low %v4654, %v4670
      %v4711 = vcombine.high %v4654, %v4670
      %v4713 = vunpack.c.l.s4 1934713408
      %v4714 = vunpack.c.0.s8 %v4713
      %v4715 = vlaneseq
      %v4716 = vshrl.u32 %v4715, 7
      %v4717 = vsub.s32 %v4714, %v4716
      %v4718 = vrot.slane %v4710, %v4717
      %v4720 = vunpack.c.l.s4 1934713408
      %v4721 = vunpack.c.0.s8 %v4720
      %v4722 = vlaneseq
      %v4723 = vshrl.u32 %v4722, 7
      %v4724 = vsub.s32 %v4721, %v4723
      %v4725 = vrot.slane %v4711, %v4724
      %v4726 = vcombine.low %v4661, %v4677
      %v4727 = vcombine.high %v4661, %v4677
      %v4729 = vunpack.c.l.s4 1934713408
      %v4730 = vunpack.c.0.s8 %v4729
      %v4731 = vlaneseq
      %v4732 = vshrl.u32 %v4731, 7
      %v4733 = vsub.s32 %v4730, %v4732
      %v4734 = vrot.slane %v4726, %v4733
      %v4736 = vunpack.c.l.s4 1934713408
      %v4737 = vunpack.c.0.s8 %v4736
      %v4738 = vlaneseq
      %v4739 = vshrl.u32 %v4738, 7
      %v4740 = vsub.s32 %v4737, %v4739
      %v4741 = vrot.slane %v4727, %v4740
      %v4742 = vcombine.low %v4686, %v4718
      %v4743 = vcombine.high %v4686, %v4718
      %v4744 = vcombine.low %v4693, %v4725
      %v4745 = vcombine.high %v4693, %v4725
      %v4746 = vcombine.low %v4702, %v4734
      %v4747 = vcombine.high %v4702, %v4734
      %v4748 = vcombine.low %v4709, %v4741
      %v4749 = vcombine.high %v4709, %v4741
      %v4750 = vcombine.low %v4385, %v4393
      %v4751 = vcombine.high %v4385, %v4393
      %v4753 = vunpack.c.l.s4 1983009808
      %v4754 = vunpack.c.0.s8 %v4753
      %v4755 = vlaneseq
      %v4756 = vshrl.u32 %v4755, 7
      %v4757 = vsub.s32 %v4754, %v4756
      %v4758 = vrot.slane %v4750, %v4757
      %v4760 = vunpack.c.l.s4 1983009808
      %v4761 = vunpack.c.0.s8 %v4760
      %v4762 = vlaneseq
      %v4763 = vshrl.u32 %v4762, 7
      %v4764 = vsub.s32 %v4761, %v4763
      %v4765 = vrot.slane %v4751, %v4764
      %v4766 = vcombine.low %v4389, %v4397
      %v4767 = vcombine.high %v4389, %v4397
      %v4769 = vunpack.c.l.s4 1983009808
      %v4770 = vunpack.c.0.s8 %v4769
      %v4771 = vlaneseq
      %v4772 = vshrl.u32 %v4771, 7
      %v4773 = vsub.s32 %v4770, %v4772
      %v4774 = vrot.slane %v4766, %v4773
      %v4776 = vunpack.c.l.s4 1983009808
      %v4777 = vunpack.c.0.s8 %v4776
      %v4778 = vlaneseq
      %v4779 = vshrl.u32 %v4778, 7
      %v4780 = vsub.s32 %v4777, %v4779
      %v4781 = vrot.slane %v4767, %v4780
      %v4782 = vcombine.low %v4401, %v4409
      %v4783 = vcombine.high %v4401, %v4409
      %v4785 = vunpack.c.l.s4 1983009808
      %v4786 = vunpack.c.0.s8 %v4785
      %v4787 = vlaneseq
      %v4788 = vshrl.u32 %v4787, 7
      %v4789 = vsub.s32 %v4786, %v4788
      %v4790 = vrot.slane %v4782, %v4789
      %v4792 = vunpack.c.l.s4 1983009808
      %v4793 = vunpack.c.0.s8 %v4792
      %v4794 = vlaneseq
      %v4795 = vshrl.u32 %v4794, 7
      %v4796 = vsub.s32 %v4793, %v4795
      %v4797 = vrot.slane %v4783, %v4796
      %v4798 = vcombine.low %v4405, %v4413
      %v4799 = vcombine.high %v4405, %v4413
      %v4801 = vunpack.c.l.s4 1983009808
      %v4802 = vunpack.c.0.s8 %v4801
      %v4803 = vlaneseq
      %v4804 = vshrl.u32 %v4803, 7
      %v4805 = vsub.s32 %v4802, %v4804
      %v4806 = vrot.slane %v4798, %v4805
      %v4808 = vunpack.c.l.s4 1983009808
      %v4809 = vunpack.c.0.s8 %v4808
      %v4810 = vlaneseq
      %v4811 = vshrl.u32 %v4810, 7
      %v4812 = vsub.s32 %v4809, %v4811
      %v4813 = vrot.slane %v4799, %v4812
      %v4814 = vcombine.low %v4758, %v4774
      %v4815 = vcombine.high %v4758, %v4774
      %v4817 = vunpack.c.l.s4 1934713408
      %v4818 = vunpack.c.0.s8 %v4817
      %v4819 = vlaneseq
      %v4820 = vshrl.u32 %v4819, 7
      %v4821 = vsub.s32 %v4818, %v4820
      %v4822 = vrot.slane %v4814, %v4821
      %v4824 = vunpack.c.l.s4 1934713408
      %v4825 = vunpack.c.0.s8 %v4824
      %v4826 = vlaneseq
      %v4827 = vshrl.u32 %v4826, 7
      %v4828 = vsub.s32 %v4825, %v4827
      %v4829 = vrot.slane %v4815, %v4828
      %v4830 = vcombine.low %v4765, %v4781
      %v4831 = vcombine.high %v4765, %v4781
      %v4833 = vunpack.c.l.s4 1934713408
      %v4834 = vunpack.c.0.s8 %v4833
      %v4835 = vlaneseq
      %v4836 = vshrl.u32 %v4835, 7
      %v4837 = vsub.s32 %v4834, %v4836
      %v4838 = vrot.slane %v4830, %v4837
      %v4840 = vunpack.c.l.s4 1934713408
      %v4841 = vunpack.c.0.s8 %v4840
      %v4842 = vlaneseq
      %v4843 = vshrl.u32 %v4842, 7
      %v4844 = vsub.s32 %v4841, %v4843
      %v4845 = vrot.slane %v4831, %v4844
      %v4846 = vcombine.low %v4790, %v4806
      %v4847 = vcombine.high %v4790, %v4806
      %v4849 = vunpack.c.l.s4 1934713408
      %v4850 = vunpack.c.0.s8 %v4849
      %v4851 = vlaneseq
      %v4852 = vshrl.u32 %v4851, 7
      %v4853 = vsub.s32 %v4850, %v4852
      %v4854 = vrot.slane %v4846, %v4853
      %v4856 = vunpack.c.l.s4 1934713408
      %v4857 = vunpack.c.0.s8 %v4856
      %v4858 = vlaneseq
      %v4859 = vshrl.u32 %v4858, 7
      %v4860 = vsub.s32 %v4857, %v4859
      %v4861 = vrot.slane %v4847, %v4860
      %v4862 = vcombine.low %v4797, %v4813
      %v4863 = vcombine.high %v4797, %v4813
      %v4865 = vunpack.c.l.s4 1934713408
      %v4866 = vunpack.c.0.s8 %v4865
      %v4867 = vlaneseq
      %v4868 = vshrl.u32 %v4867, 7
      %v4869 = vsub.s32 %v4866, %v4868
      %v4870 = vrot.slane %v4862, %v4869
      %v4872 = vunpack.c.l.s4 1934713408
      %v4873 = vunpack.c.0.s8 %v4872
      %v4874 = vlaneseq
      %v4875 = vshrl.u32 %v4874, 7
      %v4876 = vsub.s32 %v4873, %v4875
      %v4877 = vrot.slane %v4863, %v4876
      %v4878 = vcombine.low %v4822, %v4854
      %v4879 = vcombine.high %v4822, %v4854
      %v4880 = vcombine.low %v4829, %v4861
      %v4881 = vcombine.high %v4829, %v4861
      %v4882 = vcombine.low %v4838, %v4870
      %v4883 = vcombine.high %v4838, %v4870
      %v4884 = vcombine.low %v4845, %v4877
      %v4885 = vcombine.high %v4845, %v4877
      %v4886 = vcombine.low %v4417, %v4425
      %v4887 = vcombine.high %v4417, %v4425
      %v4889 = vunpack.c.l.s4 1983009808
      %v4890 = vunpack.c.0.s8 %v4889
      %v4891 = vlaneseq
      %v4892 = vshrl.u32 %v4891, 7
      %v4893 = vsub.s32 %v4890, %v4892
      %v4894 = vrot.slane %v4886, %v4893
      %v4896 = vunpack.c.l.s4 1983009808
      %v4897 = vunpack.c.0.s8 %v4896
      %v4898 = vlaneseq
      %v4899 = vshrl.u32 %v4898, 7
      %v4900 = vsub.s32 %v4897, %v4899
      %v4901 = vrot.slane %v4887, %v4900
      %v4902 = vcombine.low %v4421, %v4429
      %v4903 = vcombine.high %v4421, %v4429
      %v4905 = vunpack.c.l.s4 1983009808
      %v4906 = vunpack.c.0.s8 %v4905
      %v4907 = vlaneseq
      %v4908 = vshrl.u32 %v4907, 7
      %v4909 = vsub.s32 %v4906, %v4908
      %v4910 = vrot.slane %v4902, %v4909
      %v4912 = vunpack.c.l.s4 1983009808
      %v4913 = vunpack.c.0.s8 %v4912
      %v4914 = vlaneseq
      %v4915 = vshrl.u32 %v4914, 7
      %v4916 = vsub.s32 %v4913, %v4915
      %v4917 = vrot.slane %v4903, %v4916
      %v4918 = vcombine.low %v4433, %v4441
      %v4919 = vcombine.high %v4433, %v4441
      %v4921 = vunpack.c.l.s4 1983009808
      %v4922 = vunpack.c.0.s8 %v4921
      %v4923 = vlaneseq
      %v4924 = vshrl.u32 %v4923, 7
      %v4925 = vsub.s32 %v4922, %v4924
      %v4926 = vrot.slane %v4918, %v4925
      %v4928 = vunpack.c.l.s4 1983009808
      %v4929 = vunpack.c.0.s8 %v4928
      %v4930 = vlaneseq
      %v4931 = vshrl.u32 %v4930, 7
      %v4932 = vsub.s32 %v4929, %v4931
      %v4933 = vrot.slane %v4919, %v4932
      %v4934 = vcombine.low %v4437, %v4445
      %v4935 = vcombine.high %v4437, %v4445
      %v4937 = vunpack.c.l.s4 1983009808
      %v4938 = vunpack.c.0.s8 %v4937
      %v4939 = vlaneseq
      %v4940 = vshrl.u32 %v4939, 7
      %v4941 = vsub.s32 %v4938, %v4940
      %v4942 = vrot.slane %v4934, %v4941
      %v4944 = vunpack.c.l.s4 1983009808
      %v4945 = vunpack.c.0.s8 %v4944
      %v4946 = vlaneseq
      %v4947 = vshrl.u32 %v4946, 7
      %v4948 = vsub.s32 %v4945, %v4947
      %v4949 = vrot.slane %v4935, %v4948
      %v4950 = vcombine.low %v4894, %v4910
      %v4951 = vcombine.high %v4894, %v4910
      %v4953 = vunpack.c.l.s4 1934713408
      %v4954 = vunpack.c.0.s8 %v4953
      %v4955 = vlaneseq
      %v4956 = vshrl.u32 %v4955, 7
      %v4957 = vsub.s32 %v4954, %v4956
      %v4958 = vrot.slane %v4950, %v4957
      %v4960 = vunpack.c.l.s4 1934713408
      %v4961 = vunpack.c.0.s8 %v4960
      %v4962 = vlaneseq
      %v4963 = vshrl.u32 %v4962, 7
      %v4964 = vsub.s32 %v4961, %v4963
      %v4965 = vrot.slane %v4951, %v4964
      %v4966 = vcombine.low %v4901, %v4917
      %v4967 = vcombine.high %v4901, %v4917
      %v4969 = vunpack.c.l.s4 1934713408
      %v4970 = vunpack.c.0.s8 %v4969
      %v4971 = vlaneseq
      %v4972 = vshrl.u32 %v4971, 7
      %v4973 = vsub.s32 %v4970, %v4972
      %v4974 = vrot.slane %v4966, %v4973
      %v4976 = vunpack.c.l.s4 1934713408
      %v4977 = vunpack.c.0.s8 %v4976
      %v4978 = vlaneseq
      %v4979 = vshrl.u32 %v4978, 7
      %v4980 = vsub.s32 %v4977, %v4979
      %v4981 = vrot.slane %v4967, %v4980
      %v4982 = vcombine.low %v4926, %v4942
      %v4983 = vcombine.high %v4926, %v4942
      %v4985 = vunpack.c.l.s4 1934713408
      %v4986 = vunpack.c.0.s8 %v4985
      %v4987 = vlaneseq
      %v4988 = vshrl.u32 %v4987, 7
      %v4989 = vsub.s32 %v4986, %v4988
      %v4990 = vrot.slane %v4982, %v4989
      %v4992 = vunpack.c.l.s4 1934713408
      %v4993 = vunpack.c.0.s8 %v4992
      %v4994 = vlaneseq
      %v4995 = vshrl.u32 %v4994, 7
      %v4996 = vsub.s32 %v4993, %v4995
      %v4997 = vrot.slane %v4983, %v4996
      %v4998 = vcombine.low %v4933, %v4949
      %v4999 = vcombine.high %v4933, %v4949
      %v5001 = vunpack.c.l.s4 1934713408
      %v5002 = vunpack.c.0.s8 %v5001
      %v5003 = vlaneseq
      %v5004 = vshrl.u32 %v5003, 7
      %v5005 = vsub.s32 %v5002, %v5004
      %v5006 = vrot.slane %v4998, %v5005
      %v5008 = vunpack.c.l.s4 1934713408
      %v5009 = vunpack.c.0.s8 %v5008
      %v5010 = vlaneseq
      %v5011 = vshrl.u32 %v5010, 7
      %v5012 = vsub.s32 %v5009, %v5011
      %v5013 = vrot.slane %v4999, %v5012
      %v5014 = vcombine.low %v4958, %v4990
      %v5015 = vcombine.high %v4958, %v4990
      %v5016 = vcombine.low %v4965, %v4997
      %v5017 = vcombine.high %v4965, %v4997
      %v5018 = vcombine.low %v4974, %v5006
      %v5019 = vcombine.high %v4974, %v5006
      %v5020 = vcombine.low %v4981, %v5013
      %v5021 = vcombine.high %v4981, %v5013
      %5024 = vrot.lane.b32.xlu0 %v4607, 16
      %v5025 = vpop.permute.xlu0 %5024
      %5026 = vrot.lane.b32.xlu0 %v4743, 16
      %v5027 = vpop.permute.xlu0 %5026
      %5032 = vrot.lane.b32.xlu0 %v4608, 32
      %v5033 = vpop.permute.xlu0 %5032
      %5034 = vrot.lane.b32.xlu0 %v4744, 32
      %v5035 = vpop.permute.xlu0 %5034
      %5040 = vrot.lane.b32.xlu0 %v4609, 48
      %v5041 = vpop.permute.xlu0 %5040
      %5042 = vrot.lane.b32.xlu0 %v4745, 48
      %v5043 = vpop.permute.xlu0 %5042
      %5048 = vrot.lane.b32.xlu0 %v4610, 64
      %v5049 = vpop.permute.xlu0 %5048
      %5050 = vrot.lane.b32.xlu0 %v4746, 64
      %v5051 = vpop.permute.xlu0 %5050
      %5056 = vrot.lane.b32.xlu0 %v4611, 80
      %v5057 = vpop.permute.xlu0 %5056
      %5058 = vrot.lane.b32.xlu0 %v4747, 80
      %v5059 = vpop.permute.xlu0 %5058
      %5064 = vrot.lane.b32.xlu0 %v4612, 96
      %v5065 = vpop.permute.xlu0 %5064
      %5066 = vrot.lane.b32.xlu0 %v4748, 96
      %v5067 = vpop.permute.xlu0 %5066
      %5072 = vrot.lane.b32.xlu0 %v4613, 112
      %v5073 = vpop.permute.xlu0 %5072
      %5074 = vrot.lane.b32.xlu0 %v4749, 112
      %v5075 = vpop.permute.xlu0 %5074
      %5080 = vrot.lane.b32.xlu0 %v4879, 16
      %v5081 = vpop.permute.xlu0 %5080
      %5082 = vrot.lane.b32.xlu0 %v5015, 16
      %v5083 = vpop.permute.xlu0 %5082
      %5088 = vrot.lane.b32.xlu0 %v4880, 32
      %v5089 = vpop.permute.xlu0 %5088
      %5090 = vrot.lane.b32.xlu0 %v5016, 32
      %v5091 = vpop.permute.xlu0 %5090
      %5096 = vrot.lane.b32.xlu0 %v4881, 48
      %v5097 = vpop.permute.xlu0 %5096
      %5098 = vrot.lane.b32.xlu0 %v5017, 48
      %v5099 = vpop.permute.xlu0 %5098
      %5104 = vrot.lane.b32.xlu0 %v4882, 64
      %v5105 = vpop.permute.xlu0 %5104
      %5106 = vrot.lane.b32.xlu0 %v5018, 64
      %v5107 = vpop.permute.xlu0 %5106
      %5112 = vrot.lane.b32.xlu0 %v4883, 80
      %v5113 = vpop.permute.xlu0 %5112
      %5114 = vrot.lane.b32.xlu0 %v5019, 80
      %v5115 = vpop.permute.xlu0 %5114
      %5120 = vrot.lane.b32.xlu0 %v4884, 96
      %v5121 = vpop.permute.xlu0 %5120
      %5122 = vrot.lane.b32.xlu0 %v5020, 96
      %v5123 = vpop.permute.xlu0 %5122
      %5128 = vrot.lane.b32.xlu0 %v4885, 112
      %v5129 = vpop.permute.xlu0 %5128
      %5130 = vrot.lane.b32.xlu0 %v5021, 112
      %v5131 = vpop.permute.xlu0 %5130
      %v5134 = vsel %vm1015, %v4606, %v5025
      %v5135 = vsel %vm1015, %v4742, %v5027
      %v5136 = vsel %vm1018, %v5134, %v5033
      %v5137 = vsel %vm1018, %v5135, %v5035
      %v5138 = vsel %vm1021, %v5136, %v5041
      %v5139 = vsel %vm1021, %v5137, %v5043
      %v5140 = vsel %vm1024, %v5138, %v5049
      %v5141 = vsel %vm1024, %v5139, %v5051
      %v5142 = vsel %vm1027, %v5140, %v5057
      %v5143 = vsel %vm1027, %v5141, %v5059
      %v5144 = vsel %vm1030, %v5142, %v5065
      %v5145 = vsel %vm1030, %v5143, %v5067
      %v5146 = vsel %vm1033, %v5144, %v5073
      %v5147 = vsel %vm1033, %v5145, %v5075
      %v5148 = vsel %vm1015, %v4878, %v5081
      %v5149 = vsel %vm1015, %v5014, %v5083
      %v5150 = vsel %vm1018, %v5148, %v5089
      %v5151 = vsel %vm1018, %v5149, %v5091
      %v5152 = vsel %vm1021, %v5150, %v5097
      %v5153 = vsel %vm1021, %v5151, %v5099
      %v5154 = vsel %vm1024, %v5152, %v5105
      %v5155 = vsel %vm1024, %v5153, %v5107
      %v5156 = vsel %vm1027, %v5154, %v5113
      %v5157 = vsel %vm1027, %v5155, %v5115
      %v5158 = vsel %vm1030, %v5156, %v5121
      %v5159 = vsel %vm1030, %v5157, %v5123
      %v5160 = vsel %vm1033, %v5158, %v5129
      %v5161 = vsel %vm1033, %v5159, %v5131
      %v5162 = vpack.c.bf16 %v5147, %v5146
      %v5163 = vpack.c.bf16 %v5161, %v5160
      %5164 = vst [vmem:[#allocation3 + $0x50] sm:$0xff] %v5162
      %5165 = vst [vmem:[#allocation3 + $0x58] sm:$0xff] %v5163
      %v5166 = vld [vmem:[#allocation2 + $0x2] sm:$0xff]
      %v5167 = vld [vmem:[#allocation2 + $0xa] sm:$0xff]
      %v5168 = vld [vmem:[#allocation2 + $0x1a] sm:$0xff]
      %v5169 = vld [vmem:[#allocation2 + $0x22] sm:$0xff]
      %v5170 = vld [vmem:[#allocation2 + $0x32] sm:$0xff]
      %v5171 = vld [vmem:[#allocation2 + $0x3a] sm:$0xff]
      %v5172 = vld [vmem:[#allocation2 + $0x4a] sm:$0xff]
      %v5173 = vld [vmem:[#allocation2 + $0x52] sm:$0xff]
      %v5174 = vld [vmem:[#allocation2 + $0x62] sm:$0xff]
      %v5175 = vld [vmem:[#allocation2 + $0x6a] sm:$0xff]
      %v5176 = vld [vmem:[#allocation2 + $0x7a] sm:$0xff]
      %v5177 = vld [vmem:[#allocation2 + $0x82] sm:$0xff]
      %v5178 = vld [vmem:[#allocation2 + $0x92] sm:$0xff]
      %v5179 = vld [vmem:[#allocation2 + $0x9a] sm:$0xff]
      %v5180 = vld [vmem:[#allocation2 + $0xaa] sm:$0xff]
      %v5181 = vld [vmem:[#allocation2 + $0xb2] sm:$0xff]
      %v5182 = vld [vmem:[#allocation2 + $0xc2] sm:$0xff]
      %v5183 = vld [vmem:[#allocation2 + $0xca] sm:$0xff]
      %v5184 = vld [vmem:[#allocation2 + $0xda] sm:$0xff]
      %v5185 = vld [vmem:[#allocation2 + $0xe2] sm:$0xff]
      %v5186 = vld [vmem:[#allocation2 + $0xf2] sm:$0xff]
      %v5187 = vld [vmem:[#allocation2 + $0xfa] sm:$0xff]
      %v5188 = vld [vmem:[#allocation2 + $0x10a] sm:$0xff]
      %v5189 = vld [vmem:[#allocation2 + $0x112] sm:$0xff]
      %v5190 = vld [vmem:[#allocation2 + $0x122] sm:$0xff]
      %v5191 = vld [vmem:[#allocation2 + $0x12a] sm:$0xff]
      %v5192 = vld [vmem:[#allocation2 + $0x13a] sm:$0xff]
      %v5193 = vld [vmem:[#allocation2 + $0x142] sm:$0xff]
      %v5194 = vld [vmem:[#allocation2 + $0x152] sm:$0xff]
      %v5195 = vld [vmem:[#allocation2 + $0x15a] sm:$0xff]
      %v5196 = vld [vmem:[#allocation2 + $0x16a] sm:$0xff]
      %v5197 = vld [vmem:[#allocation2 + $0x172] sm:$0xff]
      %v5198 = vcombine.low %v5166, %v5170
      %v5199 = vcombine.high %v5166, %v5170
      %v5201 = vunpack.c.l.s4 1983009808
      %v5202 = vunpack.c.0.s8 %v5201
      %v5203 = vlaneseq
      %v5204 = vshrl.u32 %v5203, 7
      %v5205 = vsub.s32 %v5202, %v5204
      %v5206 = vrot.slane %v5198, %v5205
      %v5208 = vunpack.c.l.s4 1983009808
      %v5209 = vunpack.c.0.s8 %v5208
      %v5210 = vlaneseq
      %v5211 = vshrl.u32 %v5210, 7
      %v5212 = vsub.s32 %v5209, %v5211
      %v5213 = vrot.slane %v5199, %v5212
      %v5214 = vcombine.low %v5168, %v5172
      %v5215 = vcombine.high %v5168, %v5172
      %v5217 = vunpack.c.l.s4 1983009808
      %v5218 = vunpack.c.0.s8 %v5217
      %v5219 = vlaneseq
      %v5220 = vshrl.u32 %v5219, 7
      %v5221 = vsub.s32 %v5218, %v5220
      %v5222 = vrot.slane %v5214, %v5221
      %v5224 = vunpack.c.l.s4 1983009808
      %v5225 = vunpack.c.0.s8 %v5224
      %v5226 = vlaneseq
      %v5227 = vshrl.u32 %v5226, 7
      %v5228 = vsub.s32 %v5225, %v5227
      %v5229 = vrot.slane %v5215, %v5228
      %v5230 = vcombine.low %v5174, %v5178
      %v5231 = vcombine.high %v5174, %v5178
      %v5233 = vunpack.c.l.s4 1983009808
      %v5234 = vunpack.c.0.s8 %v5233
      %v5235 = vlaneseq
      %v5236 = vshrl.u32 %v5235, 7
      %v5237 = vsub.s32 %v5234, %v5236
      %v5238 = vrot.slane %v5230, %v5237
      %v5240 = vunpack.c.l.s4 1983009808
      %v5241 = vunpack.c.0.s8 %v5240
      %v5242 = vlaneseq
      %v5243 = vshrl.u32 %v5242, 7
      %v5244 = vsub.s32 %v5241, %v5243
      %v5245 = vrot.slane %v5231, %v5244
      %v5246 = vcombine.low %v5176, %v5180
      %v5247 = vcombine.high %v5176, %v5180
      %v5249 = vunpack.c.l.s4 1983009808
      %v5250 = vunpack.c.0.s8 %v5249
      %v5251 = vlaneseq
      %v5252 = vshrl.u32 %v5251, 7
      %v5253 = vsub.s32 %v5250, %v5252
      %v5254 = vrot.slane %v5246, %v5253
      %v5256 = vunpack.c.l.s4 1983009808
      %v5257 = vunpack.c.0.s8 %v5256
      %v5258 = vlaneseq
      %v5259 = vshrl.u32 %v5258, 7
      %v5260 = vsub.s32 %v5257, %v5259
      %v5261 = vrot.slane %v5247, %v5260
      %v5262 = vcombine.low %v5206, %v5222
      %v5263 = vcombine.high %v5206, %v5222
      %v5265 = vunpack.c.l.s4 1934713408
      %v5266 = vunpack.c.0.s8 %v5265
      %v5267 = vlaneseq
      %v5268 = vshrl.u32 %v5267, 7
      %v5269 = vsub.s32 %v5266, %v5268
      %v5270 = vrot.slane %v5262, %v5269
      %v5272 = vunpack.c.l.s4 1934713408
      %v5273 = vunpack.c.0.s8 %v5272
      %v5274 = vlaneseq
      %v5275 = vshrl.u32 %v5274, 7
      %v5276 = vsub.s32 %v5273, %v5275
      %v5277 = vrot.slane %v5263, %v5276
      %v5278 = vcombine.low %v5213, %v5229
      %v5279 = vcombine.high %v5213, %v5229
      %v5281 = vunpack.c.l.s4 1934713408
      %v5282 = vunpack.c.0.s8 %v5281
      %v5283 = vlaneseq
      %v5284 = vshrl.u32 %v5283, 7
      %v5285 = vsub.s32 %v5282, %v5284
      %v5286 = vrot.slane %v5278, %v5285
      %v5288 = vunpack.c.l.s4 1934713408
      %v5289 = vunpack.c.0.s8 %v5288
      %v5290 = vlaneseq
      %v5291 = vshrl.u32 %v5290, 7
      %v5292 = vsub.s32 %v5289, %v5291
      %v5293 = vrot.slane %v5279, %v5292
      %v5294 = vcombine.low %v5238, %v5254
      %v5295 = vcombine.high %v5238, %v5254
      %v5297 = vunpack.c.l.s4 1934713408
      %v5298 = vunpack.c.0.s8 %v5297
      %v5299 = vlaneseq
      %v5300 = vshrl.u32 %v5299, 7
      %v5301 = vsub.s32 %v5298, %v5300
      %v5302 = vrot.slane %v5294, %v5301
      %v5304 = vunpack.c.l.s4 1934713408
      %v5305 = vunpack.c.0.s8 %v5304
      %v5306 = vlaneseq
      %v5307 = vshrl.u32 %v5306, 7
      %v5308 = vsub.s32 %v5305, %v5307
      %v5309 = vrot.slane %v5295, %v5308
      %v5310 = vcombine.low %v5245, %v5261
      %v5311 = vcombine.high %v5245, %v5261
      %v5313 = vunpack.c.l.s4 1934713408
      %v5314 = vunpack.c.0.s8 %v5313
      %v5315 = vlaneseq
      %v5316 = vshrl.u32 %v5315, 7
      %v5317 = vsub.s32 %v5314, %v5316
      %v5318 = vrot.slane %v5310, %v5317
      %v5320 = vunpack.c.l.s4 1934713408
      %v5321 = vunpack.c.0.s8 %v5320
      %v5322 = vlaneseq
      %v5323 = vshrl.u32 %v5322, 7
      %v5324 = vsub.s32 %v5321, %v5323
      %v5325 = vrot.slane %v5311, %v5324
      %v5326 = vcombine.low %v5270, %v5302
      %v5327 = vcombine.high %v5270, %v5302
      %v5328 = vcombine.low %v5277, %v5309
      %v5329 = vcombine.high %v5277, %v5309
      %v5330 = vcombine.low %v5286, %v5318
      %v5331 = vcombine.high %v5286, %v5318
      %v5332 = vcombine.low %v5293, %v5325
      %v5333 = vcombine.high %v5293, %v5325
      %v5334 = vcombine.low %v5182, %v5186
      %v5335 = vcombine.high %v5182, %v5186
      %v5337 = vunpack.c.l.s4 1983009808
      %v5338 = vunpack.c.0.s8 %v5337
      %v5339 = vlaneseq
      %v5340 = vshrl.u32 %v5339, 7
      %v5341 = vsub.s32 %v5338, %v5340
      %v5342 = vrot.slane %v5334, %v5341
      %v5344 = vunpack.c.l.s4 1983009808
      %v5345 = vunpack.c.0.s8 %v5344
      %v5346 = vlaneseq
      %v5347 = vshrl.u32 %v5346, 7
      %v5348 = vsub.s32 %v5345, %v5347
      %v5349 = vrot.slane %v5335, %v5348
      %v5350 = vcombine.low %v5184, %v5188
      %v5351 = vcombine.high %v5184, %v5188
      %v5353 = vunpack.c.l.s4 1983009808
      %v5354 = vunpack.c.0.s8 %v5353
      %v5355 = vlaneseq
      %v5356 = vshrl.u32 %v5355, 7
      %v5357 = vsub.s32 %v5354, %v5356
      %v5358 = vrot.slane %v5350, %v5357
      %v5360 = vunpack.c.l.s4 1983009808
      %v5361 = vunpack.c.0.s8 %v5360
      %v5362 = vlaneseq
      %v5363 = vshrl.u32 %v5362, 7
      %v5364 = vsub.s32 %v5361, %v5363
      %v5365 = vrot.slane %v5351, %v5364
      %v5366 = vcombine.low %v5190, %v5194
      %v5367 = vcombine.high %v5190, %v5194
      %v5369 = vunpack.c.l.s4 1983009808
      %v5370 = vunpack.c.0.s8 %v5369
      %v5371 = vlaneseq
      %v5372 = vshrl.u32 %v5371, 7
      %v5373 = vsub.s32 %v5370, %v5372
      %v5374 = vrot.slane %v5366, %v5373
      %v5376 = vunpack.c.l.s4 1983009808
      %v5377 = vunpack.c.0.s8 %v5376
      %v5378 = vlaneseq
      %v5379 = vshrl.u32 %v5378, 7
      %v5380 = vsub.s32 %v5377, %v5379
      %v5381 = vrot.slane %v5367, %v5380
      %v5382 = vcombine.low %v5192, %v5196
      %v5383 = vcombine.high %v5192, %v5196
      %v5385 = vunpack.c.l.s4 1983009808
      %v5386 = vunpack.c.0.s8 %v5385
      %v5387 = vlaneseq
      %v5388 = vshrl.u32 %v5387, 7
      %v5389 = vsub.s32 %v5386, %v5388
      %v5390 = vrot.slane %v5382, %v5389
      %v5392 = vunpack.c.l.s4 1983009808
      %v5393 = vunpack.c.0.s8 %v5392
      %v5394 = vlaneseq
      %v5395 = vshrl.u32 %v5394, 7
      %v5396 = vsub.s32 %v5393, %v5395
      %v5397 = vrot.slane %v5383, %v5396
      %v5398 = vcombine.low %v5342, %v5358
      %v5399 = vcombine.high %v5342, %v5358
      %v5401 = vunpack.c.l.s4 1934713408
      %v5402 = vunpack.c.0.s8 %v5401
      %v5403 = vlaneseq
      %v5404 = vshrl.u32 %v5403, 7
      %v5405 = vsub.s32 %v5402, %v5404
      %v5406 = vrot.slane %v5398, %v5405
      %v5408 = vunpack.c.l.s4 1934713408
      %v5409 = vunpack.c.0.s8 %v5408
      %v5410 = vlaneseq
      %v5411 = vshrl.u32 %v5410, 7
      %v5412 = vsub.s32 %v5409, %v5411
      %v5413 = vrot.slane %v5399, %v5412
      %v5414 = vcombine.low %v5349, %v5365
      %v5415 = vcombine.high %v5349, %v5365
      %v5417 = vunpack.c.l.s4 1934713408
      %v5418 = vunpack.c.0.s8 %v5417
      %v5419 = vlaneseq
      %v5420 = vshrl.u32 %v5419, 7
      %v5421 = vsub.s32 %v5418, %v5420
      %v5422 = vrot.slane %v5414, %v5421
      %v5424 = vunpack.c.l.s4 1934713408
      %v5425 = vunpack.c.0.s8 %v5424
      %v5426 = vlaneseq
      %v5427 = vshrl.u32 %v5426, 7
      %v5428 = vsub.s32 %v5425, %v5427
      %v5429 = vrot.slane %v5415, %v5428
      %v5430 = vcombine.low %v5374, %v5390
      %v5431 = vcombine.high %v5374, %v5390
      %v5433 = vunpack.c.l.s4 1934713408
      %v5434 = vunpack.c.0.s8 %v5433
      %v5435 = vlaneseq
      %v5436 = vshrl.u32 %v5435, 7
      %v5437 = vsub.s32 %v5434, %v5436
      %v5438 = vrot.slane %v5430, %v5437
      %v5440 = vunpack.c.l.s4 1934713408
      %v5441 = vunpack.c.0.s8 %v5440
      %v5442 = vlaneseq
      %v5443 = vshrl.u32 %v5442, 7
      %v5444 = vsub.s32 %v5441, %v5443
      %v5445 = vrot.slane %v5431, %v5444
      %v5446 = vcombine.low %v5381, %v5397
      %v5447 = vcombine.high %v5381, %v5397
      %v5449 = vunpack.c.l.s4 1934713408
      %v5450 = vunpack.c.0.s8 %v5449
      %v5451 = vlaneseq
      %v5452 = vshrl.u32 %v5451, 7
      %v5453 = vsub.s32 %v5450, %v5452
      %v5454 = vrot.slane %v5446, %v5453
      %v5456 = vunpack.c.l.s4 1934713408
      %v5457 = vunpack.c.0.s8 %v5456
      %v5458 = vlaneseq
      %v5459 = vshrl.u32 %v5458, 7
      %v5460 = vsub.s32 %v5457, %v5459
      %v5461 = vrot.slane %v5447, %v5460
      %v5462 = vcombine.low %v5406, %v5438
      %v5463 = vcombine.high %v5406, %v5438
      %v5464 = vcombine.low %v5413, %v5445
      %v5465 = vcombine.high %v5413, %v5445
      %v5466 = vcombine.low %v5422, %v5454
      %v5467 = vcombine.high %v5422, %v5454
      %v5468 = vcombine.low %v5429, %v5461
      %v5469 = vcombine.high %v5429, %v5461
      %v5470 = vcombine.low %v5167, %v5171
      %v5471 = vcombine.high %v5167, %v5171
      %v5473 = vunpack.c.l.s4 1983009808
      %v5474 = vunpack.c.0.s8 %v5473
      %v5475 = vlaneseq
      %v5476 = vshrl.u32 %v5475, 7
      %v5477 = vsub.s32 %v5474, %v5476
      %v5478 = vrot.slane %v5470, %v5477
      %v5480 = vunpack.c.l.s4 1983009808
      %v5481 = vunpack.c.0.s8 %v5480
      %v5482 = vlaneseq
      %v5483 = vshrl.u32 %v5482, 7
      %v5484 = vsub.s32 %v5481, %v5483
      %v5485 = vrot.slane %v5471, %v5484
      %v5486 = vcombine.low %v5169, %v5173
      %v5487 = vcombine.high %v5169, %v5173
      %v5489 = vunpack.c.l.s4 1983009808
      %v5490 = vunpack.c.0.s8 %v5489
      %v5491 = vlaneseq
      %v5492 = vshrl.u32 %v5491, 7
      %v5493 = vsub.s32 %v5490, %v5492
      %v5494 = vrot.slane %v5486, %v5493
      %v5496 = vunpack.c.l.s4 1983009808
      %v5497 = vunpack.c.0.s8 %v5496
      %v5498 = vlaneseq
      %v5499 = vshrl.u32 %v5498, 7
      %v5500 = vsub.s32 %v5497, %v5499
      %v5501 = vrot.slane %v5487, %v5500
      %v5502 = vcombine.low %v5175, %v5179
      %v5503 = vcombine.high %v5175, %v5179
      %v5505 = vunpack.c.l.s4 1983009808
      %v5506 = vunpack.c.0.s8 %v5505
      %v5507 = vlaneseq
      %v5508 = vshrl.u32 %v5507, 7
      %v5509 = vsub.s32 %v5506, %v5508
      %v5510 = vrot.slane %v5502, %v5509
      %v5512 = vunpack.c.l.s4 1983009808
      %v5513 = vunpack.c.0.s8 %v5512
      %v5514 = vlaneseq
      %v5515 = vshrl.u32 %v5514, 7
      %v5516 = vsub.s32 %v5513, %v5515
      %v5517 = vrot.slane %v5503, %v5516
      %v5518 = vcombine.low %v5177, %v5181
      %v5519 = vcombine.high %v5177, %v5181
      %v5521 = vunpack.c.l.s4 1983009808
      %v5522 = vunpack.c.0.s8 %v5521
      %v5523 = vlaneseq
      %v5524 = vshrl.u32 %v5523, 7
      %v5525 = vsub.s32 %v5522, %v5524
      %v5526 = vrot.slane %v5518, %v5525
      %v5528 = vunpack.c.l.s4 1983009808
      %v5529 = vunpack.c.0.s8 %v5528
      %v5530 = vlaneseq
      %v5531 = vshrl.u32 %v5530, 7
      %v5532 = vsub.s32 %v5529, %v5531
      %v5533 = vrot.slane %v5519, %v5532
      %v5534 = vcombine.low %v5478, %v5494
      %v5535 = vcombine.high %v5478, %v5494
      %v5537 = vunpack.c.l.s4 1934713408
      %v5538 = vunpack.c.0.s8 %v5537
      %v5539 = vlaneseq
      %v5540 = vshrl.u32 %v5539, 7
      %v5541 = vsub.s32 %v5538, %v5540
      %v5542 = vrot.slane %v5534, %v5541
      %v5544 = vunpack.c.l.s4 1934713408
      %v5545 = vunpack.c.0.s8 %v5544
      %v5546 = vlaneseq
      %v5547 = vshrl.u32 %v5546, 7
      %v5548 = vsub.s32 %v5545, %v5547
      %v5549 = vrot.slane %v5535, %v5548
      %v5550 = vcombine.low %v5485, %v5501
      %v5551 = vcombine.high %v5485, %v5501
      %v5553 = vunpack.c.l.s4 1934713408
      %v5554 = vunpack.c.0.s8 %v5553
      %v5555 = vlaneseq
      %v5556 = vshrl.u32 %v5555, 7
      %v5557 = vsub.s32 %v5554, %v5556
      %v5558 = vrot.slane %v5550, %v5557
      %v5560 = vunpack.c.l.s4 1934713408
      %v5561 = vunpack.c.0.s8 %v5560
      %v5562 = vlaneseq
      %v5563 = vshrl.u32 %v5562, 7
      %v5564 = vsub.s32 %v5561, %v5563
      %v5565 = vrot.slane %v5551, %v5564
      %v5566 = vcombine.low %v5510, %v5526
      %v5567 = vcombine.high %v5510, %v5526
      %v5569 = vunpack.c.l.s4 1934713408
      %v5570 = vunpack.c.0.s8 %v5569
      %v5571 = vlaneseq
      %v5572 = vshrl.u32 %v5571, 7
      %v5573 = vsub.s32 %v5570, %v5572
      %v5574 = vrot.slane %v5566, %v5573
      %v5576 = vunpack.c.l.s4 1934713408
      %v5577 = vunpack.c.0.s8 %v5576
      %v5578 = vlaneseq
      %v5579 = vshrl.u32 %v5578, 7
      %v5580 = vsub.s32 %v5577, %v5579
      %v5581 = vrot.slane %v5567, %v5580
      %v5582 = vcombine.low %v5517, %v5533
      %v5583 = vcombine.high %v5517, %v5533
      %v5585 = vunpack.c.l.s4 1934713408
      %v5586 = vunpack.c.0.s8 %v5585
      %v5587 = vlaneseq
      %v5588 = vshrl.u32 %v5587, 7
      %v5589 = vsub.s32 %v5586, %v5588
      %v5590 = vrot.slane %v5582, %v5589
      %v5592 = vunpack.c.l.s4 1934713408
      %v5593 = vunpack.c.0.s8 %v5592
      %v5594 = vlaneseq
      %v5595 = vshrl.u32 %v5594, 7
      %v5596 = vsub.s32 %v5593, %v5595
      %v5597 = vrot.slane %v5583, %v5596
      %v5598 = vcombine.low %v5542, %v5574
      %v5599 = vcombine.high %v5542, %v5574
      %v5600 = vcombine.low %v5549, %v5581
      %v5601 = vcombine.high %v5549, %v5581
      %v5602 = vcombine.low %v5558, %v5590
      %v5603 = vcombine.high %v5558, %v5590
      %v5604 = vcombine.low %v5565, %v5597
      %v5605 = vcombine.high %v5565, %v5597
      %v5606 = vcombine.low %v5183, %v5187
      %v5607 = vcombine.high %v5183, %v5187
      %v5609 = vunpack.c.l.s4 1983009808
      %v5610 = vunpack.c.0.s8 %v5609
      %v5611 = vlaneseq
      %v5612 = vshrl.u32 %v5611, 7
      %v5613 = vsub.s32 %v5610, %v5612
      %v5614 = vrot.slane %v5606, %v5613
      %v5616 = vunpack.c.l.s4 1983009808
      %v5617 = vunpack.c.0.s8 %v5616
      %v5618 = vlaneseq
      %v5619 = vshrl.u32 %v5618, 7
      %v5620 = vsub.s32 %v5617, %v5619
      %v5621 = vrot.slane %v5607, %v5620
      %v5622 = vcombine.low %v5185, %v5189
      %v5623 = vcombine.high %v5185, %v5189
      %v5625 = vunpack.c.l.s4 1983009808
      %v5626 = vunpack.c.0.s8 %v5625
      %v5627 = vlaneseq
      %v5628 = vshrl.u32 %v5627, 7
      %v5629 = vsub.s32 %v5626, %v5628
      %v5630 = vrot.slane %v5622, %v5629
      %v5632 = vunpack.c.l.s4 1983009808
      %v5633 = vunpack.c.0.s8 %v5632
      %v5634 = vlaneseq
      %v5635 = vshrl.u32 %v5634, 7
      %v5636 = vsub.s32 %v5633, %v5635
      %v5637 = vrot.slane %v5623, %v5636
      %v5638 = vcombine.low %v5191, %v5195
      %v5639 = vcombine.high %v5191, %v5195
      %v5641 = vunpack.c.l.s4 1983009808
      %v5642 = vunpack.c.0.s8 %v5641
      %v5643 = vlaneseq
      %v5644 = vshrl.u32 %v5643, 7
      %v5645 = vsub.s32 %v5642, %v5644
      %v5646 = vrot.slane %v5638, %v5645
      %v5648 = vunpack.c.l.s4 1983009808
      %v5649 = vunpack.c.0.s8 %v5648
      %v5650 = vlaneseq
      %v5651 = vshrl.u32 %v5650, 7
      %v5652 = vsub.s32 %v5649, %v5651
      %v5653 = vrot.slane %v5639, %v5652
      %v5654 = vcombine.low %v5193, %v5197
      %v5655 = vcombine.high %v5193, %v5197
      %v5657 = vunpack.c.l.s4 1983009808
      %v5658 = vunpack.c.0.s8 %v5657
      %v5659 = vlaneseq
      %v5660 = vshrl.u32 %v5659, 7
      %v5661 = vsub.s32 %v5658, %v5660
      %v5662 = vrot.slane %v5654, %v5661
      %v5664 = vunpack.c.l.s4 1983009808
      %v5665 = vunpack.c.0.s8 %v5664
      %v5666 = vlaneseq
      %v5667 = vshrl.u32 %v5666, 7
      %v5668 = vsub.s32 %v5665, %v5667
      %v5669 = vrot.slane %v5655, %v5668
      %v5670 = vcombine.low %v5614, %v5630
      %v5671 = vcombine.high %v5614, %v5630
      %v5673 = vunpack.c.l.s4 1934713408
      %v5674 = vunpack.c.0.s8 %v5673
      %v5675 = vlaneseq
      %v5676 = vshrl.u32 %v5675, 7
      %v5677 = vsub.s32 %v5674, %v5676
      %v5678 = vrot.slane %v5670, %v5677
      %v5680 = vunpack.c.l.s4 1934713408
      %v5681 = vunpack.c.0.s8 %v5680
      %v5682 = vlaneseq
      %v5683 = vshrl.u32 %v5682, 7
      %v5684 = vsub.s32 %v5681, %v5683
      %v5685 = vrot.slane %v5671, %v5684
      %v5686 = vcombine.low %v5621, %v5637
      %v5687 = vcombine.high %v5621, %v5637
      %v5689 = vunpack.c.l.s4 1934713408
      %v5690 = vunpack.c.0.s8 %v5689
      %v5691 = vlaneseq
      %v5692 = vshrl.u32 %v5691, 7
      %v5693 = vsub.s32 %v5690, %v5692
      %v5694 = vrot.slane %v5686, %v5693
      %v5696 = vunpack.c.l.s4 1934713408
      %v5697 = vunpack.c.0.s8 %v5696
      %v5698 = vlaneseq
      %v5699 = vshrl.u32 %v5698, 7
      %v5700 = vsub.s32 %v5697, %v5699
      %v5701 = vrot.slane %v5687, %v5700
      %v5702 = vcombine.low %v5646, %v5662
      %v5703 = vcombine.high %v5646, %v5662
      %v5705 = vunpack.c.l.s4 1934713408
      %v5706 = vunpack.c.0.s8 %v5705
      %v5707 = vlaneseq
      %v5708 = vshrl.u32 %v5707, 7
      %v5709 = vsub.s32 %v5706, %v5708
      %v5710 = vrot.slane %v5702, %v5709
      %v5712 = vunpack.c.l.s4 1934713408
      %v5713 = vunpack.c.0.s8 %v5712
      %v5714 = vlaneseq
      %v5715 = vshrl.u32 %v5714, 7
      %v5716 = vsub.s32 %v5713, %v5715
      %v5717 = vrot.slane %v5703, %v5716
      %v5718 = vcombine.low %v5653, %v5669
      %v5719 = vcombine.high %v5653, %v5669
      %v5721 = vunpack.c.l.s4 1934713408
      %v5722 = vunpack.c.0.s8 %v5721
      %v5723 = vlaneseq
      %v5724 = vshrl.u32 %v5723, 7
      %v5725 = vsub.s32 %v5722, %v5724
      %v5726 = vrot.slane %v5718, %v5725
      %v5728 = vunpack.c.l.s4 1934713408
      %v5729 = vunpack.c.0.s8 %v5728
      %v5730 = vlaneseq
      %v5731 = vshrl.u32 %v5730, 7
      %v5732 = vsub.s32 %v5729, %v5731
      %v5733 = vrot.slane %v5719, %v5732
      %v5734 = vcombine.low %v5678, %v5710
      %v5735 = vcombine.high %v5678, %v5710
      %v5736 = vcombine.low %v5685, %v5717
      %v5737 = vcombine.high %v5685, %v5717
      %v5738 = vcombine.low %v5694, %v5726
      %v5739 = vcombine.high %v5694, %v5726
      %v5740 = vcombine.low %v5701, %v5733
      %v5741 = vcombine.high %v5701, %v5733
      %5744 = vrot.lane.b32.xlu0 %v5327, 16
      %v5745 = vpop.permute.xlu0 %5744
      %5746 = vrot.lane.b32.xlu0 %v5463, 16
      %v5747 = vpop.permute.xlu0 %5746
      %5752 = vrot.lane.b32.xlu0 %v5328, 32
      %v5753 = vpop.permute.xlu0 %5752
      %5754 = vrot.lane.b32.xlu0 %v5464, 32
      %v5755 = vpop.permute.xlu0 %5754
      %5760 = vrot.lane.b32.xlu0 %v5329, 48
      %v5761 = vpop.permute.xlu0 %5760
      %5762 = vrot.lane.b32.xlu0 %v5465, 48
      %v5763 = vpop.permute.xlu0 %5762
      %5768 = vrot.lane.b32.xlu0 %v5330, 64
      %v5769 = vpop.permute.xlu0 %5768
      %5770 = vrot.lane.b32.xlu0 %v5466, 64
      %v5771 = vpop.permute.xlu0 %5770
      %5776 = vrot.lane.b32.xlu0 %v5331, 80
      %v5777 = vpop.permute.xlu0 %5776
      %5778 = vrot.lane.b32.xlu0 %v5467, 80
      %v5779 = vpop.permute.xlu0 %5778
      %5784 = vrot.lane.b32.xlu0 %v5332, 96
      %v5785 = vpop.permute.xlu0 %5784
      %5786 = vrot.lane.b32.xlu0 %v5468, 96
      %v5787 = vpop.permute.xlu0 %5786
      %5792 = vrot.lane.b32.xlu0 %v5333, 112
      %v5793 = vpop.permute.xlu0 %5792
      %5794 = vrot.lane.b32.xlu0 %v5469, 112
      %v5795 = vpop.permute.xlu0 %5794
      %5800 = vrot.lane.b32.xlu0 %v5599, 16
      %v5801 = vpop.permute.xlu0 %5800
      %5802 = vrot.lane.b32.xlu0 %v5735, 16
      %v5803 = vpop.permute.xlu0 %5802
      %5808 = vrot.lane.b32.xlu0 %v5600, 32
      %v5809 = vpop.permute.xlu0 %5808
      %5810 = vrot.lane.b32.xlu0 %v5736, 32
      %v5811 = vpop.permute.xlu0 %5810
      %5816 = vrot.lane.b32.xlu0 %v5601, 48
      %v5817 = vpop.permute.xlu0 %5816
      %5818 = vrot.lane.b32.xlu0 %v5737, 48
      %v5819 = vpop.permute.xlu0 %5818
      %5824 = vrot.lane.b32.xlu0 %v5602, 64
      %v5825 = vpop.permute.xlu0 %5824
      %5826 = vrot.lane.b32.xlu0 %v5738, 64
      %v5827 = vpop.permute.xlu0 %5826
      %5832 = vrot.lane.b32.xlu0 %v5603, 80
      %v5833 = vpop.permute.xlu0 %5832
      %5834 = vrot.lane.b32.xlu0 %v5739, 80
      %v5835 = vpop.permute.xlu0 %5834
      %5840 = vrot.lane.b32.xlu0 %v5604, 96
      %v5841 = vpop.permute.xlu0 %5840
      %5842 = vrot.lane.b32.xlu0 %v5740, 96
      %v5843 = vpop.permute.xlu0 %5842
      %5848 = vrot.lane.b32.xlu0 %v5605, 112
      %v5849 = vpop.permute.xlu0 %5848
      %5850 = vrot.lane.b32.xlu0 %v5741, 112
      %v5851 = vpop.permute.xlu0 %5850
      %v5854 = vsel %vm1015, %v5326, %v5745
      %v5855 = vsel %vm1015, %v5462, %v5747
      %v5856 = vsel %vm1018, %v5854, %v5753
      %v5857 = vsel %vm1018, %v5855, %v5755
      %v5858 = vsel %vm1021, %v5856, %v5761
      %v5859 = vsel %vm1021, %v5857, %v5763
      %v5860 = vsel %vm1024, %v5858, %v5769
      %v5861 = vsel %vm1024, %v5859, %v5771
      %v5862 = vsel %vm1027, %v5860, %v5777
      %v5863 = vsel %vm1027, %v5861, %v5779
      %v5864 = vsel %vm1030, %v5862, %v5785
      %v5865 = vsel %vm1030, %v5863, %v5787
      %v5866 = vsel %vm1033, %v5864, %v5793
      %v5867 = vsel %vm1033, %v5865, %v5795
      %v5868 = vsel %vm1015, %v5598, %v5801
      %v5869 = vsel %vm1015, %v5734, %v5803
      %v5870 = vsel %vm1018, %v5868, %v5809
      %v5871 = vsel %vm1018, %v5869, %v5811
      %v5872 = vsel %vm1021, %v5870, %v5817
      %v5873 = vsel %vm1021, %v5871, %v5819
      %v5874 = vsel %vm1024, %v5872, %v5825
      %v5875 = vsel %vm1024, %v5873, %v5827
      %v5876 = vsel %vm1027, %v5874, %v5833
      %v5877 = vsel %vm1027, %v5875, %v5835
      %v5878 = vsel %vm1030, %v5876, %v5841
      %v5879 = vsel %vm1030, %v5877, %v5843
      %v5880 = vsel %vm1033, %v5878, %v5849
      %v5881 = vsel %vm1033, %v5879, %v5851
      %v5882 = vpack.c.bf16 %v5867, %v5866
      %v5883 = vpack.c.bf16 %v5881, %v5880
      %5884 = vst [vmem:[#allocation3 + $0x60] sm:$0xff] %v5882
      %5885 = vst [vmem:[#allocation3 + $0x68] sm:$0xff] %v5883
      %v5886 = vld [vmem:[#allocation2 + $0x2] sm:$0xff]
      %v5887 = vld [vmem:[#allocation2 + $0xa] sm:$0xff]
      %v5888 = vld [vmem:[#allocation2 + $0x1a] sm:$0xff]
      %v5889 = vld [vmem:[#allocation2 + $0x22] sm:$0xff]
      %v5890 = vld [vmem:[#allocation2 + $0x32] sm:$0xff]
      %v5891 = vld [vmem:[#allocation2 + $0x3a] sm:$0xff]
      %v5892 = vld [vmem:[#allocation2 + $0x4a] sm:$0xff]
      %v5893 = vld [vmem:[#allocation2 + $0x52] sm:$0xff]
      %v5894 = vld [vmem:[#allocation2 + $0x62] sm:$0xff]
      %v5895 = vld [vmem:[#allocation2 + $0x6a] sm:$0xff]
      %v5896 = vld [vmem:[#allocation2 + $0x7a] sm:$0xff]
      %v5897 = vld [vmem:[#allocation2 + $0x82] sm:$0xff]
      %v5898 = vld [vmem:[#allocation2 + $0x92] sm:$0xff]
      %v5899 = vld [vmem:[#allocation2 + $0x9a] sm:$0xff]
      %v5900 = vld [vmem:[#allocation2 + $0xaa] sm:$0xff]
      %v5901 = vld [vmem:[#allocation2 + $0xb2] sm:$0xff]
      %v5902 = vld [vmem:[#allocation2 + $0xc2] sm:$0xff]
      %v5903 = vld [vmem:[#allocation2 + $0xca] sm:$0xff]
      %v5904 = vld [vmem:[#allocation2 + $0xda] sm:$0xff]
      %v5905 = vld [vmem:[#allocation2 + $0xe2] sm:$0xff]
      %v5906 = vld [vmem:[#allocation2 + $0xf2] sm:$0xff]
      %v5907 = vld [vmem:[#allocation2 + $0xfa] sm:$0xff]
      %v5908 = vld [vmem:[#allocation2 + $0x10a] sm:$0xff]
      %v5909 = vld [vmem:[#allocation2 + $0x112] sm:$0xff]
      %v5910 = vld [vmem:[#allocation2 + $0x122] sm:$0xff]
      %v5911 = vld [vmem:[#allocation2 + $0x12a] sm:$0xff]
      %v5912 = vld [vmem:[#allocation2 + $0x13a] sm:$0xff]
      %v5913 = vld [vmem:[#allocation2 + $0x142] sm:$0xff]
      %v5914 = vld [vmem:[#allocation2 + $0x152] sm:$0xff]
      %v5915 = vld [vmem:[#allocation2 + $0x15a] sm:$0xff]
      %v5916 = vld [vmem:[#allocation2 + $0x16a] sm:$0xff]
      %v5917 = vld [vmem:[#allocation2 + $0x172] sm:$0xff]
      %5950 = vrot.lane.b32.xlu0 %v5886, 127
      %v5951 = vpop.permute.xlu0 %5950
      %5952 = vrot.lane.b32.xlu0 %v5887, 127
      %v5953 = vpop.permute.xlu0 %5952
      %5954 = vrot.lane.b32.xlu0 %v5888, 127
      %v5955 = vpop.permute.xlu0 %5954
      %5956 = vrot.lane.b32.xlu0 %v5889, 127
      %v5957 = vpop.permute.xlu0 %5956
      %5958 = vrot.lane.b32.xlu0 %v5890, 127
      %v5959 = vpop.permute.xlu0 %5958
      %5960 = vrot.lane.b32.xlu0 %v5891, 127
      %v5961 = vpop.permute.xlu0 %5960
      %5962 = vrot.lane.b32.xlu0 %v5892, 127
      %v5963 = vpop.permute.xlu0 %5962
      %5964 = vrot.lane.b32.xlu0 %v5893, 127
      %v5965 = vpop.permute.xlu0 %5964
      %5966 = vrot.lane.b32.xlu0 %v5894, 127
      %v5967 = vpop.permute.xlu0 %5966
      %5968 = vrot.lane.b32.xlu0 %v5895, 127
      %v5969 = vpop.permute.xlu0 %5968
      %5970 = vrot.lane.b32.xlu0 %v5896, 127
      %v5971 = vpop.permute.xlu0 %5970
      %5972 = vrot.lane.b32.xlu0 %v5897, 127
      %v5973 = vpop.permute.xlu0 %5972
      %5974 = vrot.lane.b32.xlu0 %v5898, 127
      %v5975 = vpop.permute.xlu0 %5974
      %5976 = vrot.lane.b32.xlu0 %v5899, 127
      %v5977 = vpop.permute.xlu0 %5976
      %5978 = vrot.lane.b32.xlu0 %v5900, 127
      %v5979 = vpop.permute.xlu0 %5978
      %5980 = vrot.lane.b32.xlu0 %v5901, 127
      %v5981 = vpop.permute.xlu0 %5980
      %5982 = vrot.lane.b32.xlu0 %v5902, 127
      %v5983 = vpop.permute.xlu0 %5982
      %5984 = vrot.lane.b32.xlu0 %v5903, 127
      %v5985 = vpop.permute.xlu0 %5984
      %5986 = vrot.lane.b32.xlu0 %v5904, 127
      %v5987 = vpop.permute.xlu0 %5986
      %5988 = vrot.lane.b32.xlu0 %v5905, 127
      %v5989 = vpop.permute.xlu0 %5988
      %5990 = vrot.lane.b32.xlu0 %v5906, 127
      %v5991 = vpop.permute.xlu0 %5990
      %5992 = vrot.lane.b32.xlu0 %v5907, 127
      %v5993 = vpop.permute.xlu0 %5992
      %5994 = vrot.lane.b32.xlu0 %v5908, 127
      %v5995 = vpop.permute.xlu0 %5994
      %5996 = vrot.lane.b32.xlu0 %v5909, 127
      %v5997 = vpop.permute.xlu0 %5996
      %5998 = vrot.lane.b32.xlu0 %v5910, 127
      %v5999 = vpop.permute.xlu0 %5998
      %6000 = vrot.lane.b32.xlu0 %v5911, 127
      %v6001 = vpop.permute.xlu0 %6000
      %6002 = vrot.lane.b32.xlu0 %v5912, 127
      %v6003 = vpop.permute.xlu0 %6002
      %6004 = vrot.lane.b32.xlu0 %v5913, 127
      %v6005 = vpop.permute.xlu0 %6004
      %6006 = vrot.lane.b32.xlu0 %v5914, 127
      %v6007 = vpop.permute.xlu0 %6006
      %6008 = vrot.lane.b32.xlu0 %v5915, 127
      %v6009 = vpop.permute.xlu0 %6008
      %6010 = vrot.lane.b32.xlu0 %v5916, 127
      %v6011 = vpop.permute.xlu0 %6010
      %6012 = vrot.lane.b32.xlu0 %v5917, 127
      %v6013 = vpop.permute.xlu0 %6012
      %v6046 = vcombine.low %v5951, %v5959
      %v6047 = vcombine.high %v5951, %v5959
      %v6049 = vunpack.c.l.s4 1983009808
      %v6050 = vunpack.c.0.s8 %v6049
      %v6051 = vlaneseq
      %v6052 = vshrl.u32 %v6051, 7
      %v6053 = vsub.s32 %v6050, %v6052
      %v6054 = vrot.slane %v6046, %v6053
      %v6056 = vunpack.c.l.s4 1983009808
      %v6057 = vunpack.c.0.s8 %v6056
      %v6058 = vlaneseq
      %v6059 = vshrl.u32 %v6058, 7
      %v6060 = vsub.s32 %v6057, %v6059
      %v6061 = vrot.slane %v6047, %v6060
      %v6062 = vcombine.low %v5955, %v5963
      %v6063 = vcombine.high %v5955, %v5963
      %v6065 = vunpack.c.l.s4 1983009808
      %v6066 = vunpack.c.0.s8 %v6065
      %v6067 = vlaneseq
      %v6068 = vshrl.u32 %v6067, 7
      %v6069 = vsub.s32 %v6066, %v6068
      %v6070 = vrot.slane %v6062, %v6069
      %v6072 = vunpack.c.l.s4 1983009808
      %v6073 = vunpack.c.0.s8 %v6072
      %v6074 = vlaneseq
      %v6075 = vshrl.u32 %v6074, 7
      %v6076 = vsub.s32 %v6073, %v6075
      %v6077 = vrot.slane %v6063, %v6076
      %v6078 = vcombine.low %v5967, %v5975
      %v6079 = vcombine.high %v5967, %v5975
      %v6081 = vunpack.c.l.s4 1983009808
      %v6082 = vunpack.c.0.s8 %v6081
      %v6083 = vlaneseq
      %v6084 = vshrl.u32 %v6083, 7
      %v6085 = vsub.s32 %v6082, %v6084
      %v6086 = vrot.slane %v6078, %v6085
      %v6088 = vunpack.c.l.s4 1983009808
      %v6089 = vunpack.c.0.s8 %v6088
      %v6090 = vlaneseq
      %v6091 = vshrl.u32 %v6090, 7
      %v6092 = vsub.s32 %v6089, %v6091
      %v6093 = vrot.slane %v6079, %v6092
      %v6094 = vcombine.low %v5971, %v5979
      %v6095 = vcombine.high %v5971, %v5979
      %v6097 = vunpack.c.l.s4 1983009808
      %v6098 = vunpack.c.0.s8 %v6097
      %v6099 = vlaneseq
      %v6100 = vshrl.u32 %v6099, 7
      %v6101 = vsub.s32 %v6098, %v6100
      %v6102 = vrot.slane %v6094, %v6101
      %v6104 = vunpack.c.l.s4 1983009808
      %v6105 = vunpack.c.0.s8 %v6104
      %v6106 = vlaneseq
      %v6107 = vshrl.u32 %v6106, 7
      %v6108 = vsub.s32 %v6105, %v6107
      %v6109 = vrot.slane %v6095, %v6108
      %v6110 = vcombine.low %v6054, %v6070
      %v6111 = vcombine.high %v6054, %v6070
      %v6113 = vunpack.c.l.s4 1934713408
      %v6114 = vunpack.c.0.s8 %v6113
      %v6115 = vlaneseq
      %v6116 = vshrl.u32 %v6115, 7
      %v6117 = vsub.s32 %v6114, %v6116
      %v6118 = vrot.slane %v6110, %v6117
      %v6120 = vunpack.c.l.s4 1934713408
      %v6121 = vunpack.c.0.s8 %v6120
      %v6122 = vlaneseq
      %v6123 = vshrl.u32 %v6122, 7
      %v6124 = vsub.s32 %v6121, %v6123
      %v6125 = vrot.slane %v6111, %v6124
      %v6126 = vcombine.low %v6061, %v6077
      %v6127 = vcombine.high %v6061, %v6077
      %v6129 = vunpack.c.l.s4 1934713408
      %v6130 = vunpack.c.0.s8 %v6129
      %v6131 = vlaneseq
      %v6132 = vshrl.u32 %v6131, 7
      %v6133 = vsub.s32 %v6130, %v6132
      %v6134 = vrot.slane %v6126, %v6133
      %v6136 = vunpack.c.l.s4 1934713408
      %v6137 = vunpack.c.0.s8 %v6136
      %v6138 = vlaneseq
      %v6139 = vshrl.u32 %v6138, 7
      %v6140 = vsub.s32 %v6137, %v6139
      %v6141 = vrot.slane %v6127, %v6140
      %v6142 = vcombine.low %v6086, %v6102
      %v6143 = vcombine.high %v6086, %v6102
      %v6145 = vunpack.c.l.s4 1934713408
      %v6146 = vunpack.c.0.s8 %v6145
      %v6147 = vlaneseq
      %v6148 = vshrl.u32 %v6147, 7
      %v6149 = vsub.s32 %v6146, %v6148
      %v6150 = vrot.slane %v6142, %v6149
      %v6152 = vunpack.c.l.s4 1934713408
      %v6153 = vunpack.c.0.s8 %v6152
      %v6154 = vlaneseq
      %v6155 = vshrl.u32 %v6154, 7
      %v6156 = vsub.s32 %v6153, %v6155
      %v6157 = vrot.slane %v6143, %v6156
      %v6158 = vcombine.low %v6093, %v6109
      %v6159 = vcombine.high %v6093, %v6109
      %v6161 = vunpack.c.l.s4 1934713408
      %v6162 = vunpack.c.0.s8 %v6161
      %v6163 = vlaneseq
      %v6164 = vshrl.u32 %v6163, 7
      %v6165 = vsub.s32 %v6162, %v6164
      %v6166 = vrot.slane %v6158, %v6165
      %v6168 = vunpack.c.l.s4 1934713408
      %v6169 = vunpack.c.0.s8 %v6168
      %v6170 = vlaneseq
      %v6171 = vshrl.u32 %v6170, 7
      %v6172 = vsub.s32 %v6169, %v6171
      %v6173 = vrot.slane %v6159, %v6172
      %v6174 = vcombine.low %v6118, %v6150
      %v6175 = vcombine.high %v6118, %v6150
      %v6176 = vcombine.low %v6125, %v6157
      %v6177 = vcombine.high %v6125, %v6157
      %v6178 = vcombine.low %v6134, %v6166
      %v6179 = vcombine.high %v6134, %v6166
      %v6180 = vcombine.low %v6141, %v6173
      %v6181 = vcombine.high %v6141, %v6173
      %v6182 = vcombine.low %v5983, %v5991
      %v6183 = vcombine.high %v5983, %v5991
      %v6185 = vunpack.c.l.s4 1983009808
      %v6186 = vunpack.c.0.s8 %v6185
      %v6187 = vlaneseq
      %v6188 = vshrl.u32 %v6187, 7
      %v6189 = vsub.s32 %v6186, %v6188
      %v6190 = vrot.slane %v6182, %v6189
      %v6192 = vunpack.c.l.s4 1983009808
      %v6193 = vunpack.c.0.s8 %v6192
      %v6194 = vlaneseq
      %v6195 = vshrl.u32 %v6194, 7
      %v6196 = vsub.s32 %v6193, %v6195
      %v6197 = vrot.slane %v6183, %v6196
      %v6198 = vcombine.low %v5987, %v5995
      %v6199 = vcombine.high %v5987, %v5995
      %v6201 = vunpack.c.l.s4 1983009808
      %v6202 = vunpack.c.0.s8 %v6201
      %v6203 = vlaneseq
      %v6204 = vshrl.u32 %v6203, 7
      %v6205 = vsub.s32 %v6202, %v6204
      %v6206 = vrot.slane %v6198, %v6205
      %v6208 = vunpack.c.l.s4 1983009808
      %v6209 = vunpack.c.0.s8 %v6208
      %v6210 = vlaneseq
      %v6211 = vshrl.u32 %v6210, 7
      %v6212 = vsub.s32 %v6209, %v6211
      %v6213 = vrot.slane %v6199, %v6212
      %v6214 = vcombine.low %v5999, %v6007
      %v6215 = vcombine.high %v5999, %v6007
      %v6217 = vunpack.c.l.s4 1983009808
      %v6218 = vunpack.c.0.s8 %v6217
      %v6219 = vlaneseq
      %v6220 = vshrl.u32 %v6219, 7
      %v6221 = vsub.s32 %v6218, %v6220
      %v6222 = vrot.slane %v6214, %v6221
      %v6224 = vunpack.c.l.s4 1983009808
      %v6225 = vunpack.c.0.s8 %v6224
      %v6226 = vlaneseq
      %v6227 = vshrl.u32 %v6226, 7
      %v6228 = vsub.s32 %v6225, %v6227
      %v6229 = vrot.slane %v6215, %v6228
      %v6230 = vcombine.low %v6003, %v6011
      %v6231 = vcombine.high %v6003, %v6011
      %v6233 = vunpack.c.l.s4 1983009808
      %v6234 = vunpack.c.0.s8 %v6233
      %v6235 = vlaneseq
      %v6236 = vshrl.u32 %v6235, 7
      %v6237 = vsub.s32 %v6234, %v6236
      %v6238 = vrot.slane %v6230, %v6237
      %v6240 = vunpack.c.l.s4 1983009808
      %v6241 = vunpack.c.0.s8 %v6240
      %v6242 = vlaneseq
      %v6243 = vshrl.u32 %v6242, 7
      %v6244 = vsub.s32 %v6241, %v6243
      %v6245 = vrot.slane %v6231, %v6244
      %v6246 = vcombine.low %v6190, %v6206
      %v6247 = vcombine.high %v6190, %v6206
      %v6249 = vunpack.c.l.s4 1934713408
      %v6250 = vunpack.c.0.s8 %v6249
      %v6251 = vlaneseq
      %v6252 = vshrl.u32 %v6251, 7
      %v6253 = vsub.s32 %v6250, %v6252
      %v6254 = vrot.slane %v6246, %v6253
      %v6256 = vunpack.c.l.s4 1934713408
      %v6257 = vunpack.c.0.s8 %v6256
      %v6258 = vlaneseq
      %v6259 = vshrl.u32 %v6258, 7
      %v6260 = vsub.s32 %v6257, %v6259
      %v6261 = vrot.slane %v6247, %v6260
      %v6262 = vcombine.low %v6197, %v6213
      %v6263 = vcombine.high %v6197, %v6213
      %v6265 = vunpack.c.l.s4 1934713408
      %v6266 = vunpack.c.0.s8 %v6265
      %v6267 = vlaneseq
      %v6268 = vshrl.u32 %v6267, 7
      %v6269 = vsub.s32 %v6266, %v6268
      %v6270 = vrot.slane %v6262, %v6269
      %v6272 = vunpack.c.l.s4 1934713408
      %v6273 = vunpack.c.0.s8 %v6272
      %v6274 = vlaneseq
      %v6275 = vshrl.u32 %v6274, 7
      %v6276 = vsub.s32 %v6273, %v6275
      %v6277 = vrot.slane %v6263, %v6276
      %v6278 = vcombine.low %v6222, %v6238
      %v6279 = vcombine.high %v6222, %v6238
      %v6281 = vunpack.c.l.s4 1934713408
      %v6282 = vunpack.c.0.s8 %v6281
      %v6283 = vlaneseq
      %v6284 = vshrl.u32 %v6283, 7
      %v6285 = vsub.s32 %v6282, %v6284
      %v6286 = vrot.slane %v6278, %v6285
      %v6288 = vunpack.c.l.s4 1934713408
      %v6289 = vunpack.c.0.s8 %v6288
      %v6290 = vlaneseq
      %v6291 = vshrl.u32 %v6290, 7
      %v6292 = vsub.s32 %v6289, %v6291
      %v6293 = vrot.slane %v6279, %v6292
      %v6294 = vcombine.low %v6229, %v6245
      %v6295 = vcombine.high %v6229, %v6245
      %v6297 = vunpack.c.l.s4 1934713408
      %v6298 = vunpack.c.0.s8 %v6297
      %v6299 = vlaneseq
      %v6300 = vshrl.u32 %v6299, 7
      %v6301 = vsub.s32 %v6298, %v6300
      %v6302 = vrot.slane %v6294, %v6301
      %v6304 = vunpack.c.l.s4 1934713408
      %v6305 = vunpack.c.0.s8 %v6304
      %v6306 = vlaneseq
      %v6307 = vshrl.u32 %v6306, 7
      %v6308 = vsub.s32 %v6305, %v6307
      %v6309 = vrot.slane %v6295, %v6308
      %v6310 = vcombine.low %v6254, %v6286
      %v6311 = vcombine.high %v6254, %v6286
      %v6312 = vcombine.low %v6261, %v6293
      %v6313 = vcombine.high %v6261, %v6293
      %v6314 = vcombine.low %v6270, %v6302
      %v6315 = vcombine.high %v6270, %v6302
      %v6316 = vcombine.low %v6277, %v6309
      %v6317 = vcombine.high %v6277, %v6309
      %v6318 = vcombine.low %v5953, %v5961
      %v6319 = vcombine.high %v5953, %v5961
      %v6321 = vunpack.c.l.s4 1983009808
      %v6322 = vunpack.c.0.s8 %v6321
      %v6323 = vlaneseq
      %v6324 = vshrl.u32 %v6323, 7
      %v6325 = vsub.s32 %v6322, %v6324
      %v6326 = vrot.slane %v6318, %v6325
      %v6328 = vunpack.c.l.s4 1983009808
      %v6329 = vunpack.c.0.s8 %v6328
      %v6330 = vlaneseq
      %v6331 = vshrl.u32 %v6330, 7
      %v6332 = vsub.s32 %v6329, %v6331
      %v6333 = vrot.slane %v6319, %v6332
      %v6334 = vcombine.low %v5957, %v5965
      %v6335 = vcombine.high %v5957, %v5965
      %v6337 = vunpack.c.l.s4 1983009808
      %v6338 = vunpack.c.0.s8 %v6337
      %v6339 = vlaneseq
      %v6340 = vshrl.u32 %v6339, 7
      %v6341 = vsub.s32 %v6338, %v6340
      %v6342 = vrot.slane %v6334, %v6341
      %v6344 = vunpack.c.l.s4 1983009808
      %v6345 = vunpack.c.0.s8 %v6344
      %v6346 = vlaneseq
      %v6347 = vshrl.u32 %v6346, 7
      %v6348 = vsub.s32 %v6345, %v6347
      %v6349 = vrot.slane %v6335, %v6348
      %v6350 = vcombine.low %v5969, %v5977
      %v6351 = vcombine.high %v5969, %v5977
      %v6353 = vunpack.c.l.s4 1983009808
      %v6354 = vunpack.c.0.s8 %v6353
      %v6355 = vlaneseq
      %v6356 = vshrl.u32 %v6355, 7
      %v6357 = vsub.s32 %v6354, %v6356
      %v6358 = vrot.slane %v6350, %v6357
      %v6360 = vunpack.c.l.s4 1983009808
      %v6361 = vunpack.c.0.s8 %v6360
      %v6362 = vlaneseq
      %v6363 = vshrl.u32 %v6362, 7
      %v6364 = vsub.s32 %v6361, %v6363
      %v6365 = vrot.slane %v6351, %v6364
      %v6366 = vcombine.low %v5973, %v5981
      %v6367 = vcombine.high %v5973, %v5981
      %v6369 = vunpack.c.l.s4 1983009808
      %v6370 = vunpack.c.0.s8 %v6369
      %v6371 = vlaneseq
      %v6372 = vshrl.u32 %v6371, 7
      %v6373 = vsub.s32 %v6370, %v6372
      %v6374 = vrot.slane %v6366, %v6373
      %v6376 = vunpack.c.l.s4 1983009808
      %v6377 = vunpack.c.0.s8 %v6376
      %v6378 = vlaneseq
      %v6379 = vshrl.u32 %v6378, 7
      %v6380 = vsub.s32 %v6377, %v6379
      %v6381 = vrot.slane %v6367, %v6380
      %v6382 = vcombine.low %v6326, %v6342
      %v6383 = vcombine.high %v6326, %v6342
      %v6385 = vunpack.c.l.s4 1934713408
      %v6386 = vunpack.c.0.s8 %v6385
      %v6387 = vlaneseq
      %v6388 = vshrl.u32 %v6387, 7
      %v6389 = vsub.s32 %v6386, %v6388
      %v6390 = vrot.slane %v6382, %v6389
      %v6392 = vunpack.c.l.s4 1934713408
      %v6393 = vunpack.c.0.s8 %v6392
      %v6394 = vlaneseq
      %v6395 = vshrl.u32 %v6394, 7
      %v6396 = vsub.s32 %v6393, %v6395
      %v6397 = vrot.slane %v6383, %v6396
      %v6398 = vcombine.low %v6333, %v6349
      %v6399 = vcombine.high %v6333, %v6349
      %v6401 = vunpack.c.l.s4 1934713408
      %v6402 = vunpack.c.0.s8 %v6401
      %v6403 = vlaneseq
      %v6404 = vshrl.u32 %v6403, 7
      %v6405 = vsub.s32 %v6402, %v6404
      %v6406 = vrot.slane %v6398, %v6405
      %v6408 = vunpack.c.l.s4 1934713408
      %v6409 = vunpack.c.0.s8 %v6408
      %v6410 = vlaneseq
      %v6411 = vshrl.u32 %v6410, 7
      %v6412 = vsub.s32 %v6409, %v6411
      %v6413 = vrot.slane %v6399, %v6412
      %v6414 = vcombine.low %v6358, %v6374
      %v6415 = vcombine.high %v6358, %v6374
      %v6417 = vunpack.c.l.s4 1934713408
      %v6418 = vunpack.c.0.s8 %v6417
      %v6419 = vlaneseq
      %v6420 = vshrl.u32 %v6419, 7
      %v6421 = vsub.s32 %v6418, %v6420
      %v6422 = vrot.slane %v6414, %v6421
      %v6424 = vunpack.c.l.s4 1934713408
      %v6425 = vunpack.c.0.s8 %v6424
      %v6426 = vlaneseq
      %v6427 = vshrl.u32 %v6426, 7
      %v6428 = vsub.s32 %v6425, %v6427
      %v6429 = vrot.slane %v6415, %v6428
      %v6430 = vcombine.low %v6365, %v6381
      %v6431 = vcombine.high %v6365, %v6381
      %v6433 = vunpack.c.l.s4 1934713408
      %v6434 = vunpack.c.0.s8 %v6433
      %v6435 = vlaneseq
      %v6436 = vshrl.u32 %v6435, 7
      %v6437 = vsub.s32 %v6434, %v6436
      %v6438 = vrot.slane %v6430, %v6437
      %v6440 = vunpack.c.l.s4 1934713408
      %v6441 = vunpack.c.0.s8 %v6440
      %v6442 = vlaneseq
      %v6443 = vshrl.u32 %v6442, 7
      %v6444 = vsub.s32 %v6441, %v6443
      %v6445 = vrot.slane %v6431, %v6444
      %v6446 = vcombine.low %v6390, %v6422
      %v6447 = vcombine.high %v6390, %v6422
      %v6448 = vcombine.low %v6397, %v6429
      %v6449 = vcombine.high %v6397, %v6429
      %v6450 = vcombine.low %v6406, %v6438
      %v6451 = vcombine.high %v6406, %v6438
      %v6452 = vcombine.low %v6413, %v6445
      %v6453 = vcombine.high %v6413, %v6445
      %v6454 = vcombine.low %v5985, %v5993
      %v6455 = vcombine.high %v5985, %v5993
      %v6457 = vunpack.c.l.s4 1983009808
      %v6458 = vunpack.c.0.s8 %v6457
      %v6459 = vlaneseq
      %v6460 = vshrl.u32 %v6459, 7
      %v6461 = vsub.s32 %v6458, %v6460
      %v6462 = vrot.slane %v6454, %v6461
      %v6464 = vunpack.c.l.s4 1983009808
      %v6465 = vunpack.c.0.s8 %v6464
      %v6466 = vlaneseq
      %v6467 = vshrl.u32 %v6466, 7
      %v6468 = vsub.s32 %v6465, %v6467
      %v6469 = vrot.slane %v6455, %v6468
      %v6470 = vcombine.low %v5989, %v5997
      %v6471 = vcombine.high %v5989, %v5997
      %v6473 = vunpack.c.l.s4 1983009808
      %v6474 = vunpack.c.0.s8 %v6473
      %v6475 = vlaneseq
      %v6476 = vshrl.u32 %v6475, 7
      %v6477 = vsub.s32 %v6474, %v6476
      %v6478 = vrot.slane %v6470, %v6477
      %v6480 = vunpack.c.l.s4 1983009808
      %v6481 = vunpack.c.0.s8 %v6480
      %v6482 = vlaneseq
      %v6483 = vshrl.u32 %v6482, 7
      %v6484 = vsub.s32 %v6481, %v6483
      %v6485 = vrot.slane %v6471, %v6484
      %v6486 = vcombine.low %v6001, %v6009
      %v6487 = vcombine.high %v6001, %v6009
      %v6489 = vunpack.c.l.s4 1983009808
      %v6490 = vunpack.c.0.s8 %v6489
      %v6491 = vlaneseq
      %v6492 = vshrl.u32 %v6491, 7
      %v6493 = vsub.s32 %v6490, %v6492
      %v6494 = vrot.slane %v6486, %v6493
      %v6496 = vunpack.c.l.s4 1983009808
      %v6497 = vunpack.c.0.s8 %v6496
      %v6498 = vlaneseq
      %v6499 = vshrl.u32 %v6498, 7
      %v6500 = vsub.s32 %v6497, %v6499
      %v6501 = vrot.slane %v6487, %v6500
      %v6502 = vcombine.low %v6005, %v6013
      %v6503 = vcombine.high %v6005, %v6013
      %v6505 = vunpack.c.l.s4 1983009808
      %v6506 = vunpack.c.0.s8 %v6505
      %v6507 = vlaneseq
      %v6508 = vshrl.u32 %v6507, 7
      %v6509 = vsub.s32 %v6506, %v6508
      %v6510 = vrot.slane %v6502, %v6509
      %v6512 = vunpack.c.l.s4 1983009808
      %v6513 = vunpack.c.0.s8 %v6512
      %v6514 = vlaneseq
      %v6515 = vshrl.u32 %v6514, 7
      %v6516 = vsub.s32 %v6513, %v6515
      %v6517 = vrot.slane %v6503, %v6516
      %v6518 = vcombine.low %v6462, %v6478
      %v6519 = vcombine.high %v6462, %v6478
      %v6521 = vunpack.c.l.s4 1934713408
      %v6522 = vunpack.c.0.s8 %v6521
      %v6523 = vlaneseq
      %v6524 = vshrl.u32 %v6523, 7
      %v6525 = vsub.s32 %v6522, %v6524
      %v6526 = vrot.slane %v6518, %v6525
      %v6528 = vunpack.c.l.s4 1934713408
      %v6529 = vunpack.c.0.s8 %v6528
      %v6530 = vlaneseq
      %v6531 = vshrl.u32 %v6530, 7
      %v6532 = vsub.s32 %v6529, %v6531
      %v6533 = vrot.slane %v6519, %v6532
      %v6534 = vcombine.low %v6469, %v6485
      %v6535 = vcombine.high %v6469, %v6485
      %v6537 = vunpack.c.l.s4 1934713408
      %v6538 = vunpack.c.0.s8 %v6537
      %v6539 = vlaneseq
      %v6540 = vshrl.u32 %v6539, 7
      %v6541 = vsub.s32 %v6538, %v6540
      %v6542 = vrot.slane %v6534, %v6541
      %v6544 = vunpack.c.l.s4 1934713408
      %v6545 = vunpack.c.0.s8 %v6544
      %v6546 = vlaneseq
      %v6547 = vshrl.u32 %v6546, 7
      %v6548 = vsub.s32 %v6545, %v6547
      %v6549 = vrot.slane %v6535, %v6548
      %v6550 = vcombine.low %v6494, %v6510
      %v6551 = vcombine.high %v6494, %v6510
      %v6553 = vunpack.c.l.s4 1934713408
      %v6554 = vunpack.c.0.s8 %v6553
      %v6555 = vlaneseq
      %v6556 = vshrl.u32 %v6555, 7
      %v6557 = vsub.s32 %v6554, %v6556
      %v6558 = vrot.slane %v6550, %v6557
      %v6560 = vunpack.c.l.s4 1934713408
      %v6561 = vunpack.c.0.s8 %v6560
      %v6562 = vlaneseq
      %v6563 = vshrl.u32 %v6562, 7
      %v6564 = vsub.s32 %v6561, %v6563
      %v6565 = vrot.slane %v6551, %v6564
      %v6566 = vcombine.low %v6501, %v6517
      %v6567 = vcombine.high %v6501, %v6517
      %v6569 = vunpack.c.l.s4 1934713408
      %v6570 = vunpack.c.0.s8 %v6569
      %v6571 = vlaneseq
      %v6572 = vshrl.u32 %v6571, 7
      %v6573 = vsub.s32 %v6570, %v6572
      %v6574 = vrot.slane %v6566, %v6573
      %v6576 = vunpack.c.l.s4 1934713408
      %v6577 = vunpack.c.0.s8 %v6576
      %v6578 = vlaneseq
      %v6579 = vshrl.u32 %v6578, 7
      %v6580 = vsub.s32 %v6577, %v6579
      %v6581 = vrot.slane %v6567, %v6580
      %v6582 = vcombine.low %v6526, %v6558
      %v6583 = vcombine.high %v6526, %v6558
      %v6584 = vcombine.low %v6533, %v6565
      %v6585 = vcombine.high %v6533, %v6565
      %v6586 = vcombine.low %v6542, %v6574
      %v6587 = vcombine.high %v6542, %v6574
      %v6588 = vcombine.low %v6549, %v6581
      %v6589 = vcombine.high %v6549, %v6581
      %6592 = vrot.lane.b32.xlu0 %v6175, 16
      %v6593 = vpop.permute.xlu0 %6592
      %6594 = vrot.lane.b32.xlu0 %v6311, 16
      %v6595 = vpop.permute.xlu0 %6594
      %6600 = vrot.lane.b32.xlu0 %v6176, 32
      %v6601 = vpop.permute.xlu0 %6600
      %6602 = vrot.lane.b32.xlu0 %v6312, 32
      %v6603 = vpop.permute.xlu0 %6602
      %6608 = vrot.lane.b32.xlu0 %v6177, 48
      %v6609 = vpop.permute.xlu0 %6608
      %6610 = vrot.lane.b32.xlu0 %v6313, 48
      %v6611 = vpop.permute.xlu0 %6610
      %6616 = vrot.lane.b32.xlu0 %v6178, 64
      %v6617 = vpop.permute.xlu0 %6616
      %6618 = vrot.lane.b32.xlu0 %v6314, 64
      %v6619 = vpop.permute.xlu0 %6618
      %6624 = vrot.lane.b32.xlu0 %v6179, 80
      %v6625 = vpop.permute.xlu0 %6624
      %6626 = vrot.lane.b32.xlu0 %v6315, 80
      %v6627 = vpop.permute.xlu0 %6626
      %6632 = vrot.lane.b32.xlu0 %v6180, 96
      %v6633 = vpop.permute.xlu0 %6632
      %6634 = vrot.lane.b32.xlu0 %v6316, 96
      %v6635 = vpop.permute.xlu0 %6634
      %6640 = vrot.lane.b32.xlu0 %v6181, 112
      %v6641 = vpop.permute.xlu0 %6640
      %6642 = vrot.lane.b32.xlu0 %v6317, 112
      %v6643 = vpop.permute.xlu0 %6642
      %6648 = vrot.lane.b32.xlu0 %v6447, 16
      %v6649 = vpop.permute.xlu0 %6648
      %6650 = vrot.lane.b32.xlu0 %v6583, 16
      %v6651 = vpop.permute.xlu0 %6650
      %6656 = vrot.lane.b32.xlu0 %v6448, 32
      %v6657 = vpop.permute.xlu0 %6656
      %6658 = vrot.lane.b32.xlu0 %v6584, 32
      %v6659 = vpop.permute.xlu0 %6658
      %6664 = vrot.lane.b32.xlu0 %v6449, 48
      %v6665 = vpop.permute.xlu0 %6664
      %6666 = vrot.lane.b32.xlu0 %v6585, 48
      %v6667 = vpop.permute.xlu0 %6666
      %6672 = vrot.lane.b32.xlu0 %v6450, 64
      %v6673 = vpop.permute.xlu0 %6672
      %6674 = vrot.lane.b32.xlu0 %v6586, 64
      %v6675 = vpop.permute.xlu0 %6674
      %6680 = vrot.lane.b32.xlu0 %v6451, 80
      %v6681 = vpop.permute.xlu0 %6680
      %6682 = vrot.lane.b32.xlu0 %v6587, 80
      %v6683 = vpop.permute.xlu0 %6682
      %6688 = vrot.lane.b32.xlu0 %v6452, 96
      %v6689 = vpop.permute.xlu0 %6688
      %6690 = vrot.lane.b32.xlu0 %v6588, 96
      %v6691 = vpop.permute.xlu0 %6690
      %6696 = vrot.lane.b32.xlu0 %v6453, 112
      %v6697 = vpop.permute.xlu0 %6696
      %6698 = vrot.lane.b32.xlu0 %v6589, 112
      %v6699 = vpop.permute.xlu0 %6698
      %v6702 = vsel %vm1015, %v6174, %v6593
      %v6703 = vsel %vm1015, %v6310, %v6595
      %v6704 = vsel %vm1018, %v6702, %v6601
      %v6705 = vsel %vm1018, %v6703, %v6603
      %v6706 = vsel %vm1021, %v6704, %v6609
      %v6707 = vsel %vm1021, %v6705, %v6611
      %v6708 = vsel %vm1024, %v6706, %v6617
      %v6709 = vsel %vm1024, %v6707, %v6619
      %v6710 = vsel %vm1027, %v6708, %v6625
      %v6711 = vsel %vm1027, %v6709, %v6627
      %v6712 = vsel %vm1030, %v6710, %v6633
      %v6713 = vsel %vm1030, %v6711, %v6635
      %v6714 = vsel %vm1033, %v6712, %v6641
      %v6715 = vsel %vm1033, %v6713, %v6643
      %v6716 = vsel %vm1015, %v6446, %v6649
      %v6717 = vsel %vm1015, %v6582, %v6651
      %v6718 = vsel %vm1018, %v6716, %v6657
      %v6719 = vsel %vm1018, %v6717, %v6659
      %v6720 = vsel %vm1021, %v6718, %v6665
      %v6721 = vsel %vm1021, %v6719, %v6667
      %v6722 = vsel %vm1024, %v6720, %v6673
      %v6723 = vsel %vm1024, %v6721, %v6675
      %v6724 = vsel %vm1027, %v6722, %v6681
      %v6725 = vsel %vm1027, %v6723, %v6683
      %v6726 = vsel %vm1030, %v6724, %v6689
      %v6727 = vsel %vm1030, %v6725, %v6691
      %v6728 = vsel %vm1033, %v6726, %v6697
      %v6729 = vsel %vm1033, %v6727, %v6699
      %v6730 = vpack.c.bf16 %v6715, %v6714
      %v6731 = vpack.c.bf16 %v6729, %v6728
      %6732 = vst [vmem:[#allocation3 + $0x70] sm:$0xff] %v6730
      %6733 = vst [vmem:[#allocation3 + $0x78] sm:$0xff] %v6731
      %v6734 = vld [vmem:[#allocation2 + $0x2] sm:$0xff]
      %v6735 = vld [vmem:[#allocation2 + $0xa] sm:$0xff]
      %v6736 = vld [vmem:[#allocation2 + $0x1a] sm:$0xff]
      %v6737 = vld [vmem:[#allocation2 + $0x22] sm:$0xff]
      %v6738 = vld [vmem:[#allocation2 + $0x32] sm:$0xff]
      %v6739 = vld [vmem:[#allocation2 + $0x3a] sm:$0xff]
      %v6740 = vld [vmem:[#allocation2 + $0x4a] sm:$0xff]
      %v6741 = vld [vmem:[#allocation2 + $0x52] sm:$0xff]
      %v6742 = vld [vmem:[#allocation2 + $0x62] sm:$0xff]
      %v6743 = vld [vmem:[#allocation2 + $0x6a] sm:$0xff]
      %v6744 = vld [vmem:[#allocation2 + $0x7a] sm:$0xff]
      %v6745 = vld [vmem:[#allocation2 + $0x82] sm:$0xff]
      %v6746 = vld [vmem:[#allocation2 + $0x92] sm:$0xff]
      %v6747 = vld [vmem:[#allocation2 + $0x9a] sm:$0xff]
      %v6748 = vld [vmem:[#allocation2 + $0xaa] sm:$0xff]
      %v6749 = vld [vmem:[#allocation2 + $0xb2] sm:$0xff]
      %v6750 = vld [vmem:[#allocation2 + $0xc2] sm:$0xff]
      %v6751 = vld [vmem:[#allocation2 + $0xca] sm:$0xff]
      %v6752 = vld [vmem:[#allocation2 + $0xda] sm:$0xff]
      %v6753 = vld [vmem:[#allocation2 + $0xe2] sm:$0xff]
      %v6754 = vld [vmem:[#allocation2 + $0xf2] sm:$0xff]
      %v6755 = vld [vmem:[#allocation2 + $0xfa] sm:$0xff]
      %v6756 = vld [vmem:[#allocation2 + $0x10a] sm:$0xff]
      %v6757 = vld [vmem:[#allocation2 + $0x112] sm:$0xff]
      %v6758 = vld [vmem:[#allocation2 + $0x122] sm:$0xff]
      %v6759 = vld [vmem:[#allocation2 + $0x12a] sm:$0xff]
      %v6760 = vld [vmem:[#allocation2 + $0x13a] sm:$0xff]
      %v6761 = vld [vmem:[#allocation2 + $0x142] sm:$0xff]
      %v6762 = vld [vmem:[#allocation2 + $0x152] sm:$0xff]
      %v6763 = vld [vmem:[#allocation2 + $0x15a] sm:$0xff]
      %v6764 = vld [vmem:[#allocation2 + $0x16a] sm:$0xff]
      %v6765 = vld [vmem:[#allocation2 + $0x172] sm:$0xff]
      %6798 = vrot.lane.b32.xlu0 %v6734, 126
      %v6799 = vpop.permute.xlu0 %6798
      %6800 = vrot.lane.b32.xlu0 %v6735, 126
      %v6801 = vpop.permute.xlu0 %6800
      %6802 = vrot.lane.b32.xlu0 %v6736, 126
      %v6803 = vpop.permute.xlu0 %6802
      %6804 = vrot.lane.b32.xlu0 %v6737, 126
      %v6805 = vpop.permute.xlu0 %6804
      %6806 = vrot.lane.b32.xlu0 %v6738, 126
      %v6807 = vpop.permute.xlu0 %6806
      %6808 = vrot.lane.b32.xlu0 %v6739, 126
      %v6809 = vpop.permute.xlu0 %6808
      %6810 = vrot.lane.b32.xlu0 %v6740, 126
      %v6811 = vpop.permute.xlu0 %6810
      %6812 = vrot.lane.b32.xlu0 %v6741, 126
      %v6813 = vpop.permute.xlu0 %6812
      %6814 = vrot.lane.b32.xlu0 %v6742, 126
      %v6815 = vpop.permute.xlu0 %6814
      %6816 = vrot.lane.b32.xlu0 %v6743, 126
      %v6817 = vpop.permute.xlu0 %6816
      %6818 = vrot.lane.b32.xlu0 %v6744, 126
      %v6819 = vpop.permute.xlu0 %6818
      %6820 = vrot.lane.b32.xlu0 %v6745, 126
      %v6821 = vpop.permute.xlu0 %6820
      %6822 = vrot.lane.b32.xlu0 %v6746, 126
      %v6823 = vpop.permute.xlu0 %6822
      %6824 = vrot.lane.b32.xlu0 %v6747, 126
      %v6825 = vpop.permute.xlu0 %6824
      %6826 = vrot.lane.b32.xlu0 %v6748, 126
      %v6827 = vpop.permute.xlu0 %6826
      %6828 = vrot.lane.b32.xlu0 %v6749, 126
      %v6829 = vpop.permute.xlu0 %6828
      %6830 = vrot.lane.b32.xlu0 %v6750, 126
      %v6831 = vpop.permute.xlu0 %6830
      %6832 = vrot.lane.b32.xlu0 %v6751, 126
      %v6833 = vpop.permute.xlu0 %6832
      %6834 = vrot.lane.b32.xlu0 %v6752, 126
      %v6835 = vpop.permute.xlu0 %6834
      %6836 = vrot.lane.b32.xlu0 %v6753, 126
      %v6837 = vpop.permute.xlu0 %6836
      %6838 = vrot.lane.b32.xlu0 %v6754, 126
      %v6839 = vpop.permute.xlu0 %6838
      %6840 = vrot.lane.b32.xlu0 %v6755, 126
      %v6841 = vpop.permute.xlu0 %6840
      %6842 = vrot.lane.b32.xlu0 %v6756, 126
      %v6843 = vpop.permute.xlu0 %6842
      %6844 = vrot.lane.b32.xlu0 %v6757, 126
      %v6845 = vpop.permute.xlu0 %6844
      %6846 = vrot.lane.b32.xlu0 %v6758, 126
      %v6847 = vpop.permute.xlu0 %6846
      %6848 = vrot.lane.b32.xlu0 %v6759, 126
      %v6849 = vpop.permute.xlu0 %6848
      %6850 = vrot.lane.b32.xlu0 %v6760, 126
      %v6851 = vpop.permute.xlu0 %6850
      %6852 = vrot.lane.b32.xlu0 %v6761, 126
      %v6853 = vpop.permute.xlu0 %6852
      %6854 = vrot.lane.b32.xlu0 %v6762, 126
      %v6855 = vpop.permute.xlu0 %6854
      %6856 = vrot.lane.b32.xlu0 %v6763, 126
      %v6857 = vpop.permute.xlu0 %6856
      %6858 = vrot.lane.b32.xlu0 %v6764, 126
      %v6859 = vpop.permute.xlu0 %6858
      %6860 = vrot.lane.b32.xlu0 %v6765, 126
      %v6861 = vpop.permute.xlu0 %6860
      %v6894 = vcombine.low %v6799, %v6807
      %v6895 = vcombine.high %v6799, %v6807
      %v6897 = vunpack.c.l.s4 1983009808
      %v6898 = vunpack.c.0.s8 %v6897
      %v6899 = vlaneseq
      %v6900 = vshrl.u32 %v6899, 7
      %v6901 = vsub.s32 %v6898, %v6900
      %v6902 = vrot.slane %v6894, %v6901
      %v6904 = vunpack.c.l.s4 1983009808
      %v6905 = vunpack.c.0.s8 %v6904
      %v6906 = vlaneseq
      %v6907 = vshrl.u32 %v6906, 7
      %v6908 = vsub.s32 %v6905, %v6907
      %v6909 = vrot.slane %v6895, %v6908
      %v6910 = vcombine.low %v6803, %v6811
      %v6911 = vcombine.high %v6803, %v6811
      %v6913 = vunpack.c.l.s4 1983009808
      %v6914 = vunpack.c.0.s8 %v6913
      %v6915 = vlaneseq
      %v6916 = vshrl.u32 %v6915, 7
      %v6917 = vsub.s32 %v6914, %v6916
      %v6918 = vrot.slane %v6910, %v6917
      %v6920 = vunpack.c.l.s4 1983009808
      %v6921 = vunpack.c.0.s8 %v6920
      %v6922 = vlaneseq
      %v6923 = vshrl.u32 %v6922, 7
      %v6924 = vsub.s32 %v6921, %v6923
      %v6925 = vrot.slane %v6911, %v6924
      %v6926 = vcombine.low %v6815, %v6823
      %v6927 = vcombine.high %v6815, %v6823
      %v6929 = vunpack.c.l.s4 1983009808
      %v6930 = vunpack.c.0.s8 %v6929
      %v6931 = vlaneseq
      %v6932 = vshrl.u32 %v6931, 7
      %v6933 = vsub.s32 %v6930, %v6932
      %v6934 = vrot.slane %v6926, %v6933
      %v6936 = vunpack.c.l.s4 1983009808
      %v6937 = vunpack.c.0.s8 %v6936
      %v6938 = vlaneseq
      %v6939 = vshrl.u32 %v6938, 7
      %v6940 = vsub.s32 %v6937, %v6939
      %v6941 = vrot.slane %v6927, %v6940
      %v6942 = vcombine.low %v6819, %v6827
      %v6943 = vcombine.high %v6819, %v6827
      %v6945 = vunpack.c.l.s4 1983009808
      %v6946 = vunpack.c.0.s8 %v6945
      %v6947 = vlaneseq
      %v6948 = vshrl.u32 %v6947, 7
      %v6949 = vsub.s32 %v6946, %v6948
      %v6950 = vrot.slane %v6942, %v6949
      %v6952 = vunpack.c.l.s4 1983009808
      %v6953 = vunpack.c.0.s8 %v6952
      %v6954 = vlaneseq
      %v6955 = vshrl.u32 %v6954, 7
      %v6956 = vsub.s32 %v6953, %v6955
      %v6957 = vrot.slane %v6943, %v6956
      %v6958 = vcombine.low %v6902, %v6918
      %v6959 = vcombine.high %v6902, %v6918
      %v6961 = vunpack.c.l.s4 1934713408
      %v6962 = vunpack.c.0.s8 %v6961
      %v6963 = vlaneseq
      %v6964 = vshrl.u32 %v6963, 7
      %v6965 = vsub.s32 %v6962, %v6964
      %v6966 = vrot.slane %v6958, %v6965
      %v6968 = vunpack.c.l.s4 1934713408
      %v6969 = vunpack.c.0.s8 %v6968
      %v6970 = vlaneseq
      %v6971 = vshrl.u32 %v6970, 7
      %v6972 = vsub.s32 %v6969, %v6971
      %v6973 = vrot.slane %v6959, %v6972
      %v6974 = vcombine.low %v6909, %v6925
      %v6975 = vcombine.high %v6909, %v6925
      %v6977 = vunpack.c.l.s4 1934713408
      %v6978 = vunpack.c.0.s8 %v6977
      %v6979 = vlaneseq
      %v6980 = vshrl.u32 %v6979, 7
      %v6981 = vsub.s32 %v6978, %v6980
      %v6982 = vrot.slane %v6974, %v6981
      %v6984 = vunpack.c.l.s4 1934713408
      %v6985 = vunpack.c.0.s8 %v6984
      %v6986 = vlaneseq
      %v6987 = vshrl.u32 %v6986, 7
      %v6988 = vsub.s32 %v6985, %v6987
      %v6989 = vrot.slane %v6975, %v6988
      %v6990 = vcombine.low %v6934, %v6950
      %v6991 = vcombine.high %v6934, %v6950
      %v6993 = vunpack.c.l.s4 1934713408
      %v6994 = vunpack.c.0.s8 %v6993
      %v6995 = vlaneseq
      %v6996 = vshrl.u32 %v6995, 7
      %v6997 = vsub.s32 %v6994, %v6996
      %v6998 = vrot.slane %v6990, %v6997
      %v7000 = vunpack.c.l.s4 1934713408
      %v7001 = vunpack.c.0.s8 %v7000
      %v7002 = vlaneseq
      %v7003 = vshrl.u32 %v7002, 7
      %v7004 = vsub.s32 %v7001, %v7003
      %v7005 = vrot.slane %v6991, %v7004
      %v7006 = vcombine.low %v6941, %v6957
      %v7007 = vcombine.high %v6941, %v6957
      %v7009 = vunpack.c.l.s4 1934713408
      %v7010 = vunpack.c.0.s8 %v7009
      %v7011 = vlaneseq
      %v7012 = vshrl.u32 %v7011, 7
      %v7013 = vsub.s32 %v7010, %v7012
      %v7014 = vrot.slane %v7006, %v7013
      %v7016 = vunpack.c.l.s4 1934713408
      %v7017 = vunpack.c.0.s8 %v7016
      %v7018 = vlaneseq
      %v7019 = vshrl.u32 %v7018, 7
      %v7020 = vsub.s32 %v7017, %v7019
      %v7021 = vrot.slane %v7007, %v7020
      %v7022 = vcombine.low %v6966, %v6998
      %v7023 = vcombine.high %v6966, %v6998
      %v7024 = vcombine.low %v6973, %v7005
      %v7025 = vcombine.high %v6973, %v7005
      %v7026 = vcombine.low %v6982, %v7014
      %v7027 = vcombine.high %v6982, %v7014
      %v7028 = vcombine.low %v6989, %v7021
      %v7029 = vcombine.high %v6989, %v7021
      %v7030 = vcombine.low %v6831, %v6839
      %v7031 = vcombine.high %v6831, %v6839
      %v7033 = vunpack.c.l.s4 1983009808
      %v7034 = vunpack.c.0.s8 %v7033
      %v7035 = vlaneseq
      %v7036 = vshrl.u32 %v7035, 7
      %v7037 = vsub.s32 %v7034, %v7036
      %v7038 = vrot.slane %v7030, %v7037
      %v7040 = vunpack.c.l.s4 1983009808
      %v7041 = vunpack.c.0.s8 %v7040
      %v7042 = vlaneseq
      %v7043 = vshrl.u32 %v7042, 7
      %v7044 = vsub.s32 %v7041, %v7043
      %v7045 = vrot.slane %v7031, %v7044
      %v7046 = vcombine.low %v6835, %v6843
      %v7047 = vcombine.high %v6835, %v6843
      %v7049 = vunpack.c.l.s4 1983009808
      %v7050 = vunpack.c.0.s8 %v7049
      %v7051 = vlaneseq
      %v7052 = vshrl.u32 %v7051, 7
      %v7053 = vsub.s32 %v7050, %v7052
      %v7054 = vrot.slane %v7046, %v7053
      %v7056 = vunpack.c.l.s4 1983009808
      %v7057 = vunpack.c.0.s8 %v7056
      %v7058 = vlaneseq
      %v7059 = vshrl.u32 %v7058, 7
      %v7060 = vsub.s32 %v7057, %v7059
      %v7061 = vrot.slane %v7047, %v7060
      %v7062 = vcombine.low %v6847, %v6855
      %v7063 = vcombine.high %v6847, %v6855
      %v7065 = vunpack.c.l.s4 1983009808
      %v7066 = vunpack.c.0.s8 %v7065
      %v7067 = vlaneseq
      %v7068 = vshrl.u32 %v7067, 7
      %v7069 = vsub.s32 %v7066, %v7068
      %v7070 = vrot.slane %v7062, %v7069
      %v7072 = vunpack.c.l.s4 1983009808
      %v7073 = vunpack.c.0.s8 %v7072
      %v7074 = vlaneseq
      %v7075 = vshrl.u32 %v7074, 7
      %v7076 = vsub.s32 %v7073, %v7075
      %v7077 = vrot.slane %v7063, %v7076
      %v7078 = vcombine.low %v6851, %v6859
      %v7079 = vcombine.high %v6851, %v6859
      %v7081 = vunpack.c.l.s4 1983009808
      %v7082 = vunpack.c.0.s8 %v7081
      %v7083 = vlaneseq
      %v7084 = vshrl.u32 %v7083, 7
      %v7085 = vsub.s32 %v7082, %v7084
      %v7086 = vrot.slane %v7078, %v7085
      %v7088 = vunpack.c.l.s4 1983009808
      %v7089 = vunpack.c.0.s8 %v7088
      %v7090 = vlaneseq
      %v7091 = vshrl.u32 %v7090, 7
      %v7092 = vsub.s32 %v7089, %v7091
      %v7093 = vrot.slane %v7079, %v7092
      %v7094 = vcombine.low %v7038, %v7054
      %v7095 = vcombine.high %v7038, %v7054
      %v7097 = vunpack.c.l.s4 1934713408
      %v7098 = vunpack.c.0.s8 %v7097
      %v7099 = vlaneseq
      %v7100 = vshrl.u32 %v7099, 7
      %v7101 = vsub.s32 %v7098, %v7100
      %v7102 = vrot.slane %v7094, %v7101
      %v7104 = vunpack.c.l.s4 1934713408
      %v7105 = vunpack.c.0.s8 %v7104
      %v7106 = vlaneseq
      %v7107 = vshrl.u32 %v7106, 7
      %v7108 = vsub.s32 %v7105, %v7107
      %v7109 = vrot.slane %v7095, %v7108
      %v7110 = vcombine.low %v7045, %v7061
      %v7111 = vcombine.high %v7045, %v7061
      %v7113 = vunpack.c.l.s4 1934713408
      %v7114 = vunpack.c.0.s8 %v7113
      %v7115 = vlaneseq
      %v7116 = vshrl.u32 %v7115, 7
      %v7117 = vsub.s32 %v7114, %v7116
      %v7118 = vrot.slane %v7110, %v7117
      %v7120 = vunpack.c.l.s4 1934713408
      %v7121 = vunpack.c.0.s8 %v7120
      %v7122 = vlaneseq
      %v7123 = vshrl.u32 %v7122, 7
      %v7124 = vsub.s32 %v7121, %v7123
      %v7125 = vrot.slane %v7111, %v7124
      %v7126 = vcombine.low %v7070, %v7086
      %v7127 = vcombine.high %v7070, %v7086
      %v7129 = vunpack.c.l.s4 1934713408
      %v7130 = vunpack.c.0.s8 %v7129
      %v7131 = vlaneseq
      %v7132 = vshrl.u32 %v7131, 7
      %v7133 = vsub.s32 %v7130, %v7132
      %v7134 = vrot.slane %v7126, %v7133
      %v7136 = vunpack.c.l.s4 1934713408
      %v7137 = vunpack.c.0.s8 %v7136
      %v7138 = vlaneseq
      %v7139 = vshrl.u32 %v7138, 7
      %v7140 = vsub.s32 %v7137, %v7139
      %v7141 = vrot.slane %v7127, %v7140
      %v7142 = vcombine.low %v7077, %v7093
      %v7143 = vcombine.high %v7077, %v7093
      %v7145 = vunpack.c.l.s4 1934713408
      %v7146 = vunpack.c.0.s8 %v7145
      %v7147 = vlaneseq
      %v7148 = vshrl.u32 %v7147, 7
      %v7149 = vsub.s32 %v7146, %v7148
      %v7150 = vrot.slane %v7142, %v7149
      %v7152 = vunpack.c.l.s4 1934713408
      %v7153 = vunpack.c.0.s8 %v7152
      %v7154 = vlaneseq
      %v7155 = vshrl.u32 %v7154, 7
      %v7156 = vsub.s32 %v7153, %v7155
      %v7157 = vrot.slane %v7143, %v7156
      %v7158 = vcombine.low %v7102, %v7134
      %v7159 = vcombine.high %v7102, %v7134
      %v7160 = vcombine.low %v7109, %v7141
      %v7161 = vcombine.high %v7109, %v7141
      %v7162 = vcombine.low %v7118, %v7150
      %v7163 = vcombine.high %v7118, %v7150
      %v7164 = vcombine.low %v7125, %v7157
      %v7165 = vcombine.high %v7125, %v7157
      %v7166 = vcombine.low %v6801, %v6809
      %v7167 = vcombine.high %v6801, %v6809
      %v7169 = vunpack.c.l.s4 1983009808
      %v7170 = vunpack.c.0.s8 %v7169
      %v7171 = vlaneseq
      %v7172 = vshrl.u32 %v7171, 7
      %v7173 = vsub.s32 %v7170, %v7172
      %v7174 = vrot.slane %v7166, %v7173
      %v7176 = vunpack.c.l.s4 1983009808
      %v7177 = vunpack.c.0.s8 %v7176
      %v7178 = vlaneseq
      %v7179 = vshrl.u32 %v7178, 7
      %v7180 = vsub.s32 %v7177, %v7179
      %v7181 = vrot.slane %v7167, %v7180
      %v7182 = vcombine.low %v6805, %v6813
      %v7183 = vcombine.high %v6805, %v6813
      %v7185 = vunpack.c.l.s4 1983009808
      %v7186 = vunpack.c.0.s8 %v7185
      %v7187 = vlaneseq
      %v7188 = vshrl.u32 %v7187, 7
      %v7189 = vsub.s32 %v7186, %v7188
      %v7190 = vrot.slane %v7182, %v7189
      %v7192 = vunpack.c.l.s4 1983009808
      %v7193 = vunpack.c.0.s8 %v7192
      %v7194 = vlaneseq
      %v7195 = vshrl.u32 %v7194, 7
      %v7196 = vsub.s32 %v7193, %v7195
      %v7197 = vrot.slane %v7183, %v7196
      %v7198 = vcombine.low %v6817, %v6825
      %v7199 = vcombine.high %v6817, %v6825
      %v7201 = vunpack.c.l.s4 1983009808
      %v7202 = vunpack.c.0.s8 %v7201
      %v7203 = vlaneseq
      %v7204 = vshrl.u32 %v7203, 7
      %v7205 = vsub.s32 %v7202, %v7204
      %v7206 = vrot.slane %v7198, %v7205
      %v7208 = vunpack.c.l.s4 1983009808
      %v7209 = vunpack.c.0.s8 %v7208
      %v7210 = vlaneseq
      %v7211 = vshrl.u32 %v7210, 7
      %v7212 = vsub.s32 %v7209, %v7211
      %v7213 = vrot.slane %v7199, %v7212
      %v7214 = vcombine.low %v6821, %v6829
      %v7215 = vcombine.high %v6821, %v6829
      %v7217 = vunpack.c.l.s4 1983009808
      %v7218 = vunpack.c.0.s8 %v7217
      %v7219 = vlaneseq
      %v7220 = vshrl.u32 %v7219, 7
      %v7221 = vsub.s32 %v7218, %v7220
      %v7222 = vrot.slane %v7214, %v7221
      %v7224 = vunpack.c.l.s4 1983009808
      %v7225 = vunpack.c.0.s8 %v7224
      %v7226 = vlaneseq
      %v7227 = vshrl.u32 %v7226, 7
      %v7228 = vsub.s32 %v7225, %v7227
      %v7229 = vrot.slane %v7215, %v7228
      %v7230 = vcombine.low %v7174, %v7190
      %v7231 = vcombine.high %v7174, %v7190
      %v7233 = vunpack.c.l.s4 1934713408
      %v7234 = vunpack.c.0.s8 %v7233
      %v7235 = vlaneseq
      %v7236 = vshrl.u32 %v7235, 7
      %v7237 = vsub.s32 %v7234, %v7236
      %v7238 = vrot.slane %v7230, %v7237
      %v7240 = vunpack.c.l.s4 1934713408
      %v7241 = vunpack.c.0.s8 %v7240
      %v7242 = vlaneseq
      %v7243 = vshrl.u32 %v7242, 7
      %v7244 = vsub.s32 %v7241, %v7243
      %v7245 = vrot.slane %v7231, %v7244
      %v7246 = vcombine.low %v7181, %v7197
      %v7247 = vcombine.high %v7181, %v7197
      %v7249 = vunpack.c.l.s4 1934713408
      %v7250 = vunpack.c.0.s8 %v7249
      %v7251 = vlaneseq
      %v7252 = vshrl.u32 %v7251, 7
      %v7253 = vsub.s32 %v7250, %v7252
      %v7254 = vrot.slane %v7246, %v7253
      %v7256 = vunpack.c.l.s4 1934713408
      %v7257 = vunpack.c.0.s8 %v7256
      %v7258 = vlaneseq
      %v7259 = vshrl.u32 %v7258, 7
      %v7260 = vsub.s32 %v7257, %v7259
      %v7261 = vrot.slane %v7247, %v7260
      %v7262 = vcombine.low %v7206, %v7222
      %v7263 = vcombine.high %v7206, %v7222
      %v7265 = vunpack.c.l.s4 1934713408
      %v7266 = vunpack.c.0.s8 %v7265
      %v7267 = vlaneseq
      %v7268 = vshrl.u32 %v7267, 7
      %v7269 = vsub.s32 %v7266, %v7268
      %v7270 = vrot.slane %v7262, %v7269
      %v7272 = vunpack.c.l.s4 1934713408
      %v7273 = vunpack.c.0.s8 %v7272
      %v7274 = vlaneseq
      %v7275 = vshrl.u32 %v7274, 7
      %v7276 = vsub.s32 %v7273, %v7275
      %v7277 = vrot.slane %v7263, %v7276
      %v7278 = vcombine.low %v7213, %v7229
      %v7279 = vcombine.high %v7213, %v7229
      %v7281 = vunpack.c.l.s4 1934713408
      %v7282 = vunpack.c.0.s8 %v7281
      %v7283 = vlaneseq
      %v7284 = vshrl.u32 %v7283, 7
      %v7285 = vsub.s32 %v7282, %v7284
      %v7286 = vrot.slane %v7278, %v7285
      %v7288 = vunpack.c.l.s4 1934713408
      %v7289 = vunpack.c.0.s8 %v7288
      %v7290 = vlaneseq
      %v7291 = vshrl.u32 %v7290, 7
      %v7292 = vsub.s32 %v7289, %v7291
      %v7293 = vrot.slane %v7279, %v7292
      %v7294 = vcombine.low %v7238, %v7270
      %v7295 = vcombine.high %v7238, %v7270
      %v7296 = vcombine.low %v7245, %v7277
      %v7297 = vcombine.high %v7245, %v7277
      %v7298 = vcombine.low %v7254, %v7286
      %v7299 = vcombine.high %v7254, %v7286
      %v7300 = vcombine.low %v7261, %v7293
      %v7301 = vcombine.high %v7261, %v7293
      %v7302 = vcombine.low %v6833, %v6841
      %v7303 = vcombine.high %v6833, %v6841
      %v7305 = vunpack.c.l.s4 1983009808
      %v7306 = vunpack.c.0.s8 %v7305
      %v7307 = vlaneseq
      %v7308 = vshrl.u32 %v7307, 7
      %v7309 = vsub.s32 %v7306, %v7308
      %v7310 = vrot.slane %v7302, %v7309
      %v7312 = vunpack.c.l.s4 1983009808
      %v7313 = vunpack.c.0.s8 %v7312
      %v7314 = vlaneseq
      %v7315 = vshrl.u32 %v7314, 7
      %v7316 = vsub.s32 %v7313, %v7315
      %v7317 = vrot.slane %v7303, %v7316
      %v7318 = vcombine.low %v6837, %v6845
      %v7319 = vcombine.high %v6837, %v6845
      %v7321 = vunpack.c.l.s4 1983009808
      %v7322 = vunpack.c.0.s8 %v7321
      %v7323 = vlaneseq
      %v7324 = vshrl.u32 %v7323, 7
      %v7325 = vsub.s32 %v7322, %v7324
      %v7326 = vrot.slane %v7318, %v7325
      %v7328 = vunpack.c.l.s4 1983009808
      %v7329 = vunpack.c.0.s8 %v7328
      %v7330 = vlaneseq
      %v7331 = vshrl.u32 %v7330, 7
      %v7332 = vsub.s32 %v7329, %v7331
      %v7333 = vrot.slane %v7319, %v7332
      %v7334 = vcombine.low %v6849, %v6857
      %v7335 = vcombine.high %v6849, %v6857
      %v7337 = vunpack.c.l.s4 1983009808
      %v7338 = vunpack.c.0.s8 %v7337
      %v7339 = vlaneseq
      %v7340 = vshrl.u32 %v7339, 7
      %v7341 = vsub.s32 %v7338, %v7340
      %v7342 = vrot.slane %v7334, %v7341
      %v7344 = vunpack.c.l.s4 1983009808
      %v7345 = vunpack.c.0.s8 %v7344
      %v7346 = vlaneseq
      %v7347 = vshrl.u32 %v7346, 7
      %v7348 = vsub.s32 %v7345, %v7347
      %v7349 = vrot.slane %v7335, %v7348
      %v7350 = vcombine.low %v6853, %v6861
      %v7351 = vcombine.high %v6853, %v6861
      %v7353 = vunpack.c.l.s4 1983009808
      %v7354 = vunpack.c.0.s8 %v7353
      %v7355 = vlaneseq
      %v7356 = vshrl.u32 %v7355, 7
      %v7357 = vsub.s32 %v7354, %v7356
      %v7358 = vrot.slane %v7350, %v7357
      %v7360 = vunpack.c.l.s4 1983009808
      %v7361 = vunpack.c.0.s8 %v7360
      %v7362 = vlaneseq
      %v7363 = vshrl.u32 %v7362, 7
      %v7364 = vsub.s32 %v7361, %v7363
      %v7365 = vrot.slane %v7351, %v7364
      %v7366 = vcombine.low %v7310, %v7326
      %v7367 = vcombine.high %v7310, %v7326
      %v7369 = vunpack.c.l.s4 1934713408
      %v7370 = vunpack.c.0.s8 %v7369
      %v7371 = vlaneseq
      %v7372 = vshrl.u32 %v7371, 7
      %v7373 = vsub.s32 %v7370, %v7372
      %v7374 = vrot.slane %v7366, %v7373
      %v7376 = vunpack.c.l.s4 1934713408
      %v7377 = vunpack.c.0.s8 %v7376
      %v7378 = vlaneseq
      %v7379 = vshrl.u32 %v7378, 7
      %v7380 = vsub.s32 %v7377, %v7379
      %v7381 = vrot.slane %v7367, %v7380
      %v7382 = vcombine.low %v7317, %v7333
      %v7383 = vcombine.high %v7317, %v7333
      %v7385 = vunpack.c.l.s4 1934713408
      %v7386 = vunpack.c.0.s8 %v7385
      %v7387 = vlaneseq
      %v7388 = vshrl.u32 %v7387, 7
      %v7389 = vsub.s32 %v7386, %v7388
      %v7390 = vrot.slane %v7382, %v7389
      %v7392 = vunpack.c.l.s4 1934713408
      %v7393 = vunpack.c.0.s8 %v7392
      %v7394 = vlaneseq
      %v7395 = vshrl.u32 %v7394, 7
      %v7396 = vsub.s32 %v7393, %v7395
      %v7397 = vrot.slane %v7383, %v7396
      %v7398 = vcombine.low %v7342, %v7358
      %v7399 = vcombine.high %v7342, %v7358
      %v7401 = vunpack.c.l.s4 1934713408
      %v7402 = vunpack.c.0.s8 %v7401
      %v7403 = vlaneseq
      %v7404 = vshrl.u32 %v7403, 7
      %v7405 = vsub.s32 %v7402, %v7404
      %v7406 = vrot.slane %v7398, %v7405
      %v7408 = vunpack.c.l.s4 1934713408
      %v7409 = vunpack.c.0.s8 %v7408
      %v7410 = vlaneseq
      %v7411 = vshrl.u32 %v7410, 7
      %v7412 = vsub.s32 %v7409, %v7411
      %v7413 = vrot.slane %v7399, %v7412
      %v7414 = vcombine.low %v7349, %v7365
      %v7415 = vcombine.high %v7349, %v7365
      %v7417 = vunpack.c.l.s4 1934713408
      %v7418 = vunpack.c.0.s8 %v7417
      %v7419 = vlaneseq
      %v7420 = vshrl.u32 %v7419, 7
      %v7421 = vsub.s32 %v7418, %v7420
      %v7422 = vrot.slane %v7414, %v7421
      %v7424 = vunpack.c.l.s4 1934713408
      %v7425 = vunpack.c.0.s8 %v7424
      %v7426 = vlaneseq
      %v7427 = vshrl.u32 %v7426, 7
      %v7428 = vsub.s32 %v7425, %v7427
      %v7429 = vrot.slane %v7415, %v7428
      %v7430 = vcombine.low %v7374, %v7406
      %v7431 = vcombine.high %v7374, %v7406
      %v7432 = vcombine.low %v7381, %v7413
      %v7433 = vcombine.high %v7381, %v7413
      %v7434 = vcombine.low %v7390, %v7422
      %v7435 = vcombine.high %v7390, %v7422
      %v7436 = vcombine.low %v7397, %v7429
      %v7437 = vcombine.high %v7397, %v7429
      %7440 = vrot.lane.b32.xlu0 %v7023, 16
      %v7441 = vpop.permute.xlu0 %7440
      %7442 = vrot.lane.b32.xlu0 %v7159, 16
      %v7443 = vpop.permute.xlu0 %7442
      %7448 = vrot.lane.b32.xlu0 %v7024, 32
      %v7449 = vpop.permute.xlu0 %7448
      %7450 = vrot.lane.b32.xlu0 %v7160, 32
      %v7451 = vpop.permute.xlu0 %7450
      %7456 = vrot.lane.b32.xlu0 %v7025, 48
      %v7457 = vpop.permute.xlu0 %7456
      %7458 = vrot.lane.b32.xlu0 %v7161, 48
      %v7459 = vpop.permute.xlu0 %7458
      %7464 = vrot.lane.b32.xlu0 %v7026, 64
      %v7465 = vpop.permute.xlu0 %7464
      %7466 = vrot.lane.b32.xlu0 %v7162, 64
      %v7467 = vpop.permute.xlu0 %7466
      %7472 = vrot.lane.b32.xlu0 %v7027, 80
      %v7473 = vpop.permute.xlu0 %7472
      %7474 = vrot.lane.b32.xlu0 %v7163, 80
      %v7475 = vpop.permute.xlu0 %7474
      %7480 = vrot.lane.b32.xlu0 %v7028, 96
      %v7481 = vpop.permute.xlu0 %7480
      %7482 = vrot.lane.b32.xlu0 %v7164, 96
      %v7483 = vpop.permute.xlu0 %7482
      %7488 = vrot.lane.b32.xlu0 %v7029, 112
      %v7489 = vpop.permute.xlu0 %7488
      %7490 = vrot.lane.b32.xlu0 %v7165, 112
      %v7491 = vpop.permute.xlu0 %7490
      %7496 = vrot.lane.b32.xlu0 %v7295, 16
      %v7497 = vpop.permute.xlu0 %7496
      %7498 = vrot.lane.b32.xlu0 %v7431, 16
      %v7499 = vpop.permute.xlu0 %7498
      %7504 = vrot.lane.b32.xlu0 %v7296, 32
      %v7505 = vpop.permute.xlu0 %7504
      %7506 = vrot.lane.b32.xlu0 %v7432, 32
      %v7507 = vpop.permute.xlu0 %7506
      %7512 = vrot.lane.b32.xlu0 %v7297, 48
      %v7513 = vpop.permute.xlu0 %7512
      %7514 = vrot.lane.b32.xlu0 %v7433, 48
      %v7515 = vpop.permute.xlu0 %7514
      %7520 = vrot.lane.b32.xlu0 %v7298, 64
      %v7521 = vpop.permute.xlu0 %7520
      %7522 = vrot.lane.b32.xlu0 %v7434, 64
      %v7523 = vpop.permute.xlu0 %7522
      %7528 = vrot.lane.b32.xlu0 %v7299, 80
      %v7529 = vpop.permute.xlu0 %7528
      %7530 = vrot.lane.b32.xlu0 %v7435, 80
      %v7531 = vpop.permute.xlu0 %7530
      %7536 = vrot.lane.b32.xlu0 %v7300, 96
      %v7537 = vpop.permute.xlu0 %7536
      %7538 = vrot.lane.b32.xlu0 %v7436, 96
      %v7539 = vpop.permute.xlu0 %7538
      %7544 = vrot.lane.b32.xlu0 %v7301, 112
      %v7545 = vpop.permute.xlu0 %7544
      %7546 = vrot.lane.b32.xlu0 %v7437, 112
      %v7547 = vpop.permute.xlu0 %7546
      %v7550 = vsel %vm1015, %v7022, %v7441
      %v7551 = vsel %vm1015, %v7158, %v7443
      %v7552 = vsel %vm1018, %v7550, %v7449
      %v7553 = vsel %vm1018, %v7551, %v7451
      %v7554 = vsel %vm1021, %v7552, %v7457
      %v7555 = vsel %vm1021, %v7553, %v7459
      %v7556 = vsel %vm1024, %v7554, %v7465
      %v7557 = vsel %vm1024, %v7555, %v7467
      %v7558 = vsel %vm1027, %v7556, %v7473
      %v7559 = vsel %vm1027, %v7557, %v7475
      %v7560 = vsel %vm1030, %v7558, %v7481
      %v7561 = vsel %vm1030, %v7559, %v7483
      %v7562 = vsel %vm1033, %v7560, %v7489
      %v7563 = vsel %vm1033, %v7561, %v7491
      %v7564 = vsel %vm1015, %v7294, %v7497
      %v7565 = vsel %vm1015, %v7430, %v7499
      %v7566 = vsel %vm1018, %v7564, %v7505
      %v7567 = vsel %vm1018, %v7565, %v7507
      %v7568 = vsel %vm1021, %v7566, %v7513
      %v7569 = vsel %vm1021, %v7567, %v7515
      %v7570 = vsel %vm1024, %v7568, %v7521
      %v7571 = vsel %vm1024, %v7569, %v7523
      %v7572 = vsel %vm1027, %v7570, %v7529
      %v7573 = vsel %vm1027, %v7571, %v7531
      %v7574 = vsel %vm1030, %v7572, %v7537
      %v7575 = vsel %vm1030, %v7573, %v7539
      %v7576 = vsel %vm1033, %v7574, %v7545
      %v7577 = vsel %vm1033, %v7575, %v7547
      %v7578 = vpack.c.bf16 %v7563, %v7562
      %v7579 = vpack.c.bf16 %v7577, %v7576
      %7580 = vst [vmem:[#allocation3 + $0x80] sm:$0xff] %v7578
      %7581 = vst [vmem:[#allocation3 + $0x88] sm:$0xff] %v7579
      %v7582 = vld [vmem:[%s210] sm:$0xff]
      %v7583 = vld [vmem:[#allocation3] sm:$0xff]
      %v7584 = vld [vmem:[#allocation3 + $0x8] sm:$0xff]
      %v7585 = vld [vmem:[#allocation3 + $0x10] sm:$0xff]
      %v7586 = vld [vmem:[#allocation3 + $0x18] sm:$0xff]
      %v7587 = vld [vmem:[#allocation3 + $0x20] sm:$0xff]
      %v7588 = vld [vmem:[#allocation3 + $0x28] sm:$0xff]
      %v7589 = vld [vmem:[#allocation3 + $0x30] sm:$0xff]
      %v7590 = vld [vmem:[#allocation3 + $0x38] sm:$0xff]
      %v7591 = vld [vmem:[#allocation3 + $0x40] sm:$0xff]
      %v7592 = vld [vmem:[#allocation3 + $0x48] sm:$0xff]
      %v7593 = vld [vmem:[#allocation3 + $0x50] sm:$0xff]
      %v7594 = vld [vmem:[#allocation3 + $0x58] sm:$0xff]
      %v7595 = vld [vmem:[#allocation3 + $0x60] sm:$0xff]
      %v7596 = vld [vmem:[#allocation3 + $0x68] sm:$0xff]
      %v7597 = vld [vmem:[#allocation3 + $0x70] sm:$0xff]
      %v7598 = vld [vmem:[#allocation3 + $0x78] sm:$0xff]
      %v7599 = vld [vmem:[#allocation3 + $0x80] sm:$0xff]
      %v7600 = vld [vmem:[#allocation3 + $0x88] sm:$0xff]
      %v7602 = vunpack.c.l.b16 %v7582
      %v7603 = vunpack.c.h.b16 %v7582
      %v7604 = vpack.c.b16 %v7602, %v7602
      %v7605 = vpack.c.b16 %v7603, %v7603
      %v7608 = vsel %vm1015, %v7605, 0
      %7610 = vmatprep.subr.bf16.mxu0 %v7584
      %7611 = vmatpush1.bf16.msra.mxu0 %v7583
      %7612 = vmatprep.subr.bf16.mxu0 %v7586
      %7613 = vmatpush1.bf16.msra.mxu0 %v7585
      %7614 = vmatprep.subr.bf16.mxu0 %v7588
      %7615 = vmatpush1.bf16.msra.mxu0 %v7587
      %7616 = vmatprep.subr.bf16.mxu0 %v7590
      %7617 = vmatpush1.bf16.msra.mxu0 %v7589
      %7618 = vmatprep.subr.bf16.mxu0 %v7592
      %7619 = vmatpush1.bf16.msra.mxu0 %v7591
      %7620 = vmatprep.subr.bf16.mxu0 %v7594
      %7621 = vmatpush1.bf16.msra.mxu0 %v7593
      %7622 = vmatprep.subr.bf16.mxu0 %v7596
      %7623 = vmatpush1.bf16.msra.mxu0 %v7595
      %7624 = vmatprep.subr.bf16.mxu0 %v7598
      %7625 = vmatpush1.bf16.msra.mxu0 %v7597
      %7626 = vmatprep.subr.bf16.mxu0 %v7600
      %7627 = vmatpush1.bf16.msra.mxu0 %v7599
      %7628 = vmatprep.subr.bf16.mxu0 0
      %7629 = vmatpush1.bf16.msra.mxu0 0
      %7630 = vmatprep.subr.bf16.mxu0 0
      %7631 = vmatpush1.bf16.msra.mxu0 0
      %7632 = vmatprep.subr.bf16.mxu0 0
      %7633 = vmatpush1.bf16.msra.mxu0 0
      %7634 = vmatprep.subr.bf16.mxu0 0
      %7635 = vmatpush1.bf16.msra.mxu0 0
      %7636 = vmatprep.subr.bf16.mxu0 0
      %7637 = vmatpush1.bf16.msra.mxu0 0
      %7638 = vmatprep.subr.bf16.mxu0 0
      %7639 = vmatpush1.bf16.msra.mxu0 0
      %7640 = vmatprep.subr.bf16.mxu0 0
      %7641 = vmatpush1.bf16.msra.mxu0 0
      %7642 = vmatprep.mubr.bf16.mxu0 %v7608
      %7643 = vmatmul.mubr.bf16.gmra.mrb[0].mxu0 %v7604
      %v7644 = vpop.f32.mrb[0].mxu0
      %v7645 = vadd.f32 0.0, %v7644
      %v7646 = vpop.f32.mrb[0].mxu0
      %v7647 = vadd.f32 0.0, %v7646
      %v7648 = vpop.f32.mrb[0].mxu0
      %v7649 = vpop.f32.mrb[0].mxu0
      %7650 = vdwg.mxu0
      %s7651 = smul.u32 %s19, 2
      %s7652 = smul.addr %s7651, 8
      %s7653 = scalar_lea.vmem %s219, %s7652
      %7654 = vst [vmem:[%s7653] sm:$0xff] %v7645
      %7655 = vst [vmem:[%s7653 + $0x8] sm:$0xff] %v7647
      %v7656 = vld [vmem:[#allocation4] sm:$0xff]
      %v7657 = vadd.f32 %v7645, %v7647
      %7658 = vadd.xlane.f32.xlu0 %v7657
      %v7659 = vpop.xlane.xlu0 %7658
      %v7660 = vadd.f32 %v7656, %v7659
      %vm7661 = vcmask 7168
      %7662 = vst.msk [vmem:[#allocation4] sm:$0xff] %vm7661, %v7660
      %v7663 = vld [vmem:[#allocation5] sm:$0xff]
      %v7664 = vmul.f32 %v7645, %v7645
      %v7665 = vmul.f32 %v7647, %v7647
      %v7666 = vadd.f32 %v7664, %v7665
      %7667 = vadd.xlane.f32.xlu0 %v7666
      %v7668 = vpop.xlane.xlu0 %7667
      %v7669 = vadd.f32 %v7663, %v7668
      %7670 = vst.msk [vmem:[#allocation5] sm:$0xff] %vm7661, %v7669
      %p7671 = scmp.eq.s32.totalorder %s19, 1
      // Predicated region
      $region37: #{conv_block_forward.1} parent=31 // pred_check
        %p7672 = pneg %p7671
      $region38: #{conv_block_forward.1} parent=31 // pred_check_branch
        %7674 = sbr.rel (%p7672) target = $region40
      $region39: #{conv_block_forward.1} parent=31 // pred_region
        %v7675 = vld [vmem:[#allocation4] sm:$0xff]
        %v7676 = vmul.f32 %v7675, 0.001953125
        %v7677 = vld [vmem:[#allocation5] sm:$0xff]
        %v7678 = vmul.f32 %v7677, 0.001953125
        %v7679 = vmul.f32 %v7676, %v7676
        %v7680 = vsub.f32 %v7678, %v7679
        %v7681 = vld [vmem:[%s214] sm:$0xff]
        %v7682 = vadd.f32 %v7680, 1e-05
        %v7683 = vrsqrt.pop %v7682
        %v7684 = vmul.f32 %v7681, %v7683
        %v7685 = vmul.f32 %v7676, %v7684
        %7687 = vrot.lane.b32.xlu0 %v7685, 1
        %v7688 = vpop.permute.xlu0 %7687
        %v7690 = vsub.f32 %v7681, %v7688
        %v7691 = vld [vmem:[%s219] sm:$0xff]
        %v7692 = vld [vmem:[%s219 + $0x8] sm:$0xff]
        %v7693 = vld [vmem:[%s219 + $0x10] sm:$0xff]
        %v7694 = vld [vmem:[%s219 + $0x18] sm:$0xff]
        %7696 = vset.pattern.permute.xlu0 0
        %7697 = vperm.xlu0 %7696, %v7684
        %v7698 = vpop.permute.xlu0 %7697
        %v7700 = vmul.f32 %v7691, %v7698
        %v7701 = vmul.f32 %v7692, %v7698
        %v7702 = vmul.f32 %v7693, %v7698
        %v7703 = vmul.f32 %v7694, %v7698
        %7705 = vset.pattern.permute.xlu0 1
        %7706 = vperm.xlu0 %7705, %v7690
        %v7707 = vpop.permute.xlu0 %7706
        %v7709 = vadd.f32 %v7700, %v7707
        %v7710 = vadd.f32 %v7701, %v7707
        %v7711 = vadd.f32 %v7702, %v7707
        %v7712 = vadd.f32 %v7703, %v7707
        %vm7713 = vcmp.ge.f32.partialorder %v7709, 0.0
        %vm7714 = vcmp.ge.f32.partialorder %v7710, 0.0
        %vm7715 = vcmp.ge.f32.partialorder %v7711, 0.0
        %vm7716 = vcmp.ge.f32.partialorder %v7712, 0.0
        %7718 = vset.pattern.permute.xlu0 2
        %7719 = vperm.xlu0 %7718, %v7681
        %v7720 = vpop.permute.xlu0 %7719
        %v7722 = vmul.f32 %v7720, %v7709
        %v7723 = vmul.f32 %v7720, %v7710
        %v7724 = vmul.f32 %v7720, %v7711
        %v7725 = vmul.f32 %v7720, %v7712
        %v7726 = vsel %vm7713, %v7709, %v7722
        %v7727 = vsel %vm7714, %v7710, %v7723
        %v7728 = vsel %vm7715, %v7711, %v7724
        %v7729 = vsel %vm7716, %v7712, %v7725
        %7730 = vst [vmem:[%s219] sm:$0xff] %v7726
        %7731 = vst [vmem:[%s219 + $0x8] sm:$0xff] %v7727
        %7732 = vst [vmem:[%s219 + $0x10] sm:$0xff] %v7728
        %7733 = vst [vmem:[%s219 + $0x18] sm:$0xff] %v7729
      $region40: #{conv_block_forward.1} parent=31 // pred_fallthru
        _
      %p7734 = scmp.lt.s32.totalorder %s18, 0
      %s7735 = scalar_select %p7734, %s18, 0
      %s7736 = smul.addr %s7735, 2
      %s7737 = smul.addr %s7736, 8
      %s7738 = scalar_lea.vmem %s3, %s7737
      // Predicated region
      $region41: #{conv_block_forward.1} parent=31 // pred_check
        %p7739 = pneg %p122
      $region42: #{conv_block_forward.1} parent=31 // pred_check_branch
        %7741 = sbr.rel (%p7739) target = $region44
      $region43: #{conv_block_forward.1} parent=31 // pred_region
        _
      $region44: #{conv_block_forward.1} parent=31 // pred_fallthru
        _
      // Predicated region
      $region45: #{conv_block_forward.1} parent=31 // pred_check
        %p7742 = pneg %p122
      $region46: #{conv_block_forward.1} parent=31 // pred_check_branch
        %7744 = sbr.rel (%p7742) target = $region48
      $region47: #{conv_block_forward.1} parent=31 // pred_region
        %p7745 = scmp.lt.s32.totalorder %s18, 0
        %s7746 = scalar_select %p7745, %s18, 0
        %s7747 = smul.addr %s7746, 2
        %s7748 = smul.addr %s7747, 8
        %s7749 = scalar_lea.vmem %s3, %s7748
      $region48: #{conv_block_forward.1} parent=31 // pred_fallthru
        _
    $region32: #{conv_block_forward.1} parent=5 // pred_fallthru
      _
    %p7750 = scmp.le.s32.totalorder 2, %s9
    // Predicated region
    $region49: #{conv_block_forward.1} parent=5 // pred_check
      %p7751 = pneg %p7750
    $region50: #{conv_block_forward.1} parent=5 // pred_check_branch
      %7753 = sbr.rel (%p7751) target = $region52
    $region51: #{conv_block_forward.1} parent=5 // pred_region
      %s7754 = ssub.s32 %s9, 2
    $region52: #{conv_block_forward.1} parent=5 // pred_fallthru
      _
  $region6: #{conv_block_forward.1} parent=0 // loop_footer
    %s13 = sadd.s32 1, %s9
  $region7: #{conv_block_forward.1} parent=0 // loop_footer_branch
    %8 = sbr.rel target = $region3
  $region8: #{conv_block_forward.1} parent=0 // loop_exit
    _

</llo_original>
